<compile_context>
chip_gen: v6e
topology: v6e:2x2x1
jax: 0.10.0
libtpu: 0.0.40
codegen_flags: <defaults>
</compile_context>

<pallas_src>
import functools
import math

import numpy as np
import jax
import jax.numpy as jnp
from jax import lax
from jax.experimental import pallas as pl
from jax.experimental.pallas import tpu as pltpu

# ---------------- model hyper-parameters (small, consistent with the module) --------
B = 2            # batch
NUM_SEQ = 8      # num_seq
PRED_STEP = 3    # pred_step
C_IN = 3         # input channels
SAMPLE = 64      # sample_size  -> last_size = ceil(64/32) = 2
LAST = int(math.ceil(SAMPLE / 32))
LS = LAST * LAST                 # pixels per frame after the backbone
FEAT = 32        # param['feature_size'] (small stand-in for resnet18's 256)
HEADS = 2        # param['num_heads']
DFF = 4 * FEAT   # transformer feed-forward width (assumption)


# =====================================================================================
# The single fused kernel:
#   backbone 1x1 projection (+ReLU) -> fused-QKV transformer encoder layer (per-batch
#   attention, post-norm, FFN) -> ConvGRU aggregation loop -> prediction loop ->
#   lane-dense score matmul.  Everything stays resident in VMEM.
# =====================================================================================
def _cpc_fused_kernel(pix_ref, perm_ref,
                      bbw_ref, bbb_ref,
                      wqkv_ref, bqkv_ref, wo_ref, bo_ref,
                      g1_ref, b1_ref, wff1_ref, bff1_ref, wff2_ref, bff2_ref,
                      g2_ref, b2_ref,
                      wx_ref, whru_ref, who_ref, bg_ref,
                      pw1_ref, pb1_ref, pw2_ref, pb2_ref,
                      score_ref, *, heads, batch, n_agg, pred_step, ls, eps):
    f32, bf16 = jnp.float32, jnp.bfloat16

    # ---- backbone stand-in 1x1 projection (+ ReLU); K=3 so keep f32 ---------------
    feat = jnp.dot(pix_ref[...], bbw_ref[...],
                   preferred_element_type=f32) + bbb_ref[...]
    x = jnp.maximum(feat, 0.0)                       # (M, F), rows ordered (b, n, p)
    M, F = x.shape
    T = M // batch                                   # tokens per batch = N * ls
    dh = F // heads
    scale = 1.0 / math.sqrt(dh)

    # ---- transformer encoder layer (single post-norm layer) -----------------------
    qkv = jnp.dot(x.astype(bf16), wqkv_ref[...],
                  preferred_element_type=f32) + bqkv_ref[...]
    qkv = qkv.astype(bf16)                           # cast ONCE; all slices reuse it
    wo = wo_ref[...]                                 # bf16 (F, F)

    attn_blocks = []
    for b in range(batch):                           # static: per-batch attention
        attn_b = None
        for h in range(heads):                       # static unroll (2 heads)
            qh = qkv[b * T:(b + 1) * T, h * dh:(h + 1) * dh]
            kh = qkv[b * T:(b + 1) * T, F + h * dh:F + (h + 1) * dh]
            vh = qkv[b * T:(b + 1) * T, 2 * F + h * dh:2 * F + (h + 1) * dh]
            s = lax.dot_general(qh, kh, (((1,), (1,)), ((), ())),
                                preferred_element_type=f32) * scale
            s = s - jnp.max(s, axis=-1, keepdims=True)
            p = jnp.exp(s)                           # softmax kept in f32 (v5e-safe)
            p = p * pl.reciprocal(jnp.sum(p, axis=-1, keepdims=True), approx=True)
            head_o = jnp.dot(p.astype(bf16), vh, preferred_element_type=f32)
            # fold the head concat into the out-projection (aligned wo row-slices)
            contrib = jnp.dot(head_o.astype(bf16), wo[h * dh:(h + 1) * dh, :],
                              preferred_element_type=f32)
            attn_b = contrib if attn_b is None else attn_b + contrib
        attn_blocks.append(attn_b)
    attn = jnp.concatenate(attn_blocks, axis=0) + bo_ref[...]   # aligned 32-row concat

    def layer_norm(z, g, bb):
        mu = jnp.mean(z, axis=-1, keepdims=True)
        var = jnp.mean(jnp.square(z - mu), axis=-1, keepdims=True)
        return (z - mu) * lax.rsqrt(var + eps) * g + bb

    x1 = layer_norm(x + attn, g1_ref[...], b1_ref[...])
    ff = jnp.dot(x1.astype(bf16), wff1_ref[...],
                 preferred_element_type=f32) + bff1_ref[...]
    ff = jnp.maximum(ff, 0.0)
    ff = jnp.dot(ff.astype(bf16), wff2_ref[...],
                 preferred_element_type=f32) + bff2_ref[...]
    enc = layer_norm(x1 + ff, g2_ref[...], b2_ref[...])   # (M, F) pre-ReLU, rows (b,n,p)

    # ---- ConvGRU aggregation: weights / biases hoisted once ------------------------
    P = batch * ls                                   # rows of the GRU state
    wx = wx_ref[...]                                 # bf16 (F, 3F)  [r|u|o] x-side
    whru = whru_ref[...]                             # bf16 (F, 2F)  [r|u]   h-side
    who = who_ref[...]                               # bf16 (F, F)   o-gate  h-side
    bg = bg_ref[...]                                 # f32  (1, 3F)  [br|bu|bo]
    b_ru = jnp.broadcast_to(bg[:, :2 * F], (P, 2 * F))
    b_o = jnp.broadcast_to(bg[:, 2 * F:], (P, F))
    pw1, pw2 = pw1_ref[...], pw2_ref[...]
    pb1 = jnp.broadcast_to(pb1_ref[...], (P, F))
    pb2 = jnp.broadcast_to(pb2_ref[...], (P, F))

    # Reorder the aggregation frames (b,n,p) -> (t,b,p) with ONE constant permutation
    # matmul (MXU) instead of per-step 4-row sublane slices, then compute ALL x-side
    # gate pre-activations in a single matmul (fewer, larger MXU pushes).
    agg_x = jnp.maximum(jnp.dot(perm_ref[...], enc, preferred_element_type=f32), 0.0)
    gx_agg = jnp.dot(agg_x.astype(bf16), wx, preferred_element_type=f32)  # (n_agg*P, 3F)

    def gru_step(gx, h):
        gh = jnp.dot(h.astype(bf16), whru, preferred_element_type=f32)    # (P, 2F)
        ru = jax.nn.sigmoid(gx[:, :2 * F] + gh + b_ru)                    # f32 sigmoid
        r, u = ru[:, :F], ru[:, F:]
        o = jnp.tanh(gx[:, 2 * F:]
                     + jnp.dot((h * r).astype(bf16), who,
                               preferred_element_type=f32)
                     + b_o)
        return h * (1.0 - u) + o * u

    hidden = jnp.zeros((P, F), f32)
    for t in range(n_agg):                           # static unroll; aligned 8-row slices
        hidden = gru_step(gx_agg[t * P:(t + 1) * P, :], hidden)

    # ---- prediction loop -----------------------------------------------------------
    preds = []
    for s in range(pred_step):                       # static unroll (3 steps)
        p1 = jnp.maximum(jnp.dot(hidden.astype(bf16), pw1,
                                 preferred_element_type=f32) + pb1, 0.0)
        p_tmp = jnp.dot(p1.astype(bf16), pw2, preferred_element_type=f32) + pb2
        preds.append(p_tmp)                          # pre-ReLU, like PyTorch
        if s + 1 < pred_step:                        # final hidden is discarded
            gx = jnp.dot(jnp.maximum(p_tmp, 0.0).astype(bf16), wx,
                         preferred_element_type=f32)
            hidden = gru_step(gx, hidden)
    pred_flat = jnp.concatenate(preds, axis=0)       # (pred_step*P, F), rows (s, b, p)

    # ---- lane-dense score: pred @ [enc ; 0]^T  -> (pred_step*P, 128) ---------------
    # Columns index encoder rows (b, n, p); the GT columns + row reorder are a trivial
    # XLA slice/transpose on the host.  Kept f32 for fidelity (tiny matmul).
    pad = (-M) % 128
    gt_side = enc if pad == 0 else jnp.concatenate(
        [enc, jnp.zeros((pad, F), f32)], axis=0)
    score_ref[...] = lax.dot_general(pred_flat, gt_side, (((1,), (1,)), ((), ())),
                                     preferred_element_type=f32)


# =====================================================================================
# Forward: XLA glue is only the backbone-stand-in pool and the tiny score fix-up.
# =====================================================================================
def cpc_trans_forward(block, params):
    Bb, N, C, H, W = block.shape
    L, F, ps = LAST, FEAT, PRED_STEP
    ls = L * L
    n_agg = N - ps
    T = N * ls
    score_cols = ((Bb * T + 127) // 128) * 128       # lane-dense padded width

    # --- backbone stand-in: stride-32 average pool, channels-last pixel rows --------
    x = block.reshape(Bb * N, C, L, H // L, L, W // L).mean(axis=(3, 5))   # (B*N,C,L,L)
    pix = x.transpose(0, 2, 3, 1).reshape(Bb * N * ls, C)                  # (M, C), (b,n,p)

    tp, g = params["trans"], params["gru"]
    score_raw = pl.pallas_call(
        functools.partial(_cpc_fused_kernel, heads=HEADS, batch=Bb,
                          n_agg=n_agg, pred_step=ps, ls=ls, eps=1e-5),
        out_shape=jax.ShapeDtypeStruct((Bb * ps * ls, score_cols), jnp.float32),
    )(pix, params["agg_perm"],
      params["bb_w"], params["bb_b"],
      tp["wqkv"], tp["bqkv"], tp["wo"], tp["bo"],
      tp["ln1_g"], tp["ln1_b"], tp["wff1"], tp["bff1"], tp["wff2"], tp["bff2"],
      tp["ln2_g"], tp["ln2_b"],
      g["wx"], g["wh_ru"], g["wh_o"], g["b"],
      params["pred_w1"], params["pred_b1"], params["pred_w2"], params["pred_b2"])

    # --- select GT columns (last ps frames of each batch) and fix row order ---------
    cols = jnp.concatenate(
        [score_raw[:, b * T + n_agg * ls:(b + 1) * T] for b in range(Bb)], axis=1)
    # rows are (s, b, p), cols are (b', s', p')  ->  (b, s, p, b', s', p')
    score = cols.reshape(ps, Bb, ls, Bb, ps, ls).transpose(1, 0, 2, 3, 4, 5)
    return score


def build_mask(Bb, ps, ls):
    # data-independent int8 mask, identical construction to the PyTorch module
    mask = np.zeros((Bb, ps, ls, Bb, ps, ls), dtype=np.int8)
    mask[np.arange(Bb), :, :, np.arange(Bb), :, :] = -3
    for k in range(Bb):
        mask[k, :, np.arange(ls), k, :, np.arange(ls)] = -1
    tmp = np.transpose(mask, (0, 2, 1, 3, 5, 4)).copy().reshape(Bb * ls, ps, Bb * ls, ps)
    for j in range(Bb * ls):
        tmp[j, np.arange(ps), j, np.arange(ps)] = 1   # N == pred_step at this point
    mask = tmp.reshape(Bb, ls, ps, Bb, ls, ps).transpose(0, 2, 1, 3, 5, 4)
    return jnp.asarray(mask)


def build_agg_perm(Bb, N, ps, ls):
    # constant (n_agg*B*ls, B*N*ls) permutation: (b, n, p) rows -> (t, b, p) rows
    n_agg = N - ps
    P = Bb * ls
    perm = np.zeros((n_agg * P, Bb * N * ls), np.float32)
    for t in range(n_agg):
        for b in range(Bb):
            for p in range(ls):
                perm[t * P + b * ls + p, b * N * ls + t * ls + p] = 1.0
    return jnp.asarray(perm)


# =====================================================================================
# Deterministic parameter init (orthogonal weights, zero biases, LN gamma=1 beta=0).
# Matmul weights are stored in bf16 (they are consumed in bf16 at the MXU anyway).
# =====================================================================================
def orthogonal_init(key, rows, cols):
    big, small = max(rows, cols), min(rows, cols)
    a = jax.random.normal(key, (big, small), dtype=jnp.float32)
    q, r = jnp.linalg.qr(a)
    q = q * jnp.sign(jnp.diagonal(r))
    if rows < cols:
        q = q.T
    return q  # (rows, cols)


def init_params(key):
    F, C, DF = FEAT, C_IN, DFF
    bf16 = jnp.bfloat16
    ks = jax.random.split(key, 16)
    z = lambda n: jnp.zeros((1, n), jnp.float32)     # biases as (1, n) row vectors

    p = {"bb_w": orthogonal_init(ks[0], F, C).T, "bb_b": z(F)}

    trans = {}
    wq = orthogonal_init(ks[1], F, F).T
    wk = orthogonal_init(ks[2], F, F).T
    wv = orthogonal_init(ks[3], F, F).T
    trans["wqkv"] = jnp.concatenate([wq, wk, wv], axis=1).astype(bf16)   # (F, 3F)
    trans["bqkv"] = z(3 * F)
    trans["wo"] = orthogonal_init(ks[4], F, F).T.astype(bf16)
    trans["bo"] = z(F)
    trans["wff1"] = orthogonal_init(ks[5], DF, F).T.astype(bf16)         # (F, DF)
    trans["bff1"] = z(DF)
    trans["wff2"] = orthogonal_init(ks[6], F, DF).T.astype(bf16)         # (DF, F)
    trans["bff2"] = z(F)
    trans["ln1_g"], trans["ln1_b"] = jnp.ones((1, F), jnp.float32), z(F)
    trans["ln2_g"], trans["ln2_b"] = jnp.ones((1, F), jnp.float32), z(F)
    p["trans"] = trans

    # ConvGRU: per-gate conv weight (F_out, 2F_in) orthogonal, split into x/h halves,
    # then fused: [r|u|o] x-side -> (F, 3F); [r|u] h-side -> (F, 2F); o h-side separate.
    gx, gh = [], []
    for i in range(3):                               # r, u, o
        wf = orthogonal_init(ks[7 + i], F, 2 * F)    # (out, [x|h]) like conv(F, 2F, 1)
        gx.append(wf[:, :F].T)                       # (F_in, F_out)
        gh.append(wf[:, F:].T)
    p["gru"] = {"wx": jnp.concatenate(gx, axis=1).astype(bf16),          # (F, 3F)
                "wh_ru": jnp.concatenate(gh[:2], axis=1).astype(bf16),   # (F, 2F)
                "wh_o": gh[2].astype(bf16),                              # (F, F)
                "b": z(3 * F)}                                           # [br|bu|bo]

    p["pred_w1"] = orthogonal_init(ks[10], F, F).T.astype(bf16)
    p["pred_b1"] = z(F)
    p["pred_w2"] = orthogonal_init(ks[11], F, F).T.astype(bf16)
    p["pred_b2"] = z(F)

    p["agg_perm"] = build_agg_perm(B, NUM_SEQ, PRED_STEP, LS)
    return p


# =====================================================================================
if __name__ == "__main__":
    key = jax.random.PRNGKey(0)
    params = init_params(key)

    block = jax.random.normal(jax.random.fold_in(key, 999),
                              (B, NUM_SEQ, C_IN, SAMPLE, SAMPLE), dtype=jnp.float32)

    score = jax.jit(cpc_trans_forward)(block, params)
    mask = build_mask(B, PRED_STEP, LS)

    jax.block_until_ready(score)
    jax.block_until_ready(mask)

    assert score.shape == (B, PRED_STEP, LS, B, PRED_STEP, LS)
    assert mask.shape == (B, PRED_STEP, LS, B, PRED_STEP, LS)
    assert mask.dtype == jnp.int8
    assert bool(jnp.all(jnp.isfinite(score)))

    print("KERNEL_OK")
</pallas_src>

<mosaic_0001>
module attributes {stable_mosaic.version = 11 : i64} {
  func.func @_cpc_fused_kernel(%arg0: memref<64x3xf32, #tpu.memory_space<vmem>>, %arg1: memref<40x64xf32, #tpu.memory_space<vmem>>, %arg2: memref<3x32xf32, #tpu.memory_space<vmem>>, %arg3: memref<1x32xf32, #tpu.memory_space<vmem>>, %arg4: memref<32x96xbf16, #tpu.memory_space<vmem>>, %arg5: memref<1x96xf32, #tpu.memory_space<vmem>>, %arg6: memref<32x32xbf16, #tpu.memory_space<vmem>>, %arg7: memref<1x32xf32, #tpu.memory_space<vmem>>, %arg8: memref<1x32xf32, #tpu.memory_space<vmem>>, %arg9: memref<1x32xf32, #tpu.memory_space<vmem>>, %arg10: memref<32x128xbf16, #tpu.memory_space<vmem>>, %arg11: memref<1x128xf32, #tpu.memory_space<vmem>>, %arg12: memref<128x32xbf16, #tpu.memory_space<vmem>>, %arg13: memref<1x32xf32, #tpu.memory_space<vmem>>, %arg14: memref<1x32xf32, #tpu.memory_space<vmem>>, %arg15: memref<1x32xf32, #tpu.memory_space<vmem>>, %arg16: memref<32x96xbf16, #tpu.memory_space<vmem>>, %arg17: memref<32x64xbf16, #tpu.memory_space<vmem>>, %arg18: memref<32x32xbf16, #tpu.memory_space<vmem>>, %arg19: memref<1x96xf32, #tpu.memory_space<vmem>>, %arg20: memref<32x32xbf16, #tpu.memory_space<vmem>>, %arg21: memref<1x32xf32, #tpu.memory_space<vmem>>, %arg22: memref<32x32xbf16, #tpu.memory_space<vmem>>, %arg23: memref<1x32xf32, #tpu.memory_space<vmem>>, %arg24: memref<24x128xf32, #tpu.memory_space<vmem>>) attributes {dimension_semantics = [], scalar_prefetch = 0 : i64, scratch_operands = 0 : i64, tpu.core_type = #tpu.core_type<tc>} {
    %c0 = arith.constant 0 : index
    %c0_0 = arith.constant 0 : index
    %0 = vector.load %arg0[%c0, %c0_0] : memref<64x3xf32, #tpu.memory_space<vmem>>, vector<64x3xf32>
    %c0_1 = arith.constant 0 : index
    %c0_2 = arith.constant 0 : index
    %1 = vector.load %arg2[%c0_1, %c0_2] : memref<3x32xf32, #tpu.memory_space<vmem>>, vector<3x32xf32>
    %cst = arith.constant dense<0.000000e+00> : vector<64x32xf32>
    %2 = tpu.matmul %0, %1, %cst {dimension_numbers = #tpu.dot_dimension_numbers<[1], [0], [0], [1], [0, 0, 1, 1], [], []>} : vector<64x3xf32>, vector<3x32xf32>, vector<64x32xf32> -> vector<64x32xf32>
    %c0_3 = arith.constant 0 : index
    %c0_4 = arith.constant 0 : index
    %3 = vector.load %arg3[%c0_3, %c0_4] : memref<1x32xf32, #tpu.memory_space<vmem>>, vector<1x32xf32>
    %4 = vector.broadcast %3 : vector<1x32xf32> to vector<64x32xf32>
    %5 = arith.addf %2, %4 : vector<64x32xf32>
    %cst_5 = arith.constant 0.000000e+00 : f32
    %6 = vector.broadcast %cst_5 : f32 to vector<64x32xf32>
    %7 = arith.maximumf %5, %6 : vector<64x32xf32>
    %8 = arith.truncf %7 : vector<64x32xf32> to vector<64x32xbf16>
    %c0_6 = arith.constant 0 : index
    %c0_7 = arith.constant 0 : index
    %9 = vector.load %arg4[%c0_6, %c0_7] : memref<32x96xbf16, #tpu.memory_space<vmem>>, vector<32x96xbf16>
    %cst_8 = arith.constant dense<0.000000e+00> : vector<64x96xf32>
    %10 = tpu.matmul %8, %9, %cst_8 {dimension_numbers = #tpu.dot_dimension_numbers<[1], [0], [0], [1], [0, 0, 1, 1], [], []>} : vector<64x32xbf16>, vector<32x96xbf16>, vector<64x96xf32> -> vector<64x96xf32>
    %c0_9 = arith.constant 0 : index
    %c0_10 = arith.constant 0 : index
    %11 = vector.load %arg5[%c0_9, %c0_10] : memref<1x96xf32, #tpu.memory_space<vmem>>, vector<1x96xf32>
    %12 = vector.broadcast %11 : vector<1x96xf32> to vector<64x96xf32>
    %13 = arith.addf %10, %12 : vector<64x96xf32>
    %14 = arith.truncf %13 : vector<64x96xf32> to vector<64x96xbf16>
    %c0_11 = arith.constant 0 : index
    %c0_12 = arith.constant 0 : index
    %15 = vector.load %arg6[%c0_11, %c0_12] : memref<32x32xbf16, #tpu.memory_space<vmem>>, vector<32x32xbf16>
    %16 = vector.extract_strided_slice %14 {offsets = [0, 0], sizes = [32, 16], strides = [1, 1]} : vector<64x96xbf16> to vector<32x16xbf16>
    %17 = vector.extract_strided_slice %14 {offsets = [0, 32], sizes = [32, 16], strides = [1, 1]} : vector<64x96xbf16> to vector<32x16xbf16>
    %18 = vector.extract_strided_slice %14 {offsets = [0, 64], sizes = [32, 16], strides = [1, 1]} : vector<64x96xbf16> to vector<32x16xbf16>
    %cst_13 = arith.constant dense<0.000000e+00> : vector<32x32xf32>
    %19 = tpu.matmul %16, %17, %cst_13 {dimension_numbers = #tpu.dot_dimension_numbers<[1], [1], [0], [0], [0, 0, 1, 0], [], []>} : vector<32x16xbf16>, vector<32x16xbf16>, vector<32x32xf32> -> vector<32x32xf32>
    %cst_14 = arith.constant 2.500000e-01 : f32
    %20 = vector.broadcast %cst_14 : f32 to vector<32x32xf32>
    %21 = arith.mulf %19, %20 : vector<32x32xf32>
    %cst_15 = arith.constant dense<0xFF800000> : vector<32xf32>
    %22 = vector.multi_reduction <maximumf>, %21, %cst_15 [1] : vector<32x32xf32> to vector<32xf32>
    %23 = vector.shape_cast %22 : vector<32xf32> to vector<32x1xf32>
    %24 = vector.broadcast %23 : vector<32x1xf32> to vector<32x32xf32>
    %25 = arith.subf %21, %24 : vector<32x32xf32>
    %26 = math.exp %25 : vector<32x32xf32>
    %cst_16 = arith.constant dense<0.000000e+00> : vector<32xf32>
    %27 = vector.multi_reduction <add>, %26, %cst_16 [1] : vector<32x32xf32> to vector<32xf32>
    %28 = vector.shape_cast %27 : vector<32xf32> to vector<32x1xf32>
    %29 = tpu.reciprocal %28 {approx = true} : vector<32x1xf32> -> vector<32x1xf32>
    %30 = vector.broadcast %29 : vector<32x1xf32> to vector<32x32xf32>
    %31 = arith.mulf %26, %30 : vector<32x32xf32>
    %32 = arith.truncf %31 : vector<32x32xf32> to vector<32x32xbf16>
    %cst_17 = arith.constant dense<0.000000e+00> : vector<32x16xf32>
    %33 = tpu.matmul %32, %18, %cst_17 {dimension_numbers = #tpu.dot_dimension_numbers<[1], [0], [0], [1], [0, 0, 1, 1], [], []>} : vector<32x32xbf16>, vector<32x16xbf16>, vector<32x16xf32> -> vector<32x16xf32>
    %34 = arith.truncf %33 : vector<32x16xf32> to vector<32x16xbf16>
    %35 = vector.extract_strided_slice %15 {offsets = [0, 0], sizes = [16, 32], strides = [1, 1]} : vector<32x32xbf16> to vector<16x32xbf16>
    %cst_18 = arith.constant dense<0.000000e+00> : vector<32x32xf32>
    %36 = tpu.matmul %34, %35, %cst_18 {dimension_numbers = #tpu.dot_dimension_numbers<[1], [0], [0], [1], [0, 0, 1, 1], [], []>} : vector<32x16xbf16>, vector<16x32xbf16>, vector<32x32xf32> -> vector<32x32xf32>
    %37 = vector.extract_strided_slice %14 {offsets = [0, 16], sizes = [32, 16], strides = [1, 1]} : vector<64x96xbf16> to vector<32x16xbf16>
    %38 = vector.extract_strided_slice %14 {offsets = [0, 48], sizes = [32, 16], strides = [1, 1]} : vector<64x96xbf16> to vector<32x16xbf16>
    %39 = vector.extract_strided_slice %14 {offsets = [0, 80], sizes = [32, 16], strides = [1, 1]} : vector<64x96xbf16> to vector<32x16xbf16>
    %cst_19 = arith.constant dense<0.000000e+00> : vector<32x32xf32>
    %40 = tpu.matmul %37, %38, %cst_19 {dimension_numbers = #tpu.dot_dimension_numbers<[1], [1], [0], [0], [0, 0, 1, 0], [], []>} : vector<32x16xbf16>, vector<32x16xbf16>, vector<32x32xf32> -> vector<32x32xf32>
    %cst_20 = arith.constant 2.500000e-01 : f32
    %41 = vector.broadcast %cst_20 : f32 to vector<32x32xf32>
    %42 = arith.mulf %40, %41 : vector<32x32xf32>
    %cst_21 = arith.constant dense<0xFF800000> : vector<32xf32>
    %43 = vector.multi_reduction <maximumf>, %42, %cst_21 [1] : vector<32x32xf32> to vector<32xf32>
    %44 = vector.shape_cast %43 : vector<32xf32> to vector<32x1xf32>
    %45 = vector.broadcast %44 : vector<32x1xf32> to vector<32x32xf32>
    %46 = arith.subf %42, %45 : vector<32x32xf32>
    %47 = math.exp %46 : vector<32x32xf32>
    %cst_22 = arith.constant dense<0.000000e+00> : vector<32xf32>
    %48 = vector.multi_reduction <add>, %47, %cst_22 [1] : vector<32x32xf32> to vector<32xf32>
    %49 = vector.shape_cast %48 : vector<32xf32> to vector<32x1xf32>
    %50 = tpu.reciprocal %49 {approx = true} : vector<32x1xf32> -> vector<32x1xf32>
    %51 = vector.broadcast %50 : vector<32x1xf32> to vector<32x32xf32>
    %52 = arith.mulf %47, %51 : vector<32x32xf32>
    %53 = arith.truncf %52 : vector<32x32xf32> to vector<32x32xbf16>
    %cst_23 = arith.constant dense<0.000000e+00> : vector<32x16xf32>
    %54 = tpu.matmul %53, %39, %cst_23 {dimension_numbers = #tpu.dot_dimension_numbers<[1], [0], [0], [1], [0, 0, 1, 1], [], []>} : vector<32x32xbf16>, vector<32x16xbf16>, vector<32x16xf32> -> vector<32x16xf32>
    %55 = arith.truncf %54 : vector<32x16xf32> to vector<32x16xbf16>
    %56 = vector.extract_strided_slice %15 {offsets = [16, 0], sizes = [16, 32], strides = [1, 1]} : vector<32x32xbf16> to vector<16x32xbf16>
    %cst_24 = arith.constant dense<0.000000e+00> : vector<32x32xf32>
    %57 = tpu.matmul %55, %56, %cst_24 {dimension_numbers = #tpu.dot_dimension_numbers<[1], [0], [0], [1], [0, 0, 1, 1], [], []>} : vector<32x16xbf16>, vector<16x32xbf16>, vector<32x32xf32> -> vector<32x32xf32>
    %58 = arith.addf %36, %57 : vector<32x32xf32>
    %59 = vector.extract_strided_slice %14 {offsets = [32, 0], sizes = [32, 16], strides = [1, 1]} : vector<64x96xbf16> to vector<32x16xbf16>
    %60 = vector.extract_strided_slice %14 {offsets = [32, 32], sizes = [32, 16], strides = [1, 1]} : vector<64x96xbf16> to vector<32x16xbf16>
    %61 = vector.extract_strided_slice %14 {offsets = [32, 64], sizes = [32, 16], strides = [1, 1]} : vector<64x96xbf16> to vector<32x16xbf16>
    %cst_25 = arith.constant dense<0.000000e+00> : vector<32x32xf32>
    %62 = tpu.matmul %59, %60, %cst_25 {dimension_numbers = #tpu.dot_dimension_numbers<[1], [1], [0], [0], [0, 0, 1, 0], [], []>} : vector<32x16xbf16>, vector<32x16xbf16>, vector<32x32xf32> -> vector<32x32xf32>
    %cst_26 = arith.constant 2.500000e-01 : f32
    %63 = vector.broadcast %cst_26 : f32 to vector<32x32xf32>
    %64 = arith.mulf %62, %63 : vector<32x32xf32>
    %cst_27 = arith.constant dense<0xFF800000> : vector<32xf32>
    %65 = vector.multi_reduction <maximumf>, %64, %cst_27 [1] : vector<32x32xf32> to vector<32xf32>
    %66 = vector.shape_cast %65 : vector<32xf32> to vector<32x1xf32>
    %67 = vector.broadcast %66 : vector<32x1xf32> to vector<32x32xf32>
    %68 = arith.subf %64, %67 : vector<32x32xf32>
    %69 = math.exp %68 : vector<32x32xf32>
    %cst_28 = arith.constant dense<0.000000e+00> : vector<32xf32>
    %70 = vector.multi_reduction <add>, %69, %cst_28 [1] : vector<32x32xf32> to vector<32xf32>
    %71 = vector.shape_cast %70 : vector<32xf32> to vector<32x1xf32>
    %72 = tpu.reciprocal %71 {approx = true} : vector<32x1xf32> -> vector<32x1xf32>
    %73 = vector.broadcast %72 : vector<32x1xf32> to vector<32x32xf32>
    %74 = arith.mulf %69, %73 : vector<32x32xf32>
    %75 = arith.truncf %74 : vector<32x32xf32> to vector<32x32xbf16>
    %cst_29 = arith.constant dense<0.000000e+00> : vector<32x16xf32>
    %76 = tpu.matmul %75, %61, %cst_29 {dimension_numbers = #tpu.dot_dimension_numbers<[1], [0], [0], [1], [0, 0, 1, 1], [], []>} : vector<32x32xbf16>, vector<32x16xbf16>, vector<32x16xf32> -> vector<32x16xf32>
    %77 = arith.truncf %76 : vector<32x16xf32> to vector<32x16xbf16>
    %78 = vector.extract_strided_slice %15 {offsets = [0, 0], sizes = [16, 32], strides = [1, 1]} : vector<32x32xbf16> to vector<16x32xbf16>
    %cst_30 = arith.constant dense<0.000000e+00> : vector<32x32xf32>
    %79 = tpu.matmul %77, %78, %cst_30 {dimension_numbers = #tpu.dot_dimension_numbers<[1], [0], [0], [1], [0, 0, 1, 1], [], []>} : vector<32x16xbf16>, vector<16x32xbf16>, vector<32x32xf32> -> vector<32x32xf32>
    %80 = vector.extract_strided_slice %14 {offsets = [32, 16], sizes = [32, 16], strides = [1, 1]} : vector<64x96xbf16> to vector<32x16xbf16>
    %81 = vector.extract_strided_slice %14 {offsets = [32, 48], sizes = [32, 16], strides = [1, 1]} : vector<64x96xbf16> to vector<32x16xbf16>
    %82 = vector.extract_strided_slice %14 {offsets = [32, 80], sizes = [32, 16], strides = [1, 1]} : vector<64x96xbf16> to vector<32x16xbf16>
    %cst_31 = arith.constant dense<0.000000e+00> : vector<32x32xf32>
    %83 = tpu.matmul %80, %81, %cst_31 {dimension_numbers = #tpu.dot_dimension_numbers<[1], [1], [0], [0], [0, 0, 1, 0], [], []>} : vector<32x16xbf16>, vector<32x16xbf16>, vector<32x32xf32> -> vector<32x32xf32>
    %cst_32 = arith.constant 2.500000e-01 : f32
    %84 = vector.broadcast %cst_32 : f32 to vector<32x32xf32>
    %85 = arith.mulf %83, %84 : vector<32x32xf32>
    %cst_33 = arith.constant dense<0xFF800000> : vector<32xf32>
    %86 = vector.multi_reduction <maximumf>, %85, %cst_33 [1] : vector<32x32xf32> to vector<32xf32>
    %87 = vector.shape_cast %86 : vector<32xf32> to vector<32x1xf32>
    %88 = vector.broadcast %87 : vector<32x1xf32> to vector<32x32xf32>
    %89 = arith.subf %85, %88 : vector<32x32xf32>
    %90 = math.exp %89 : vector<32x32xf32>
    %cst_34 = arith.constant dense<0.000000e+00> : vector<32xf32>
    %91 = vector.multi_reduction <add>, %90, %cst_34 [1] : vector<32x32xf32> to vector<32xf32>
    %92 = vector.shape_cast %91 : vector<32xf32> to vector<32x1xf32>
    %93 = tpu.reciprocal %92 {approx = true} : vector<32x1xf32> -> vector<32x1xf32>
    %94 = vector.broadcast %93 : vector<32x1xf32> to vector<32x32xf32>
    %95 = arith.mulf %90, %94 : vector<32x32xf32>
    %96 = arith.truncf %95 : vector<32x32xf32> to vector<32x32xbf16>
    %cst_35 = arith.constant dense<0.000000e+00> : vector<32x16xf32>
    %97 = tpu.matmul %96, %82, %cst_35 {dimension_numbers = #tpu.dot_dimension_numbers<[1], [0], [0], [1], [0, 0, 1, 1], [], []>} : vector<32x32xbf16>, vector<32x16xbf16>, vector<32x16xf32> -> vector<32x16xf32>
    %98 = arith.truncf %97 : vector<32x16xf32> to vector<32x16xbf16>
    %99 = vector.extract_strided_slice %15 {offsets = [16, 0], sizes = [16, 32], strides = [1, 1]} : vector<32x32xbf16> to vector<16x32xbf16>
    %cst_36 = arith.constant dense<0.000000e+00> : vector<32x32xf32>
    %100 = tpu.matmul %98, %99, %cst_36 {dimension_numbers = #tpu.dot_dimension_numbers<[1], [0], [0], [1], [0, 0, 1, 1], [], []>} : vector<32x16xbf16>, vector<16x32xbf16>, vector<32x32xf32> -> vector<32x32xf32>
    %101 = arith.addf %79, %100 : vector<32x32xf32>
    %102 = tpu.concatenate %58, %101 in 0 : vector<32x32xf32>, vector<32x32xf32> -> vector<64x32xf32>
    %c0_37 = arith.constant 0 : index
    %c0_38 = arith.constant 0 : index
    %103 = vector.load %arg7[%c0_37, %c0_38] : memref<1x32xf32, #tpu.memory_space<vmem>>, vector<1x32xf32>
    %104 = vector.broadcast %103 : vector<1x32xf32> to vector<64x32xf32>
    %105 = arith.addf %102, %104 : vector<64x32xf32>
    %106 = arith.addf %7, %105 : vector<64x32xf32>
    %c0_39 = arith.constant 0 : index
    %c0_40 = arith.constant 0 : index
    %107 = vector.load %arg8[%c0_39, %c0_40] : memref<1x32xf32, #tpu.memory_space<vmem>>, vector<1x32xf32>
    %c0_41 = arith.constant 0 : index
    %c0_42 = arith.constant 0 : index
    %108 = vector.load %arg9[%c0_41, %c0_42] : memref<1x32xf32, #tpu.memory_space<vmem>>, vector<1x32xf32>
    %cst_43 = arith.constant dense<0.000000e+00> : vector<64xf32>
    %109 = vector.multi_reduction <add>, %106, %cst_43 [1] : vector<64x32xf32> to vector<64xf32>
    %110 = vector.shape_cast %109 : vector<64xf32> to vector<64x1xf32>
    %cst_44 = arith.constant 3.200000e+01 : f32
    %111 = vector.broadcast %cst_44 : f32 to vector<64x1xf32>
    %112 = arith.divf %110, %111 : vector<64x1xf32>
    %113 = vector.broadcast %112 : vector<64x1xf32> to vector<64x32xf32>
    %114 = arith.subf %106, %113 : vector<64x32xf32>
    %115 = arith.mulf %114, %114 : vector<64x32xf32>
    %cst_45 = arith.constant dense<0.000000e+00> : vector<64xf32>
    %116 = vector.multi_reduction <add>, %115, %cst_45 [1] : vector<64x32xf32> to vector<64xf32>
    %117 = vector.shape_cast %116 : vector<64xf32> to vector<64x1xf32>
    %cst_46 = arith.constant 3.200000e+01 : f32
    %118 = vector.broadcast %cst_46 : f32 to vector<64x1xf32>
    %119 = arith.divf %117, %118 : vector<64x1xf32>
    %120 = vector.broadcast %112 : vector<64x1xf32> to vector<64x32xf32>
    %121 = arith.subf %106, %120 : vector<64x32xf32>
    %cst_47 = arith.constant 9.99999974E-6 : f32
    %122 = vector.broadcast %cst_47 : f32 to vector<64x1xf32>
    %123 = arith.addf %119, %122 : vector<64x1xf32>
    %124 = math.rsqrt %123 : vector<64x1xf32>
    %125 = vector.broadcast %124 : vector<64x1xf32> to vector<64x32xf32>
    %126 = arith.mulf %121, %125 : vector<64x32xf32>
    %127 = vector.broadcast %107 : vector<1x32xf32> to vector<64x32xf32>
    %128 = arith.mulf %126, %127 : vector<64x32xf32>
    %129 = vector.broadcast %108 : vector<1x32xf32> to vector<64x32xf32>
    %130 = arith.addf %128, %129 : vector<64x32xf32>
    %131 = arith.truncf %130 : vector<64x32xf32> to vector<64x32xbf16>
    %c0_48 = arith.constant 0 : index
    %c0_49 = arith.constant 0 : index
    %132 = vector.load %arg10[%c0_48, %c0_49] : memref<32x128xbf16, #tpu.memory_space<vmem>>, vector<32x128xbf16>
    %cst_50 = arith.constant dense<0.000000e+00> : vector<64x128xf32>
    %133 = tpu.matmul %131, %132, %cst_50 {dimension_numbers = #tpu.dot_dimension_numbers<[1], [0], [0], [1], [0, 0, 1, 1], [], []>} : vector<64x32xbf16>, vector<32x128xbf16>, vector<64x128xf32> -> vector<64x128xf32>
    %c0_51 = arith.constant 0 : index
    %c0_52 = arith.constant 0 : index
    %134 = vector.load %arg11[%c0_51, %c0_52] : memref<1x128xf32, #tpu.memory_space<vmem>>, vector<1x128xf32>
    %135 = vector.broadcast %134 : vector<1x128xf32> to vector<64x128xf32>
    %136 = arith.addf %133, %135 : vector<64x128xf32>
    %cst_53 = arith.constant 0.000000e+00 : f32
    %137 = vector.broadcast %cst_53 : f32 to vector<64x128xf32>
    %138 = arith.maximumf %136, %137 : vector<64x128xf32>
    %139 = arith.truncf %138 : vector<64x128xf32> to vector<64x128xbf16>
    %c0_54 = arith.constant 0 : index
    %c0_55 = arith.constant 0 : index
    %140 = vector.load %arg12[%c0_54, %c0_55] : memref<128x32xbf16, #tpu.memory_space<vmem>>, vector<128x32xbf16>
    %cst_56 = arith.constant dense<0.000000e+00> : vector<64x32xf32>
    %141 = tpu.matmul %139, %140, %cst_56 {dimension_numbers = #tpu.dot_dimension_numbers<[1], [0], [0], [1], [0, 0, 1, 1], [], []>} : vector<64x128xbf16>, vector<128x32xbf16>, vector<64x32xf32> -> vector<64x32xf32>
    %c0_57 = arith.constant 0 : index
    %c0_58 = arith.constant 0 : index
    %142 = vector.load %arg13[%c0_57, %c0_58] : memref<1x32xf32, #tpu.memory_space<vmem>>, vector<1x32xf32>
    %143 = vector.broadcast %142 : vector<1x32xf32> to vector<64x32xf32>
    %144 = arith.addf %141, %143 : vector<64x32xf32>
    %145 = arith.addf %130, %144 : vector<64x32xf32>
    %c0_59 = arith.constant 0 : index
    %c0_60 = arith.constant 0 : index
    %146 = vector.load %arg14[%c0_59, %c0_60] : memref<1x32xf32, #tpu.memory_space<vmem>>, vector<1x32xf32>
    %c0_61 = arith.constant 0 : index
    %c0_62 = arith.constant 0 : index
    %147 = vector.load %arg15[%c0_61, %c0_62] : memref<1x32xf32, #tpu.memory_space<vmem>>, vector<1x32xf32>
    %cst_63 = arith.constant dense<0.000000e+00> : vector<64xf32>
    %148 = vector.multi_reduction <add>, %145, %cst_63 [1] : vector<64x32xf32> to vector<64xf32>
    %149 = vector.shape_cast %148 : vector<64xf32> to vector<64x1xf32>
    %cst_64 = arith.constant 3.200000e+01 : f32
    %150 = vector.broadcast %cst_64 : f32 to vector<64x1xf32>
    %151 = arith.divf %149, %150 : vector<64x1xf32>
    %152 = vector.broadcast %151 : vector<64x1xf32> to vector<64x32xf32>
    %153 = arith.subf %145, %152 : vector<64x32xf32>
    %154 = arith.mulf %153, %153 : vector<64x32xf32>
    %cst_65 = arith.constant dense<0.000000e+00> : vector<64xf32>
    %155 = vector.multi_reduction <add>, %154, %cst_65 [1] : vector<64x32xf32> to vector<64xf32>
    %156 = vector.shape_cast %155 : vector<64xf32> to vector<64x1xf32>
    %cst_66 = arith.constant 3.200000e+01 : f32
    %157 = vector.broadcast %cst_66 : f32 to vector<64x1xf32>
    %158 = arith.divf %156, %157 : vector<64x1xf32>
    %159 = vector.broadcast %151 : vector<64x1xf32> to vector<64x32xf32>
    %160 = arith.subf %145, %159 : vector<64x32xf32>
    %cst_67 = arith.constant 9.99999974E-6 : f32
    %161 = vector.broadcast %cst_67 : f32 to vector<64x1xf32>
    %162 = arith.addf %158, %161 : vector<64x1xf32>
    %163 = math.rsqrt %162 : vector<64x1xf32>
    %164 = vector.broadcast %163 : vector<64x1xf32> to vector<64x32xf32>
    %165 = arith.mulf %160, %164 : vector<64x32xf32>
    %166 = vector.broadcast %146 : vector<1x32xf32> to vector<64x32xf32>
    %167 = arith.mulf %165, %166 : vector<64x32xf32>
    %168 = vector.broadcast %147 : vector<1x32xf32> to vector<64x32xf32>
    %169 = arith.addf %167, %168 : vector<64x32xf32>
    %c0_68 = arith.constant 0 : index
    %c0_69 = arith.constant 0 : index
    %170 = vector.load %arg16[%c0_68, %c0_69] : memref<32x96xbf16, #tpu.memory_space<vmem>>, vector<32x96xbf16>
    %c0_70 = arith.constant 0 : index
    %c0_71 = arith.constant 0 : index
    %171 = vector.load %arg17[%c0_70, %c0_71] : memref<32x64xbf16, #tpu.memory_space<vmem>>, vector<32x64xbf16>
    %c0_72 = arith.constant 0 : index
    %c0_73 = arith.constant 0 : index
    %172 = vector.load %arg18[%c0_72, %c0_73] : memref<32x32xbf16, #tpu.memory_space<vmem>>, vector<32x32xbf16>
    %c0_74 = arith.constant 0 : index
    %c0_75 = arith.constant 0 : index
    %173 = vector.load %arg19[%c0_74, %c0_75] : memref<1x96xf32, #tpu.memory_space<vmem>>, vector<1x96xf32>
    %174 = vector.extract_strided_slice %173 {offsets = [0, 0], sizes = [1, 64], strides = [1, 1]} : vector<1x96xf32> to vector<1x64xf32>
    %175 = vector.shape_cast %174 : vector<1x64xf32> to vector<1x64xf32>
    %176 = vector.broadcast %175 : vector<1x64xf32> to vector<8x64xf32>
    %177 = vector.extract_strided_slice %173 {offsets = [0, 64], sizes = [1, 32], strides = [1, 1]} : vector<1x96xf32> to vector<1x32xf32>
    %178 = vector.shape_cast %177 : vector<1x32xf32> to vector<1x32xf32>
    %179 = vector.broadcast %178 : vector<1x32xf32> to vector<8x32xf32>
    %c0_76 = arith.constant 0 : index
    %c0_77 = arith.constant 0 : index
    %180 = vector.load %arg20[%c0_76, %c0_77] : memref<32x32xbf16, #tpu.memory_space<vmem>>, vector<32x32xbf16>
    %c0_78 = arith.constant 0 : index
    %c0_79 = arith.constant 0 : index
    %181 = vector.load %arg22[%c0_78, %c0_79] : memref<32x32xbf16, #tpu.memory_space<vmem>>, vector<32x32xbf16>
    %c0_80 = arith.constant 0 : index
    %c0_81 = arith.constant 0 : index
    %182 = vector.load %arg21[%c0_80, %c0_81] : memref<1x32xf32, #tpu.memory_space<vmem>>, vector<1x32xf32>
    %183 = vector.shape_cast %182 : vector<1x32xf32> to vector<1x32xf32>
    %184 = vector.broadcast %183 : vector<1x32xf32> to vector<8x32xf32>
    %c0_82 = arith.constant 0 : index
    %c0_83 = arith.constant 0 : index
    %185 = vector.load %arg23[%c0_82, %c0_83] : memref<1x32xf32, #tpu.memory_space<vmem>>, vector<1x32xf32>
    %186 = vector.shape_cast %185 : vector<1x32xf32> to vector<1x32xf32>
    %187 = vector.broadcast %186 : vector<1x32xf32> to vector<8x32xf32>
    %c0_84 = arith.constant 0 : index
    %c0_85 = arith.constant 0 : index
    %188 = vector.load %arg1[%c0_84, %c0_85] : memref<40x64xf32, #tpu.memory_space<vmem>>, vector<40x64xf32>
    %cst_86 = arith.constant dense<0.000000e+00> : vector<40x32xf32>
    %189 = tpu.matmul %188, %169, %cst_86 {dimension_numbers = #tpu.dot_dimension_numbers<[1], [0], [0], [1], [0, 0, 1, 1], [], []>} : vector<40x64xf32>, vector<64x32xf32>, vector<40x32xf32> -> vector<40x32xf32>
    %cst_87 = arith.constant 0.000000e+00 : f32
    %190 = vector.broadcast %cst_87 : f32 to vector<40x32xf32>
    %191 = arith.maximumf %189, %190 : vector<40x32xf32>
    %192 = arith.truncf %191 : vector<40x32xf32> to vector<40x32xbf16>
    %cst_88 = arith.constant dense<0.000000e+00> : vector<40x96xf32>
    %193 = tpu.matmul %192, %170, %cst_88 {dimension_numbers = #tpu.dot_dimension_numbers<[1], [0], [0], [1], [0, 0, 1, 1], [], []>} : vector<40x32xbf16>, vector<32x96xbf16>, vector<40x96xf32> -> vector<40x96xf32>
    %cst_89 = arith.constant 0.000000e+00 : f32
    %194 = vector.broadcast %cst_89 : f32 to vector<8x32xf32>
    %195 = vector.extract_strided_slice %193 {offsets = [0, 0], sizes = [8, 96], strides = [1, 1]} : vector<40x96xf32> to vector<8x96xf32>
    %196 = arith.truncf %194 : vector<8x32xf32> to vector<8x32xbf16>
    %cst_90 = arith.constant dense<0.000000e+00> : vector<8x64xf32>
    %197 = tpu.matmul %196, %171, %cst_90 {dimension_numbers = #tpu.dot_dimension_numbers<[1], [0], [0], [1], [0, 0, 1, 1], [], []>} : vector<8x32xbf16>, vector<32x64xbf16>, vector<8x64xf32> -> vector<8x64xf32>
    %198 = vector.extract_strided_slice %195 {offsets = [0, 0], sizes = [8, 64], strides = [1, 1]} : vector<8x96xf32> to vector<8x64xf32>
    %199 = arith.addf %198, %197 : vector<8x64xf32>
    %200 = arith.addf %199, %176 : vector<8x64xf32>
    %201 = arith.negf %200 : vector<8x64xf32>
    %202 = math.exp %201 : vector<8x64xf32>
    %cst_91 = arith.constant 1.000000e+00 : f32
    %203 = vector.broadcast %cst_91 : f32 to vector<8x64xf32>
    %204 = arith.addf %203, %202 : vector<8x64xf32>
    %205 = arith.divf %203, %204 : vector<8x64xf32>
    %206 = vector.extract_strided_slice %205 {offsets = [0, 0], sizes = [8, 32], strides = [1, 1]} : vector<8x64xf32> to vector<8x32xf32>
    %207 = vector.extract_strided_slice %205 {offsets = [0, 32], sizes = [8, 32], strides = [1, 1]} : vector<8x64xf32> to vector<8x32xf32>
    %208 = vector.extract_strided_slice %195 {offsets = [0, 64], sizes = [8, 32], strides = [1, 1]} : vector<8x96xf32> to vector<8x32xf32>
    %209 = arith.mulf %194, %206 : vector<8x32xf32>
    %210 = arith.truncf %209 : vector<8x32xf32> to vector<8x32xbf16>
    %cst_92 = arith.constant dense<0.000000e+00> : vector<8x32xf32>
    %211 = tpu.matmul %210, %172, %cst_92 {dimension_numbers = #tpu.dot_dimension_numbers<[1], [0], [0], [1], [0, 0, 1, 1], [], []>} : vector<8x32xbf16>, vector<32x32xbf16>, vector<8x32xf32> -> vector<8x32xf32>
    %212 = arith.addf %208, %211 : vector<8x32xf32>
    %213 = arith.addf %212, %179 : vector<8x32xf32>
    %214 = math.tanh %213 : vector<8x32xf32>
    %cst_93 = arith.constant 1.000000e+00 : f32
    %215 = vector.broadcast %cst_93 : f32 to vector<8x32xf32>
    %216 = arith.subf %215, %207 : vector<8x32xf32>
    %217 = arith.mulf %194, %216 : vector<8x32xf32>
    %218 = arith.mulf %214, %207 : vector<8x32xf32>
    %219 = arith.addf %217, %218 : vector<8x32xf32>
    %220 = vector.extract_strided_slice %193 {offsets = [8, 0], sizes = [8, 96], strides = [1, 1]} : vector<40x96xf32> to vector<8x96xf32>
    %221 = arith.truncf %219 : vector<8x32xf32> to vector<8x32xbf16>
    %cst_94 = arith.constant dense<0.000000e+00> : vector<8x64xf32>
    %222 = tpu.matmul %221, %171, %cst_94 {dimension_numbers = #tpu.dot_dimension_numbers<[1], [0], [0], [1], [0, 0, 1, 1], [], []>} : vector<8x32xbf16>, vector<32x64xbf16>, vector<8x64xf32> -> vector<8x64xf32>
    %223 = vector.extract_strided_slice %220 {offsets = [0, 0], sizes = [8, 64], strides = [1, 1]} : vector<8x96xf32> to vector<8x64xf32>
    %224 = arith.addf %223, %222 : vector<8x64xf32>
    %225 = arith.addf %224, %176 : vector<8x64xf32>
    %226 = arith.negf %225 : vector<8x64xf32>
    %227 = math.exp %226 : vector<8x64xf32>
    %cst_95 = arith.constant 1.000000e+00 : f32
    %228 = vector.broadcast %cst_95 : f32 to vector<8x64xf32>
    %229 = arith.addf %228, %227 : vector<8x64xf32>
    %230 = arith.divf %228, %229 : vector<8x64xf32>
    %231 = vector.extract_strided_slice %230 {offsets = [0, 0], sizes = [8, 32], strides = [1, 1]} : vector<8x64xf32> to vector<8x32xf32>
    %232 = vector.extract_strided_slice %230 {offsets = [0, 32], sizes = [8, 32], strides = [1, 1]} : vector<8x64xf32> to vector<8x32xf32>
    %233 = vector.extract_strided_slice %220 {offsets = [0, 64], sizes = [8, 32], strides = [1, 1]} : vector<8x96xf32> to vector<8x32xf32>
    %234 = arith.mulf %219, %231 : vector<8x32xf32>
    %235 = arith.truncf %234 : vector<8x32xf32> to vector<8x32xbf16>
    %cst_96 = arith.constant dense<0.000000e+00> : vector<8x32xf32>
    %236 = tpu.matmul %235, %172, %cst_96 {dimension_numbers = #tpu.dot_dimension_numbers<[1], [0], [0], [1], [0, 0, 1, 1], [], []>} : vector<8x32xbf16>, vector<32x32xbf16>, vector<8x32xf32> -> vector<8x32xf32>
    %237 = arith.addf %233, %236 : vector<8x32xf32>
    %238 = arith.addf %237, %179 : vector<8x32xf32>
    %239 = math.tanh %238 : vector<8x32xf32>
    %cst_97 = arith.constant 1.000000e+00 : f32
    %240 = vector.broadcast %cst_97 : f32 to vector<8x32xf32>
    %241 = arith.subf %240, %232 : vector<8x32xf32>
    %242 = arith.mulf %219, %241 : vector<8x32xf32>
    %243 = arith.mulf %239, %232 : vector<8x32xf32>
    %244 = arith.addf %242, %243 : vector<8x32xf32>
    %245 = vector.extract_strided_slice %193 {offsets = [16, 0], sizes = [8, 96], strides = [1, 1]} : vector<40x96xf32> to vector<8x96xf32>
    %246 = arith.truncf %244 : vector<8x32xf32> to vector<8x32xbf16>
    %cst_98 = arith.constant dense<0.000000e+00> : vector<8x64xf32>
    %247 = tpu.matmul %246, %171, %cst_98 {dimension_numbers = #tpu.dot_dimension_numbers<[1], [0], [0], [1], [0, 0, 1, 1], [], []>} : vector<8x32xbf16>, vector<32x64xbf16>, vector<8x64xf32> -> vector<8x64xf32>
    %248 = vector.extract_strided_slice %245 {offsets = [0, 0], sizes = [8, 64], strides = [1, 1]} : vector<8x96xf32> to vector<8x64xf32>
    %249 = arith.addf %248, %247 : vector<8x64xf32>
    %250 = arith.addf %249, %176 : vector<8x64xf32>
    %251 = arith.negf %250 : vector<8x64xf32>
    %252 = math.exp %251 : vector<8x64xf32>
    %cst_99 = arith.constant 1.000000e+00 : f32
    %253 = vector.broadcast %cst_99 : f32 to vector<8x64xf32>
    %254 = arith.addf %253, %252 : vector<8x64xf32>
    %255 = arith.divf %253, %254 : vector<8x64xf32>
    %256 = vector.extract_strided_slice %255 {offsets = [0, 0], sizes = [8, 32], strides = [1, 1]} : vector<8x64xf32> to vector<8x32xf32>
    %257 = vector.extract_strided_slice %255 {offsets = [0, 32], sizes = [8, 32], strides = [1, 1]} : vector<8x64xf32> to vector<8x32xf32>
    %258 = vector.extract_strided_slice %245 {offsets = [0, 64], sizes = [8, 32], strides = [1, 1]} : vector<8x96xf32> to vector<8x32xf32>
    %259 = arith.mulf %244, %256 : vector<8x32xf32>
    %260 = arith.truncf %259 : vector<8x32xf32> to vector<8x32xbf16>
    %cst_100 = arith.constant dense<0.000000e+00> : vector<8x32xf32>
    %261 = tpu.matmul %260, %172, %cst_100 {dimension_numbers = #tpu.dot_dimension_numbers<[1], [0], [0], [1], [0, 0, 1, 1], [], []>} : vector<8x32xbf16>, vector<32x32xbf16>, vector<8x32xf32> -> vector<8x32xf32>
    %262 = arith.addf %258, %261 : vector<8x32xf32>
    %263 = arith.addf %262, %179 : vector<8x32xf32>
    %264 = math.tanh %263 : vector<8x32xf32>
    %cst_101 = arith.constant 1.000000e+00 : f32
    %265 = vector.broadcast %cst_101 : f32 to vector<8x32xf32>
    %266 = arith.subf %265, %257 : vector<8x32xf32>
    %267 = arith.mulf %244, %266 : vector<8x32xf32>
    %268 = arith.mulf %264, %257 : vector<8x32xf32>
    %269 = arith.addf %267, %268 : vector<8x32xf32>
    %270 = vector.extract_strided_slice %193 {offsets = [24, 0], sizes = [8, 96], strides = [1, 1]} : vector<40x96xf32> to vector<8x96xf32>
    %271 = arith.truncf %269 : vector<8x32xf32> to vector<8x32xbf16>
    %cst_102 = arith.constant dense<0.000000e+00> : vector<8x64xf32>
    %272 = tpu.matmul %271, %171, %cst_102 {dimension_numbers = #tpu.dot_dimension_numbers<[1], [0], [0], [1], [0, 0, 1, 1], [], []>} : vector<8x32xbf16>, vector<32x64xbf16>, vector<8x64xf32> -> vector<8x64xf32>
    %273 = vector.extract_strided_slice %270 {offsets = [0, 0], sizes = [8, 64], strides = [1, 1]} : vector<8x96xf32> to vector<8x64xf32>
    %274 = arith.addf %273, %272 : vector<8x64xf32>
    %275 = arith.addf %274, %176 : vector<8x64xf32>
    %276 = arith.negf %275 : vector<8x64xf32>
    %277 = math.exp %276 : vector<8x64xf32>
    %cst_103 = arith.constant 1.000000e+00 : f32
    %278 = vector.broadcast %cst_103 : f32 to vector<8x64xf32>
    %279 = arith.addf %278, %277 : vector<8x64xf32>
    %280 = arith.divf %278, %279 : vector<8x64xf32>
    %281 = vector.extract_strided_slice %280 {offsets = [0, 0], sizes = [8, 32], strides = [1, 1]} : vector<8x64xf32> to vector<8x32xf32>
    %282 = vector.extract_strided_slice %280 {offsets = [0, 32], sizes = [8, 32], strides = [1, 1]} : vector<8x64xf32> to vector<8x32xf32>
    %283 = vector.extract_strided_slice %270 {offsets = [0, 64], sizes = [8, 32], strides = [1, 1]} : vector<8x96xf32> to vector<8x32xf32>
    %284 = arith.mulf %269, %281 : vector<8x32xf32>
    %285 = arith.truncf %284 : vector<8x32xf32> to vector<8x32xbf16>
    %cst_104 = arith.constant dense<0.000000e+00> : vector<8x32xf32>
    %286 = tpu.matmul %285, %172, %cst_104 {dimension_numbers = #tpu.dot_dimension_numbers<[1], [0], [0], [1], [0, 0, 1, 1], [], []>} : vector<8x32xbf16>, vector<32x32xbf16>, vector<8x32xf32> -> vector<8x32xf32>
    %287 = arith.addf %283, %286 : vector<8x32xf32>
    %288 = arith.addf %287, %179 : vector<8x32xf32>
    %289 = math.tanh %288 : vector<8x32xf32>
    %cst_105 = arith.constant 1.000000e+00 : f32
    %290 = vector.broadcast %cst_105 : f32 to vector<8x32xf32>
    %291 = arith.subf %290, %282 : vector<8x32xf32>
    %292 = arith.mulf %269, %291 : vector<8x32xf32>
    %293 = arith.mulf %289, %282 : vector<8x32xf32>
    %294 = arith.addf %292, %293 : vector<8x32xf32>
    %295 = vector.extract_strided_slice %193 {offsets = [32, 0], sizes = [8, 96], strides = [1, 1]} : vector<40x96xf32> to vector<8x96xf32>
    %296 = arith.truncf %294 : vector<8x32xf32> to vector<8x32xbf16>
    %cst_106 = arith.constant dense<0.000000e+00> : vector<8x64xf32>
    %297 = tpu.matmul %296, %171, %cst_106 {dimension_numbers = #tpu.dot_dimension_numbers<[1], [0], [0], [1], [0, 0, 1, 1], [], []>} : vector<8x32xbf16>, vector<32x64xbf16>, vector<8x64xf32> -> vector<8x64xf32>
    %298 = vector.extract_strided_slice %295 {offsets = [0, 0], sizes = [8, 64], strides = [1, 1]} : vector<8x96xf32> to vector<8x64xf32>
    %299 = arith.addf %298, %297 : vector<8x64xf32>
    %300 = arith.addf %299, %176 : vector<8x64xf32>
    %301 = arith.negf %300 : vector<8x64xf32>
    %302 = math.exp %301 : vector<8x64xf32>
    %cst_107 = arith.constant 1.000000e+00 : f32
    %303 = vector.broadcast %cst_107 : f32 to vector<8x64xf32>
    %304 = arith.addf %303, %302 : vector<8x64xf32>
    %305 = arith.divf %303, %304 : vector<8x64xf32>
    %306 = vector.extract_strided_slice %305 {offsets = [0, 0], sizes = [8, 32], strides = [1, 1]} : vector<8x64xf32> to vector<8x32xf32>
    %307 = vector.extract_strided_slice %305 {offsets = [0, 32], sizes = [8, 32], strides = [1, 1]} : vector<8x64xf32> to vector<8x32xf32>
    %308 = vector.extract_strided_slice %295 {offsets = [0, 64], sizes = [8, 32], strides = [1, 1]} : vector<8x96xf32> to vector<8x32xf32>
    %309 = arith.mulf %294, %306 : vector<8x32xf32>
    %310 = arith.truncf %309 : vector<8x32xf32> to vector<8x32xbf16>
    %cst_108 = arith.constant dense<0.000000e+00> : vector<8x32xf32>
    %311 = tpu.matmul %310, %172, %cst_108 {dimension_numbers = #tpu.dot_dimension_numbers<[1], [0], [0], [1], [0, 0, 1, 1], [], []>} : vector<8x32xbf16>, vector<32x32xbf16>, vector<8x32xf32> -> vector<8x32xf32>
    %312 = arith.addf %308, %311 : vector<8x32xf32>
    %313 = arith.addf %312, %179 : vector<8x32xf32>
    %314 = math.tanh %313 : vector<8x32xf32>
    %cst_109 = arith.constant 1.000000e+00 : f32
    %315 = vector.broadcast %cst_109 : f32 to vector<8x32xf32>
    %316 = arith.subf %315, %307 : vector<8x32xf32>
    %317 = arith.mulf %294, %316 : vector<8x32xf32>
    %318 = arith.mulf %314, %307 : vector<8x32xf32>
    %319 = arith.addf %317, %318 : vector<8x32xf32>
    %320 = arith.truncf %319 : vector<8x32xf32> to vector<8x32xbf16>
    %cst_110 = arith.constant dense<0.000000e+00> : vector<8x32xf32>
    %321 = tpu.matmul %320, %180, %cst_110 {dimension_numbers = #tpu.dot_dimension_numbers<[1], [0], [0], [1], [0, 0, 1, 1], [], []>} : vector<8x32xbf16>, vector<32x32xbf16>, vector<8x32xf32> -> vector<8x32xf32>
    %322 = arith.addf %321, %184 : vector<8x32xf32>
    %cst_111 = arith.constant 0.000000e+00 : f32
    %323 = vector.broadcast %cst_111 : f32 to vector<8x32xf32>
    %324 = arith.maximumf %322, %323 : vector<8x32xf32>
    %325 = arith.truncf %324 : vector<8x32xf32> to vector<8x32xbf16>
    %cst_112 = arith.constant dense<0.000000e+00> : vector<8x32xf32>
    %326 = tpu.matmul %325, %181, %cst_112 {dimension_numbers = #tpu.dot_dimension_numbers<[1], [0], [0], [1], [0, 0, 1, 1], [], []>} : vector<8x32xbf16>, vector<32x32xbf16>, vector<8x32xf32> -> vector<8x32xf32>
    %327 = arith.addf %326, %187 : vector<8x32xf32>
    %cst_113 = arith.constant 0.000000e+00 : f32
    %328 = vector.broadcast %cst_113 : f32 to vector<8x32xf32>
    %329 = arith.maximumf %327, %328 : vector<8x32xf32>
    %330 = arith.truncf %329 : vector<8x32xf32> to vector<8x32xbf16>
    %cst_114 = arith.constant dense<0.000000e+00> : vector<8x96xf32>
    %331 = tpu.matmul %330, %170, %cst_114 {dimension_numbers = #tpu.dot_dimension_numbers<[1], [0], [0], [1], [0, 0, 1, 1], [], []>} : vector<8x32xbf16>, vector<32x96xbf16>, vector<8x96xf32> -> vector<8x96xf32>
    %332 = arith.truncf %319 : vector<8x32xf32> to vector<8x32xbf16>
    %cst_115 = arith.constant dense<0.000000e+00> : vector<8x64xf32>
    %333 = tpu.matmul %332, %171, %cst_115 {dimension_numbers = #tpu.dot_dimension_numbers<[1], [0], [0], [1], [0, 0, 1, 1], [], []>} : vector<8x32xbf16>, vector<32x64xbf16>, vector<8x64xf32> -> vector<8x64xf32>
    %334 = vector.extract_strided_slice %331 {offsets = [0, 0], sizes = [8, 64], strides = [1, 1]} : vector<8x96xf32> to vector<8x64xf32>
    %335 = arith.addf %334, %333 : vector<8x64xf32>
    %336 = arith.addf %335, %176 : vector<8x64xf32>
    %337 = arith.negf %336 : vector<8x64xf32>
    %338 = math.exp %337 : vector<8x64xf32>
    %cst_116 = arith.constant 1.000000e+00 : f32
    %339 = vector.broadcast %cst_116 : f32 to vector<8x64xf32>
    %340 = arith.addf %339, %338 : vector<8x64xf32>
    %341 = arith.divf %339, %340 : vector<8x64xf32>
    %342 = vector.extract_strided_slice %341 {offsets = [0, 0], sizes = [8, 32], strides = [1, 1]} : vector<8x64xf32> to vector<8x32xf32>
    %343 = vector.extract_strided_slice %341 {offsets = [0, 32], sizes = [8, 32], strides = [1, 1]} : vector<8x64xf32> to vector<8x32xf32>
    %344 = vector.extract_strided_slice %331 {offsets = [0, 64], sizes = [8, 32], strides = [1, 1]} : vector<8x96xf32> to vector<8x32xf32>
    %345 = arith.mulf %319, %342 : vector<8x32xf32>
    %346 = arith.truncf %345 : vector<8x32xf32> to vector<8x32xbf16>
    %cst_117 = arith.constant dense<0.000000e+00> : vector<8x32xf32>
    %347 = tpu.matmul %346, %172, %cst_117 {dimension_numbers = #tpu.dot_dimension_numbers<[1], [0], [0], [1], [0, 0, 1, 1], [], []>} : vector<8x32xbf16>, vector<32x32xbf16>, vector<8x32xf32> -> vector<8x32xf32>
    %348 = arith.addf %344, %347 : vector<8x32xf32>
    %349 = arith.addf %348, %179 : vector<8x32xf32>
    %350 = math.tanh %349 : vector<8x32xf32>
    %cst_118 = arith.constant 1.000000e+00 : f32
    %351 = vector.broadcast %cst_118 : f32 to vector<8x32xf32>
    %352 = arith.subf %351, %343 : vector<8x32xf32>
    %353 = arith.mulf %319, %352 : vector<8x32xf32>
    %354 = arith.mulf %350, %343 : vector<8x32xf32>
    %355 = arith.addf %353, %354 : vector<8x32xf32>
    %356 = arith.truncf %355 : vector<8x32xf32> to vector<8x32xbf16>
    %cst_119 = arith.constant dense<0.000000e+00> : vector<8x32xf32>
    %357 = tpu.matmul %356, %180, %cst_119 {dimension_numbers = #tpu.dot_dimension_numbers<[1], [0], [0], [1], [0, 0, 1, 1], [], []>} : vector<8x32xbf16>, vector<32x32xbf16>, vector<8x32xf32> -> vector<8x32xf32>
    %358 = arith.addf %357, %184 : vector<8x32xf32>
    %cst_120 = arith.constant 0.000000e+00 : f32
    %359 = vector.broadcast %cst_120 : f32 to vector<8x32xf32>
    %360 = arith.maximumf %358, %359 : vector<8x32xf32>
    %361 = arith.truncf %360 : vector<8x32xf32> to vector<8x32xbf16>
    %cst_121 = arith.constant dense<0.000000e+00> : vector<8x32xf32>
    %362 = tpu.matmul %361, %181, %cst_121 {dimension_numbers = #tpu.dot_dimension_numbers<[1], [0], [0], [1], [0, 0, 1, 1], [], []>} : vector<8x32xbf16>, vector<32x32xbf16>, vector<8x32xf32> -> vector<8x32xf32>
    %363 = arith.addf %362, %187 : vector<8x32xf32>
    %cst_122 = arith.constant 0.000000e+00 : f32
    %364 = vector.broadcast %cst_122 : f32 to vector<8x32xf32>
    %365 = arith.maximumf %363, %364 : vector<8x32xf32>
    %366 = arith.truncf %365 : vector<8x32xf32> to vector<8x32xbf16>
    %cst_123 = arith.constant dense<0.000000e+00> : vector<8x96xf32>
    %367 = tpu.matmul %366, %170, %cst_123 {dimension_numbers = #tpu.dot_dimension_numbers<[1], [0], [0], [1], [0, 0, 1, 1], [], []>} : vector<8x32xbf16>, vector<32x96xbf16>, vector<8x96xf32> -> vector<8x96xf32>
    %368 = arith.truncf %355 : vector<8x32xf32> to vector<8x32xbf16>
    %cst_124 = arith.constant dense<0.000000e+00> : vector<8x64xf32>
    %369 = tpu.matmul %368, %171, %cst_124 {dimension_numbers = #tpu.dot_dimension_numbers<[1], [0], [0], [1], [0, 0, 1, 1], [], []>} : vector<8x32xbf16>, vector<32x64xbf16>, vector<8x64xf32> -> vector<8x64xf32>
    %370 = vector.extract_strided_slice %367 {offsets = [0, 0], sizes = [8, 64], strides = [1, 1]} : vector<8x96xf32> to vector<8x64xf32>
    %371 = arith.addf %370, %369 : vector<8x64xf32>
    %372 = arith.addf %371, %176 : vector<8x64xf32>
    %373 = arith.negf %372 : vector<8x64xf32>
    %374 = math.exp %373 : vector<8x64xf32>
    %cst_125 = arith.constant 1.000000e+00 : f32
    %375 = vector.broadcast %cst_125 : f32 to vector<8x64xf32>
    %376 = arith.addf %375, %374 : vector<8x64xf32>
    %377 = arith.divf %375, %376 : vector<8x64xf32>
    %378 = vector.extract_strided_slice %377 {offsets = [0, 0], sizes = [8, 32], strides = [1, 1]} : vector<8x64xf32> to vector<8x32xf32>
    %379 = vector.extract_strided_slice %377 {offsets = [0, 32], sizes = [8, 32], strides = [1, 1]} : vector<8x64xf32> to vector<8x32xf32>
    %380 = vector.extract_strided_slice %367 {offsets = [0, 64], sizes = [8, 32], strides = [1, 1]} : vector<8x96xf32> to vector<8x32xf32>
    %381 = arith.mulf %355, %378 : vector<8x32xf32>
    %382 = arith.truncf %381 : vector<8x32xf32> to vector<8x32xbf16>
    %cst_126 = arith.constant dense<0.000000e+00> : vector<8x32xf32>
    %383 = tpu.matmul %382, %172, %cst_126 {dimension_numbers = #tpu.dot_dimension_numbers<[1], [0], [0], [1], [0, 0, 1, 1], [], []>} : vector<8x32xbf16>, vector<32x32xbf16>, vector<8x32xf32> -> vector<8x32xf32>
    %384 = arith.addf %380, %383 : vector<8x32xf32>
    %385 = arith.addf %384, %179 : vector<8x32xf32>
    %386 = math.tanh %385 : vector<8x32xf32>
    %cst_127 = arith.constant 1.000000e+00 : f32
    %387 = vector.broadcast %cst_127 : f32 to vector<8x32xf32>
    %388 = arith.subf %387, %379 : vector<8x32xf32>
    %389 = arith.mulf %355, %388 : vector<8x32xf32>
    %390 = arith.mulf %386, %379 : vector<8x32xf32>
    %391 = arith.addf %389, %390 : vector<8x32xf32>
    %392 = arith.truncf %391 : vector<8x32xf32> to vector<8x32xbf16>
    %cst_128 = arith.constant dense<0.000000e+00> : vector<8x32xf32>
    %393 = tpu.matmul %392, %180, %cst_128 {dimension_numbers = #tpu.dot_dimension_numbers<[1], [0], [0], [1], [0, 0, 1, 1], [], []>} : vector<8x32xbf16>, vector<32x32xbf16>, vector<8x32xf32> -> vector<8x32xf32>
    %394 = arith.addf %393, %184 : vector<8x32xf32>
    %cst_129 = arith.constant 0.000000e+00 : f32
    %395 = vector.broadcast %cst_129 : f32 to vector<8x32xf32>
    %396 = arith.maximumf %394, %395 : vector<8x32xf32>
    %397 = arith.truncf %396 : vector<8x32xf32> to vector<8x32xbf16>
    %cst_130 = arith.constant dense<0.000000e+00> : vector<8x32xf32>
    %398 = tpu.matmul %397, %181, %cst_130 {dimension_numbers = #tpu.dot_dimension_numbers<[1], [0], [0], [1], [0, 0, 1, 1], [], []>} : vector<8x32xbf16>, vector<32x32xbf16>, vector<8x32xf32> -> vector<8x32xf32>
    %399 = arith.addf %398, %187 : vector<8x32xf32>
    %400 = tpu.concatenate %327, %363, %399 in 0 : vector<8x32xf32>, vector<8x32xf32>, vector<8x32xf32> -> vector<24x32xf32>
    %cst_131 = arith.constant 0.000000e+00 : f32
    %401 = vector.broadcast %cst_131 : f32 to vector<64x32xf32>
    %402 = tpu.concatenate %169, %401 in 0 : vector<64x32xf32>, vector<64x32xf32> -> vector<128x32xf32>
    %cst_132 = arith.constant dense<0.000000e+00> : vector<24x128xf32>
    %403 = tpu.matmul %400, %402, %cst_132 {dimension_numbers = #tpu.dot_dimension_numbers<[1], [1], [0], [0], [0, 0, 1, 0], [], []>} : vector<24x32xf32>, vector<128x32xf32>, vector<24x128xf32> -> vector<24x128xf32>
    %c0_133 = arith.constant 0 : index
    %c0_134 = arith.constant 0 : index
    %404 = vector.load %arg24[%c0_133, %c0_134] : memref<24x128xf32, #tpu.memory_space<vmem>>, vector<24x128xf32>
    tpu.vector_store %arg24[%c0_133, %c0_134], %403 {strides = array<i32>} : memref<24x128xf32, #tpu.memory_space<vmem>>, vector<24x128xf32>,
    return
  }
}

</mosaic_0001>

<llo_original>
// kernel: cpc_trans_forward.1
$region0: #{cpc_trans_forward.1}
  #allocation0 [shape = 'u32[]', space=smem, size = 0x4, offset = 0x4, fixed_abs, tag = 'smem constant byte address 0x4 - core index']
  #allocation1 [shape = 'u32[144,128]{1,0:T(1,128)}', space=vmem, size = 0x12000, scoped, tag = 'internal scratch']
  %s0 = inlined_call_operand.vmem [shape: f32[64,3], index: 0, kind: input, shape index: {}]
  %s1 = inlined_call_operand.vmem [shape: f32[40,64], index: 1, kind: input, shape index: {}]
  %s2 = inlined_call_operand.vmem [shape: f32[3,32], index: 2, kind: input, shape index: {}]
  %s3 = inlined_call_operand.vmem [shape: f32[1,32], index: 3, kind: input, shape index: {}]
  %s4 = inlined_call_operand.vmem [shape: bf16[32,96], index: 4, kind: input, shape index: {}]
  %s5 = inlined_call_operand.vmem [shape: f32[1,96], index: 5, kind: input, shape index: {}]
  %s6 = inlined_call_operand.vmem [shape: bf16[32,32], index: 6, kind: input, shape index: {}]
  %s7 = inlined_call_operand.vmem [shape: f32[1,32], index: 7, kind: input, shape index: {}]
  %s8 = inlined_call_operand.vmem [shape: f32[1,32], index: 8, kind: input, shape index: {}]
  %s9 = inlined_call_operand.vmem [shape: f32[1,32], index: 9, kind: input, shape index: {}]
  %s10 = inlined_call_operand.vmem [shape: bf16[32,128], index: 10, kind: input, shape index: {}]
  %s11 = inlined_call_operand.vmem [shape: f32[1,128], index: 11, kind: input, shape index: {}]
  %s12 = inlined_call_operand.vmem [shape: bf16[128,32], index: 12, kind: input, shape index: {}]
  %s13 = inlined_call_operand.vmem [shape: f32[1,32], index: 13, kind: input, shape index: {}]
  %s14 = inlined_call_operand.vmem [shape: f32[1,32], index: 14, kind: input, shape index: {}]
  %s15 = inlined_call_operand.vmem [shape: f32[1,32], index: 15, kind: input, shape index: {}]
  %s16 = inlined_call_operand.vmem [shape: bf16[32,96], index: 16, kind: input, shape index: {}]
  %s17 = inlined_call_operand.vmem [shape: bf16[32,64], index: 17, kind: input, shape index: {}]
  %s18 = inlined_call_operand.vmem [shape: bf16[32,32], index: 18, kind: input, shape index: {}]
  %s19 = inlined_call_operand.vmem [shape: f32[1,96], index: 19, kind: input, shape index: {}]
  %s20 = inlined_call_operand.vmem [shape: bf16[32,32], index: 20, kind: input, shape index: {}]
  %s21 = inlined_call_operand.vmem [shape: f32[1,32], index: 21, kind: input, shape index: {}]
  %s22 = inlined_call_operand.vmem [shape: bf16[32,32], index: 22, kind: input, shape index: {}]
  %s23 = inlined_call_operand.vmem [shape: f32[1,32], index: 23, kind: input, shape index: {}]
  %s24 = inlined_call_operand.vmem [shape: f32[24,128], index: 24, kind: output, shape index: {}]
  %s25 = sld [smem:[#allocation0]]
  $region106: #{cpc_trans_forward.1} parent=0
    _
  %s27 = ssub.s32 1, %s25
  %s28 = scalar_select 0, %s27, %s25
  // Predicated region
  $region2: #{cpc_trans_forward.1} parent=0 // pred_check
    _
  $region3: #{cpc_trans_forward.1} parent=0 // pred_check_branch
    %30 = sbr.rel (0) target = $region5
  $region4: #{cpc_trans_forward.1} parent=0 // pred_region
    _
  $region5: #{cpc_trans_forward.1} parent=0 // pred_fallthru
    _
  // Predicated region
  $region6: #{cpc_trans_forward.1} parent=0 // pred_check
    _
  $region7: #{cpc_trans_forward.1} parent=0 // pred_check_branch
    %32 = sbr.rel (0) target = $region9
  $region8: #{cpc_trans_forward.1} parent=0 // pred_region
    _
  $region9: #{cpc_trans_forward.1} parent=0 // pred_fallthru
    _
  // Predicated region
  $region10: #{cpc_trans_forward.1} parent=0 // pred_check
    _
  $region11: #{cpc_trans_forward.1} parent=0 // pred_check_branch
    %34 = sbr.rel (0) target = $region13
  $region12: #{cpc_trans_forward.1} parent=0 // pred_region
    _
  $region13: #{cpc_trans_forward.1} parent=0 // pred_fallthru
    _
  // Predicated region
  $region14: #{cpc_trans_forward.1} parent=0 // pred_check
    _
  $region15: #{cpc_trans_forward.1} parent=0 // pred_check_branch
    %36 = sbr.rel (0) target = $region17
  $region16: #{cpc_trans_forward.1} parent=0 // pred_region
    _
  $region17: #{cpc_trans_forward.1} parent=0 // pred_fallthru
    _
  // Predicated region
  $region18: #{cpc_trans_forward.1} parent=0 // pred_check
    _
  $region19: #{cpc_trans_forward.1} parent=0 // pred_check_branch
    %38 = sbr.rel (0) target = $region21
  $region20: #{cpc_trans_forward.1} parent=0 // pred_region
    _
  $region21: #{cpc_trans_forward.1} parent=0 // pred_fallthru
    _
  // Predicated region
  $region22: #{cpc_trans_forward.1} parent=0 // pred_check
    _
  $region23: #{cpc_trans_forward.1} parent=0 // pred_check_branch
    %40 = sbr.rel (0) target = $region25
  $region24: #{cpc_trans_forward.1} parent=0 // pred_region
    _
  $region25: #{cpc_trans_forward.1} parent=0 // pred_fallthru
    _
  // Predicated region
  $region26: #{cpc_trans_forward.1} parent=0 // pred_check
    _
  $region27: #{cpc_trans_forward.1} parent=0 // pred_check_branch
    %42 = sbr.rel (0) target = $region29
  $region28: #{cpc_trans_forward.1} parent=0 // pred_region
    _
  $region29: #{cpc_trans_forward.1} parent=0 // pred_fallthru
    _
  // Predicated region
  $region30: #{cpc_trans_forward.1} parent=0 // pred_check
    _
  $region31: #{cpc_trans_forward.1} parent=0 // pred_check_branch
    %44 = sbr.rel (0) target = $region33
  $region32: #{cpc_trans_forward.1} parent=0 // pred_region
    _
  $region33: #{cpc_trans_forward.1} parent=0 // pred_fallthru
    _
  // Predicated region
  $region34: #{cpc_trans_forward.1} parent=0 // pred_check
    _
  $region35: #{cpc_trans_forward.1} parent=0 // pred_check_branch
    %46 = sbr.rel (0) target = $region37
  $region36: #{cpc_trans_forward.1} parent=0 // pred_region
    _
  $region37: #{cpc_trans_forward.1} parent=0 // pred_fallthru
    _
  // Predicated region
  $region38: #{cpc_trans_forward.1} parent=0 // pred_check
    _
  $region39: #{cpc_trans_forward.1} parent=0 // pred_check_branch
    %48 = sbr.rel (0) target = $region41
  $region40: #{cpc_trans_forward.1} parent=0 // pred_region
    _
  $region41: #{cpc_trans_forward.1} parent=0 // pred_fallthru
    _
  // Predicated region
  $region42: #{cpc_trans_forward.1} parent=0 // pred_check
    _
  $region43: #{cpc_trans_forward.1} parent=0 // pred_check_branch
    %50 = sbr.rel (0) target = $region45
  $region44: #{cpc_trans_forward.1} parent=0 // pred_region
    _
  $region45: #{cpc_trans_forward.1} parent=0 // pred_fallthru
    _
  // Predicated region
  $region46: #{cpc_trans_forward.1} parent=0 // pred_check
    _
  $region47: #{cpc_trans_forward.1} parent=0 // pred_check_branch
    %52 = sbr.rel (0) target = $region49
  $region48: #{cpc_trans_forward.1} parent=0 // pred_region
    _
  $region49: #{cpc_trans_forward.1} parent=0 // pred_fallthru
    _
  // Predicated region
  $region50: #{cpc_trans_forward.1} parent=0 // pred_check
    _
  $region51: #{cpc_trans_forward.1} parent=0 // pred_check_branch
    %54 = sbr.rel (0) target = $region53
  $region52: #{cpc_trans_forward.1} parent=0 // pred_region
    _
  $region53: #{cpc_trans_forward.1} parent=0 // pred_fallthru
    _
  // Predicated region
  $region54: #{cpc_trans_forward.1} parent=0 // pred_check
    _
  $region55: #{cpc_trans_forward.1} parent=0 // pred_check_branch
    %56 = sbr.rel (0) target = $region57
  $region56: #{cpc_trans_forward.1} parent=0 // pred_region
    _
  $region57: #{cpc_trans_forward.1} parent=0 // pred_fallthru
    _
  // Predicated region
  $region58: #{cpc_trans_forward.1} parent=0 // pred_check
    _
  $region59: #{cpc_trans_forward.1} parent=0 // pred_check_branch
    %58 = sbr.rel (0) target = $region61
  $region60: #{cpc_trans_forward.1} parent=0 // pred_region
    _
  $region61: #{cpc_trans_forward.1} parent=0 // pred_fallthru
    _
  // Predicated region
  $region62: #{cpc_trans_forward.1} parent=0 // pred_check
    _
  $region63: #{cpc_trans_forward.1} parent=0 // pred_check_branch
    %60 = sbr.rel (0) target = $region65
  $region64: #{cpc_trans_forward.1} parent=0 // pred_region
    _
  $region65: #{cpc_trans_forward.1} parent=0 // pred_fallthru
    _
  // Predicated region
  $region66: #{cpc_trans_forward.1} parent=0 // pred_check
    _
  $region67: #{cpc_trans_forward.1} parent=0 // pred_check_branch
    %62 = sbr.rel (0) target = $region69
  $region68: #{cpc_trans_forward.1} parent=0 // pred_region
    _
  $region69: #{cpc_trans_forward.1} parent=0 // pred_fallthru
    _
  // Predicated region
  $region70: #{cpc_trans_forward.1} parent=0 // pred_check
    _
  $region71: #{cpc_trans_forward.1} parent=0 // pred_check_branch
    %64 = sbr.rel (0) target = $region73
  $region72: #{cpc_trans_forward.1} parent=0 // pred_region
    _
  $region73: #{cpc_trans_forward.1} parent=0 // pred_fallthru
    _
  // Predicated region
  $region74: #{cpc_trans_forward.1} parent=0 // pred_check
    _
  $region75: #{cpc_trans_forward.1} parent=0 // pred_check_branch
    %66 = sbr.rel (0) target = $region77
  $region76: #{cpc_trans_forward.1} parent=0 // pred_region
    _
  $region77: #{cpc_trans_forward.1} parent=0 // pred_fallthru
    _
  // Predicated region
  $region78: #{cpc_trans_forward.1} parent=0 // pred_check
    _
  $region79: #{cpc_trans_forward.1} parent=0 // pred_check_branch
    %68 = sbr.rel (0) target = $region81
  $region80: #{cpc_trans_forward.1} parent=0 // pred_region
    _
  $region81: #{cpc_trans_forward.1} parent=0 // pred_fallthru
    _
  // Predicated region
  $region82: #{cpc_trans_forward.1} parent=0 // pred_check
    _
  $region83: #{cpc_trans_forward.1} parent=0 // pred_check_branch
    %70 = sbr.rel (0) target = $region85
  $region84: #{cpc_trans_forward.1} parent=0 // pred_region
    _
  $region85: #{cpc_trans_forward.1} parent=0 // pred_fallthru
    _
  // Predicated region
  $region86: #{cpc_trans_forward.1} parent=0 // pred_check
    _
  $region87: #{cpc_trans_forward.1} parent=0 // pred_check_branch
    %72 = sbr.rel (0) target = $region89
  $region88: #{cpc_trans_forward.1} parent=0 // pred_region
    _
  $region89: #{cpc_trans_forward.1} parent=0 // pred_fallthru
    _
  // Predicated region
  $region90: #{cpc_trans_forward.1} parent=0 // pred_check
    _
  $region91: #{cpc_trans_forward.1} parent=0 // pred_check_branch
    %74 = sbr.rel (0) target = $region93
  $region92: #{cpc_trans_forward.1} parent=0 // pred_region
    _
  $region93: #{cpc_trans_forward.1} parent=0 // pred_fallthru
    _
  // Predicated region
  $region94: #{cpc_trans_forward.1} parent=0 // pred_check
    _
  $region95: #{cpc_trans_forward.1} parent=0 // pred_check_branch
    %76 = sbr.rel (0) target = $region97
  $region96: #{cpc_trans_forward.1} parent=0 // pred_region
    _
  $region97: #{cpc_trans_forward.1} parent=0 // pred_fallthru
    _
  %v78 = vld [vmem:[%s0] sm:$0xff]
  %v79 = vld [vmem:[%s0 + $0x8] sm:$0xff]
  %v80 = vld [vmem:[%s0 + $0x10] sm:$0xff]
  %v81 = vld [vmem:[%s0 + $0x18] sm:$0xff]
  %v82 = vld [vmem:[%s0 + $0x20] sm:$0xff]
  %v83 = vld [vmem:[%s0 + $0x28] sm:$0xff]
  %v84 = vld [vmem:[%s0 + $0x30] sm:$0xff]
  %v85 = vld [vmem:[%s0 + $0x38] sm:$0xff]
  %v86 = vld [vmem:[%s2] sm:$0x7]
  %v87 = vld [vmem:[%s3] sm:$0x1]
  %v89 = vlaneseq
  %v90 = vshrl.u32 %v89, 7
  %v91 = vsub.s32 0, %v90
  %v92 = vrot.slane %v87, %v91
  %vm94 = vcmask 23552
  %v96 = vsel %vm94, %v78, 0
  %v99 = vsel %vm94, %v79, 0
  %v102 = vsel %vm94, %v80, 0
  %v105 = vsel %vm94, %v81, 0
  %v108 = vsel %vm94, %v82, 0
  %v111 = vsel %vm94, %v83, 0
  %v114 = vsel %vm94, %v84, 0
  %v117 = vsel %vm94, %v85, 0
  %vm119 = vcmask 1042432
  %v121 = vsel %vm119, %v86, 0
  %123 = vmatprep.subr.mxu0 0.0
  %124 = vmatpush1.msra.mxu0 0.0
  %125 = vmatprep.subr.mxu0 0.0
  %126 = vmatpush1.msra.mxu0 0.0
  %127 = vmatprep.subr.mxu0 0.0
  %128 = vmatpush1.msra.mxu0 0.0
  %129 = vmatprep.subr.mxu0 0.0
  %130 = vmatpush1.msra.mxu0 0.0
  %131 = vmatprep.subr.mxu0 0.0
  %132 = vmatpush1.msra.mxu0 0.0
  %133 = vmatprep.subr.mxu0 0.0
  %134 = vmatpush1.msra.mxu0 0.0
  %135 = vmatprep.subr.mxu0 0.0
  %136 = vmatpush1.msra.mxu0 0.0
  %137 = vmatprep.subr.mxu0 0.0
  %138 = vmatpush1.msra.mxu0 0.0
  %139 = vmatprep.subr.mxu0 0.0
  %140 = vmatpush1.msra.mxu0 0.0
  %141 = vmatprep.subr.mxu0 0.0
  %142 = vmatpush1.msra.mxu0 0.0
  %143 = vmatprep.subr.mxu0 0.0
  %144 = vmatpush1.msra.mxu0 0.0
  %145 = vmatprep.subr.mxu0 0.0
  %146 = vmatpush1.msra.mxu0 0.0
  %147 = vmatprep.subr.mxu0 0.0
  %148 = vmatpush1.msra.mxu0 0.0
  %149 = vmatprep.subr.mxu0 0.0
  %150 = vmatpush1.msra.mxu0 0.0
  %151 = vmatprep.subr.mxu0 0.0
  %152 = vmatpush1.msra.mxu0 0.0
  %153 = vmatprep.subr.mxu0 0.0
  %154 = vmatpush1.msra.mxu0 %v121
  %155 = vmatprep.subr.mxu0 0.0
  %156 = vmatpush2.msra.mxu0 0.0
  %157 = vmatprep.subr.mxu0 0.0
  %158 = vmatpush2.msra.mxu0 0.0
  %159 = vmatprep.subr.mxu0 0.0
  %160 = vmatpush2.msra.mxu0 0.0
  %161 = vmatprep.subr.mxu0 0.0
  %162 = vmatpush2.msra.mxu0 0.0
  %163 = vmatprep.subr.mxu0 0.0
  %164 = vmatpush2.msra.mxu0 0.0
  %165 = vmatprep.subr.mxu0 0.0
  %166 = vmatpush2.msra.mxu0 0.0
  %167 = vmatprep.subr.mxu0 0.0
  %168 = vmatpush2.msra.mxu0 0.0
  %169 = vmatprep.subr.mxu0 0.0
  %170 = vmatpush2.msra.mxu0 0.0
  %171 = vmatprep.subr.mxu0 0.0
  %172 = vmatpush2.msra.mxu0 0.0
  %173 = vmatprep.subr.mxu0 0.0
  %174 = vmatpush2.msra.mxu0 0.0
  %175 = vmatprep.subr.mxu0 0.0
  %176 = vmatpush2.msra.mxu0 0.0
  %177 = vmatprep.subr.mxu0 0.0
  %178 = vmatpush2.msra.mxu0 0.0
  %179 = vmatprep.subr.mxu0 0.0
  %180 = vmatpush2.msra.mxu0 0.0
  %181 = vmatprep.subr.mxu0 0.0
  %182 = vmatpush2.msra.mxu0 0.0
  %183 = vmatprep.subr.mxu0 0.0
  %184 = vmatpush2.msra.mxu0 0.0
  %185 = vmatprep.subr.mxu0 0.0
  %186 = vmatpush2.msra.mxu0 0.0
  %187 = vmatprep.mubr.f32.mxu0 0.0
  %188 = vmatmul.mubr.f32.gmra.mxu0 %v96
  %v189 = vpop.f32.mrf.mxu0
  %v190 = vadd.f32 %v92, %v189
  %v191 = vpop.f32.mrf.mxu0
  %192 = vmatprep.mubr.f32.mxu0 0.0
  %193 = vmatmul.mubr.f32.gmra.mxu0 %v99
  %v194 = vpop.f32.mrf.mxu0
  %v195 = vadd.f32 %v92, %v194
  %v196 = vpop.f32.mrf.mxu0
  %197 = vmatprep.mubr.f32.mxu0 0.0
  %198 = vmatmul.mubr.f32.gmra.mxu0 %v102
  %v199 = vpop.f32.mrf.mxu0
  %v200 = vadd.f32 %v92, %v199
  %v201 = vpop.f32.mrf.mxu0
  %202 = vmatprep.mubr.f32.mxu0 0.0
  %203 = vmatmul.mubr.f32.gmra.mxu0 %v105
  %v204 = vpop.f32.mrf.mxu0
  %v205 = vadd.f32 %v92, %v204
  %v206 = vpop.f32.mrf.mxu0
  %207 = vmatprep.mubr.f32.mxu0 0.0
  %208 = vmatmul.mubr.f32.gmra.mxu0 %v108
  %v209 = vpop.f32.mrf.mxu0
  %v210 = vadd.f32 %v92, %v209
  %v211 = vpop.f32.mrf.mxu0
  %212 = vmatprep.mubr.f32.mxu0 0.0
  %213 = vmatmul.mubr.f32.gmra.mxu0 %v111
  %v214 = vpop.f32.mrf.mxu0
  %v215 = vadd.f32 %v92, %v214
  %v216 = vpop.f32.mrf.mxu0
  %217 = vmatprep.mubr.f32.mxu0 0.0
  %218 = vmatmul.mubr.f32.gmra.mxu0 %v114
  %v219 = vpop.f32.mrf.mxu0
  %v220 = vadd.f32 %v92, %v219
  %v221 = vpop.f32.mrf.mxu0
  %222 = vmatprep.mubr.f32.mxu0 0.0
  %223 = vmatmul.mubr.f32.gmra.mxu0 %v117
  %v224 = vpop.f32.mrf.mxu0
  %v225 = vadd.f32 %v92, %v224
  %v226 = vpop.f32.mrf.mxu0
  %227 = vdwg.mxu0
  %v228 = vmax.f32 %v190, 0.0
  %v229 = vmax.f32 %v195, 0.0
  %v230 = vmax.f32 %v200, 0.0
  %v231 = vmax.f32 %v205, 0.0
  %v232 = vmax.f32 %v210, 0.0
  %v233 = vmax.f32 %v215, 0.0
  %v234 = vmax.f32 %v220, 0.0
  %v235 = vmax.f32 %v225, 0.0
  %v236 = vpack.c.bf16 %v229, %v228
  %v237 = vpack.c.bf16 %v231, %v230
  %v238 = vpack.c.bf16 %v233, %v232
  %v239 = vpack.c.bf16 %v235, %v234
  %v240 = vld [vmem:[%s4] sm:$0xf]
  %v241 = vld [vmem:[%s4 + $0x4] sm:$0xf]
  %v242 = vld [vmem:[%s4 + $0x8] sm:$0xf]
  %v243 = vld [vmem:[%s4 + $0xc] sm:$0xf]
  %v244 = vld [vmem:[%s5] sm:$0x1]
  %v246 = vlaneseq
  %v247 = vshrl.u32 %v246, 7
  %v248 = vsub.s32 0, %v247
  %v249 = vrot.slane %v244, %v248
  %v255 = vunpack.c.l.b16 %v240
  %v256 = vunpack.c.l.b16 %v241
  %v257 = vunpack.c.l.b16 %v242
  %v258 = vunpack.c.l.b16 %v243
  %v259 = vpack.c.b16 %v256, %v255
  %v260 = vpack.c.b16 %v258, %v257
  %vm263 = vcmask 261120
  %v265 = vsel %vm263, %v236, 0
  %v268 = vsel %vm263, %v237, 0
  %v271 = vsel %vm263, %v238, 0
  %v274 = vsel %vm263, %v239, 0
  %276 = vmatprep.subr.bf16.mxu0 0
  %277 = vmatpush1.bf16.msra.mxu0 0
  %278 = vmatprep.subr.bf16.mxu0 0
  %279 = vmatpush1.bf16.msra.mxu0 0
  %280 = vmatprep.subr.bf16.mxu0 0
  %281 = vmatpush1.bf16.msra.mxu0 0
  %282 = vmatprep.subr.bf16.mxu0 0
  %283 = vmatpush1.bf16.msra.mxu0 0
  %284 = vmatprep.subr.bf16.mxu0 0
  %285 = vmatpush1.bf16.msra.mxu0 0
  %286 = vmatprep.subr.bf16.mxu0 0
  %287 = vmatpush1.bf16.msra.mxu0 0
  %288 = vmatprep.subr.bf16.mxu0 0
  %289 = vmatpush1.bf16.msra.mxu0 %v260
  %290 = vmatprep.subr.bf16.mxu0 0
  %291 = vmatpush1.bf16.msra.mxu0 %v259
  %292 = vmatprep.subr.bf16.mxu0 0
  %293 = vmatpush2.bf16.msra.mxu0 0
  %294 = vmatprep.subr.bf16.mxu0 0
  %295 = vmatpush2.bf16.msra.mxu0 0
  %296 = vmatprep.subr.bf16.mxu0 0
  %297 = vmatpush2.bf16.msra.mxu0 0
  %298 = vmatprep.subr.bf16.mxu0 0
  %299 = vmatpush2.bf16.msra.mxu0 0
  %300 = vmatprep.subr.bf16.mxu0 0
  %301 = vmatpush2.bf16.msra.mxu0 0
  %302 = vmatprep.subr.bf16.mxu0 0
  %303 = vmatpush2.bf16.msra.mxu0 0
  %304 = vmatprep.subr.bf16.mxu0 0
  %305 = vmatpush2.bf16.msra.mxu0 0
  %306 = vmatprep.subr.bf16.mxu0 0
  %307 = vmatpush2.bf16.msra.mxu0 0
  %308 = vmatprep.mubr.bf16.mxu0 0
  %309 = vmatmul.mubr.bf16.gmra.mxu0 %v265
  %v310 = vpop.f32.mrf.mxu0
  %v311 = vadd.f32 %v249, %v310
  %v312 = vpop.f32.mrf.mxu0
  %v313 = vpop.f32.mrf.mxu0
  %v314 = vadd.f32 %v249, %v313
  %v315 = vpop.f32.mrf.mxu0
  %316 = vmatprep.mubr.bf16.mxu0 0
  %317 = vmatmul.mubr.bf16.gmra.mxu0 %v268
  %v318 = vpop.f32.mrf.mxu0
  %v319 = vadd.f32 %v249, %v318
  %v320 = vpop.f32.mrf.mxu0
  %v321 = vpop.f32.mrf.mxu0
  %v322 = vadd.f32 %v249, %v321
  %v323 = vpop.f32.mrf.mxu0
  %324 = vmatprep.mubr.bf16.mxu0 0
  %325 = vmatmul.mubr.bf16.gmra.mxu0 %v271
  %v326 = vpop.f32.mrf.mxu0
  %v327 = vadd.f32 %v249, %v326
  %v328 = vpop.f32.mrf.mxu0
  %v329 = vpop.f32.mrf.mxu0
  %v330 = vadd.f32 %v249, %v329
  %v331 = vpop.f32.mrf.mxu0
  %332 = vmatprep.mubr.bf16.mxu0 0
  %333 = vmatmul.mubr.bf16.gmra.mxu0 %v274
  %v334 = vpop.f32.mrf.mxu0
  %v335 = vadd.f32 %v249, %v334
  %v336 = vpop.f32.mrf.mxu0
  %v337 = vpop.f32.mrf.mxu0
  %v338 = vadd.f32 %v249, %v337
  %v339 = vpop.f32.mrf.mxu0
  %340 = vdwg.mxu0
  %v341 = vpack.c.bf16 %v314, %v311
  %v342 = vpack.c.bf16 %v322, %v319
  %v343 = vpack.c.bf16 %v330, %v327
  %v344 = vpack.c.bf16 %v338, %v335
  %v345 = vld [vmem:[%s6] sm:$0xf]
  %v346 = vld [vmem:[%s6 + $0x4] sm:$0xf]
  %v347 = vld [vmem:[%s6 + $0x8] sm:$0xf]
  %v348 = vld [vmem:[%s6 + $0xc] sm:$0xf]
  %351 = vrot.lane.b32.xlu0 %v341, 96
  %v352 = vpop.permute.xlu0 %351
  %353 = vrot.lane.b32.xlu0 %v342, 96
  %v354 = vpop.permute.xlu0 %353
  %vm355 = vcmask 130048
  %v357 = vsel %vm355, %v341, 0
  %v360 = vsel %vm355, %v342, 0
  %v363 = vsel %vm355, %v352, 0
  %v366 = vsel %vm355, %v354, 0
  %368 = vmatprep.subr.bf16.mxu0 0
  %369 = vmatpush1.bf16.xpose.msra.mxu0 0
  %370 = vmatprep.subr.bf16.mxu0 0
  %371 = vmatpush1.bf16.xpose.msra.mxu0 0
  %372 = vmatprep.subr.bf16.mxu0 0
  %373 = vmatpush1.bf16.xpose.msra.mxu0 0
  %374 = vmatprep.subr.bf16.mxu0 0
  %375 = vmatpush1.bf16.xpose.msra.mxu0 0
  %376 = vmatprep.subr.bf16.mxu0 0
  %377 = vmatpush1.bf16.xpose.msra.mxu0 0
  %378 = vmatprep.subr.bf16.mxu0 0
  %379 = vmatpush1.bf16.xpose.msra.mxu0 0
  %380 = vmatprep.subr.bf16.mxu0 0
  %381 = vmatpush1.bf16.xpose.msra.mxu0 %v366
  %382 = vmatprep.subr.bf16.mxu0 0
  %383 = vmatpush1.bf16.xpose.msra.mxu0 %v363
  %384 = vmatprep.subr.bf16.mxu0 0
  %385 = vmatpush2.bf16.xpose.msra.mxu0 0
  %386 = vmatprep.subr.bf16.mxu0 0
  %387 = vmatpush2.bf16.xpose.msra.mxu0 0
  %388 = vmatprep.subr.bf16.mxu0 0
  %389 = vmatpush2.bf16.xpose.msra.mxu0 0
  %390 = vmatprep.subr.bf16.mxu0 0
  %391 = vmatpush2.bf16.xpose.msra.mxu0 0
  %392 = vmatprep.subr.bf16.mxu0 0
  %393 = vmatpush2.bf16.xpose.msra.mxu0 0
  %394 = vmatprep.subr.bf16.mxu0 0
  %395 = vmatpush2.bf16.xpose.msra.mxu0 0
  %396 = vmatprep.subr.bf16.mxu0 0
  %397 = vmatpush2.bf16.xpose.msra.mxu0 0
  %398 = vmatprep.subr.bf16.mxu0 0
  %399 = vmatpush2.bf16.xpose.msra.mxu0 0
  %400 = vmatprep.mubr.bf16.mxu0 0
  %401 = vmatmul.mubr.bf16.gmra.mxu0 %v357
  %v402 = vpop.f32.mrf.mxu0
  %v403 = vadd.f32 0.0, %v402
  %v404 = vpop.f32.mrf.mxu0
  %v405 = vpop.f32.mrf.mxu0
  %v406 = vadd.f32 0.0, %v405
  %v407 = vpop.f32.mrf.mxu0
  %408 = vmatprep.mubr.bf16.mxu0 0
  %409 = vmatmul.mubr.bf16.gmra.mxu0 %v360
  %v410 = vpop.f32.mrf.mxu0
  %v411 = vadd.f32 0.0, %v410
  %v412 = vpop.f32.mrf.mxu0
  %v413 = vpop.f32.mrf.mxu0
  %v414 = vadd.f32 0.0, %v413
  %v415 = vpop.f32.mrf.mxu0
  %416 = vdwg.mxu0
  %v417 = vmul.f32 %v403, 0.25
  %v418 = vmul.f32 %v406, 0.25
  %v419 = vmul.f32 %v411, 0.25
  %v420 = vmul.f32 %v414, 0.25
  %v421 = vsel %vm263, %v417, -inf
  %422 = vmax.xlane.f32.xlu0 %v421
  %v423 = vpop.xlane.xlu0 %422
  %v424 = vsel %vm263, %v418, -inf
  %425 = vmax.xlane.f32.xlu0 %v424
  %v426 = vpop.xlane.xlu0 %425
  %v427 = vsel %vm263, %v419, -inf
  %428 = vmax.xlane.f32.xlu0 %v427
  %v429 = vpop.xlane.xlu0 %428
  %v430 = vsel %vm263, %v420, -inf
  %431 = vmax.xlane.f32.xlu0 %v430
  %v432 = vpop.xlane.xlu0 %431
  %v433 = vsub.f32 %v417, %v423
  %v434 = vsub.f32 %v418, %v426
  %v435 = vsub.f32 %v419, %v429
  %v436 = vsub.f32 %v420, %v432
  %v437 = vmul.f32 %v433, 1.442695
  %v438 = vpow.pop %v437
  %v439 = vmul.f32 %v434, 1.442695
  %v440 = vpow.pop %v439
  %v441 = vmul.f32 %v435, 1.442695
  %v442 = vpow.pop %v441
  %v443 = vmul.f32 %v436, 1.442695
  %v444 = vpow.pop %v443
  %v445 = vsel %vm263, %v438, 0.0
  %446 = vadd.xlane.f32.xlu0 %v445
  %v447 = vpop.xlane.xlu0 %446
  %v448 = vsel %vm263, %v440, 0.0
  %449 = vadd.xlane.f32.xlu0 %v448
  %v450 = vpop.xlane.xlu0 %449
  %v451 = vsel %vm263, %v442, 0.0
  %452 = vadd.xlane.f32.xlu0 %v451
  %v453 = vpop.xlane.xlu0 %452
  %v454 = vsel %vm263, %v444, 0.0
  %455 = vadd.xlane.f32.xlu0 %v454
  %v456 = vpop.xlane.xlu0 %455
  %v457 = vrcp.pop %v447
  %v458 = vrcp.pop %v450
  %v459 = vrcp.pop %v453
  %v460 = vrcp.pop %v456
  %v461 = vmul.f32 %v438, %v457
  %v462 = vmul.f32 %v440, %v458
  %v463 = vmul.f32 %v442, %v459
  %v464 = vmul.f32 %v444, %v460
  %v465 = vpack.c.bf16 %v462, %v461
  %v466 = vpack.c.bf16 %v464, %v463
  %467 = vrot.lane.b32.xlu0 %v341, 64
  %v468 = vpop.permute.xlu0 %467
  %469 = vrot.lane.b32.xlu0 %v342, 64
  %v470 = vpop.permute.xlu0 %469
  %v474 = vsel %vm263, %v465, 0
  %v477 = vsel %vm263, %v466, 0
  %479 = vmatprep.subr.bf16.mxu0 0
  %480 = vmatpush1.bf16.msra.mxu0 0
  %481 = vmatprep.subr.bf16.mxu0 0
  %482 = vmatpush1.bf16.msra.mxu0 0
  %483 = vmatprep.subr.bf16.mxu0 0
  %484 = vmatpush1.bf16.msra.mxu0 0
  %485 = vmatprep.subr.bf16.mxu0 0
  %486 = vmatpush1.bf16.msra.mxu0 0
  %487 = vmatprep.subr.bf16.mxu0 0
  %488 = vmatpush1.bf16.msra.mxu0 0
  %489 = vmatprep.subr.bf16.mxu0 0
  %490 = vmatpush1.bf16.msra.mxu0 0
  %491 = vmatprep.subr.bf16.mxu0 0
  %492 = vmatpush1.bf16.msra.mxu0 %v470
  %493 = vmatprep.subr.bf16.mxu0 0
  %494 = vmatpush1.bf16.msra.mxu0 %v468
  %495 = vmatprep.subr.bf16.mxu0 0
  %496 = vmatpush2.bf16.msra.mxu0 0
  %497 = vmatprep.subr.bf16.mxu0 0
  %498 = vmatpush2.bf16.msra.mxu0 0
  %499 = vmatprep.subr.bf16.mxu0 0
  %500 = vmatpush2.bf16.msra.mxu0 0
  %501 = vmatprep.subr.bf16.mxu0 0
  %502 = vmatpush2.bf16.msra.mxu0 0
  %503 = vmatprep.subr.bf16.mxu0 0
  %504 = vmatpush2.bf16.msra.mxu0 0
  %505 = vmatprep.subr.bf16.mxu0 0
  %506 = vmatpush2.bf16.msra.mxu0 0
  %507 = vmatprep.subr.bf16.mxu0 0
  %508 = vmatpush2.bf16.msra.mxu0 0
  %509 = vmatprep.subr.bf16.mxu0 0
  %510 = vmatpush2.bf16.msra.mxu0 0
  %511 = vmatprep.mubr.bf16.mxu0 0
  %512 = vmatmul.mubr.bf16.gmra.mxu0 %v474
  %v513 = vpop.f32.mrf.mxu0
  %v514 = vadd.f32 0.0, %v513
  %v515 = vpop.f32.mrf.mxu0
  %v516 = vpop.f32.mrf.mxu0
  %v517 = vadd.f32 0.0, %v516
  %v518 = vpop.f32.mrf.mxu0
  %519 = vmatprep.mubr.bf16.mxu0 0
  %520 = vmatmul.mubr.bf16.gmra.mxu0 %v477
  %v521 = vpop.f32.mrf.mxu0
  %v522 = vadd.f32 0.0, %v521
  %v523 = vpop.f32.mrf.mxu0
  %v524 = vpop.f32.mrf.mxu0
  %v525 = vadd.f32 0.0, %v524
  %v526 = vpop.f32.mrf.mxu0
  %527 = vdwg.mxu0
  %v528 = vpack.c.bf16 %v517, %v514
  %v529 = vpack.c.bf16 %v525, %v522
  %530 = vrot.lane.b32.xlu0 %v341, 112
  %v531 = vpop.permute.xlu0 %530
  %532 = vrot.lane.b32.xlu0 %v342, 112
  %v533 = vpop.permute.xlu0 %532
  %534 = vrot.lane.b32.xlu0 %v341, 80
  %v535 = vpop.permute.xlu0 %534
  %536 = vrot.lane.b32.xlu0 %v342, 80
  %v537 = vpop.permute.xlu0 %536
  %v539 = vsel %vm355, %v531, 0
  %v542 = vsel %vm355, %v533, 0
  %v545 = vsel %vm355, %v535, 0
  %v548 = vsel %vm355, %v537, 0
  %550 = vmatprep.subr.bf16.mxu0 0
  %551 = vmatpush1.bf16.xpose.msra.mxu0 0
  %552 = vmatprep.subr.bf16.mxu0 0
  %553 = vmatpush1.bf16.xpose.msra.mxu0 0
  %554 = vmatprep.subr.bf16.mxu0 0
  %555 = vmatpush1.bf16.xpose.msra.mxu0 0
  %556 = vmatprep.subr.bf16.mxu0 0
  %557 = vmatpush1.bf16.xpose.msra.mxu0 0
  %558 = vmatprep.subr.bf16.mxu0 0
  %559 = vmatpush1.bf16.xpose.msra.mxu0 0
  %560 = vmatprep.subr.bf16.mxu0 0
  %561 = vmatpush1.bf16.xpose.msra.mxu0 0
  %562 = vmatprep.subr.bf16.mxu0 0
  %563 = vmatpush1.bf16.xpose.msra.mxu0 %v548
  %564 = vmatprep.subr.bf16.mxu0 0
  %565 = vmatpush1.bf16.xpose.msra.mxu0 %v545
  %566 = vmatprep.subr.bf16.mxu0 0
  %567 = vmatpush2.bf16.xpose.msra.mxu0 0
  %568 = vmatprep.subr.bf16.mxu0 0
  %569 = vmatpush2.bf16.xpose.msra.mxu0 0
  %570 = vmatprep.subr.bf16.mxu0 0
  %571 = vmatpush2.bf16.xpose.msra.mxu0 0
  %572 = vmatprep.subr.bf16.mxu0 0
  %573 = vmatpush2.bf16.xpose.msra.mxu0 0
  %574 = vmatprep.subr.bf16.mxu0 0
  %575 = vmatpush2.bf16.xpose.msra.mxu0 0
  %576 = vmatprep.subr.bf16.mxu0 0
  %577 = vmatpush2.bf16.xpose.msra.mxu0 0
  %578 = vmatprep.subr.bf16.mxu0 0
  %579 = vmatpush2.bf16.xpose.msra.mxu0 0
  %580 = vmatprep.subr.bf16.mxu0 0
  %581 = vmatpush2.bf16.xpose.msra.mxu0 0
  %582 = vmatprep.mubr.bf16.mxu0 0
  %583 = vmatmul.mubr.bf16.gmra.mxu0 %v539
  %v584 = vpop.f32.mrf.mxu0
  %v585 = vadd.f32 0.0, %v584
  %v586 = vpop.f32.mrf.mxu0
  %v587 = vpop.f32.mrf.mxu0
  %v588 = vadd.f32 0.0, %v587
  %v589 = vpop.f32.mrf.mxu0
  %590 = vmatprep.mubr.bf16.mxu0 0
  %591 = vmatmul.mubr.bf16.gmra.mxu0 %v542
  %v592 = vpop.f32.mrf.mxu0
  %v593 = vadd.f32 0.0, %v592
  %v594 = vpop.f32.mrf.mxu0
  %v595 = vpop.f32.mrf.mxu0
  %v596 = vadd.f32 0.0, %v595
  %v597 = vpop.f32.mrf.mxu0
  %598 = vdwg.mxu0
  %v599 = vmul.f32 %v585, 0.25
  %v600 = vmul.f32 %v588, 0.25
  %v601 = vmul.f32 %v593, 0.25
  %v602 = vmul.f32 %v596, 0.25
  %v603 = vsel %vm263, %v599, -inf
  %604 = vmax.xlane.f32.xlu0 %v603
  %v605 = vpop.xlane.xlu0 %604
  %v606 = vsel %vm263, %v600, -inf
  %607 = vmax.xlane.f32.xlu0 %v606
  %v608 = vpop.xlane.xlu0 %607
  %v609 = vsel %vm263, %v601, -inf
  %610 = vmax.xlane.f32.xlu0 %v609
  %v611 = vpop.xlane.xlu0 %610
  %v612 = vsel %vm263, %v602, -inf
  %613 = vmax.xlane.f32.xlu0 %v612
  %v614 = vpop.xlane.xlu0 %613
  %v615 = vsub.f32 %v599, %v605
  %v616 = vsub.f32 %v600, %v608
  %v617 = vsub.f32 %v601, %v611
  %v618 = vsub.f32 %v602, %v614
  %v619 = vmul.f32 %v615, 1.442695
  %v620 = vpow.pop %v619
  %v621 = vmul.f32 %v616, 1.442695
  %v622 = vpow.pop %v621
  %v623 = vmul.f32 %v617, 1.442695
  %v624 = vpow.pop %v623
  %v625 = vmul.f32 %v618, 1.442695
  %v626 = vpow.pop %v625
  %v627 = vsel %vm263, %v620, 0.0
  %628 = vadd.xlane.f32.xlu0 %v627
  %v629 = vpop.xlane.xlu0 %628
  %v630 = vsel %vm263, %v622, 0.0
  %631 = vadd.xlane.f32.xlu0 %v630
  %v632 = vpop.xlane.xlu0 %631
  %v633 = vsel %vm263, %v624, 0.0
  %634 = vadd.xlane.f32.xlu0 %v633
  %v635 = vpop.xlane.xlu0 %634
  %v636 = vsel %vm263, %v626, 0.0
  %637 = vadd.xlane.f32.xlu0 %v636
  %v638 = vpop.xlane.xlu0 %637
  %v639 = vrcp.pop %v629
  %v640 = vrcp.pop %v632
  %v641 = vrcp.pop %v635
  %v642 = vrcp.pop %v638
  %v643 = vmul.f32 %v620, %v639
  %v644 = vmul.f32 %v622, %v640
  %v645 = vmul.f32 %v624, %v641
  %v646 = vmul.f32 %v626, %v642
  %v647 = vpack.c.bf16 %v644, %v643
  %v648 = vpack.c.bf16 %v646, %v645
  %649 = vrot.lane.b32.xlu0 %v341, 48
  %v650 = vpop.permute.xlu0 %649
  %651 = vrot.lane.b32.xlu0 %v342, 48
  %v652 = vpop.permute.xlu0 %651
  %v656 = vsel %vm263, %v647, 0
  %v659 = vsel %vm263, %v648, 0
  %661 = vmatprep.subr.bf16.mxu0 0
  %662 = vmatpush1.bf16.msra.mxu0 0
  %663 = vmatprep.subr.bf16.mxu0 0
  %664 = vmatpush1.bf16.msra.mxu0 0
  %665 = vmatprep.subr.bf16.mxu0 0
  %666 = vmatpush1.bf16.msra.mxu0 0
  %667 = vmatprep.subr.bf16.mxu0 0
  %668 = vmatpush1.bf16.msra.mxu0 0
  %669 = vmatprep.subr.bf16.mxu0 0
  %670 = vmatpush1.bf16.msra.mxu0 0
  %671 = vmatprep.subr.bf16.mxu0 0
  %672 = vmatpush1.bf16.msra.mxu0 0
  %673 = vmatprep.subr.bf16.mxu0 0
  %674 = vmatpush1.bf16.msra.mxu0 %v652
  %675 = vmatprep.subr.bf16.mxu0 0
  %676 = vmatpush1.bf16.msra.mxu0 %v650
  %677 = vmatprep.subr.bf16.mxu0 0
  %678 = vmatpush2.bf16.msra.mxu0 0
  %679 = vmatprep.subr.bf16.mxu0 0
  %680 = vmatpush2.bf16.msra.mxu0 0
  %681 = vmatprep.subr.bf16.mxu0 0
  %682 = vmatpush2.bf16.msra.mxu0 0
  %683 = vmatprep.subr.bf16.mxu0 0
  %684 = vmatpush2.bf16.msra.mxu0 0
  %685 = vmatprep.subr.bf16.mxu0 0
  %686 = vmatpush2.bf16.msra.mxu0 0
  %687 = vmatprep.subr.bf16.mxu0 0
  %688 = vmatpush2.bf16.msra.mxu0 0
  %689 = vmatprep.subr.bf16.mxu0 0
  %690 = vmatpush2.bf16.msra.mxu0 0
  %691 = vmatprep.subr.bf16.mxu0 0
  %692 = vmatpush2.bf16.msra.mxu0 0
  %693 = vmatprep.mubr.bf16.mxu0 0
  %694 = vmatmul.mubr.bf16.gmra.mxu0 %v656
  %v695 = vpop.f32.mrf.mxu0
  %v696 = vadd.f32 0.0, %v695
  %v697 = vpop.f32.mrf.mxu0
  %v698 = vpop.f32.mrf.mxu0
  %v699 = vadd.f32 0.0, %v698
  %v700 = vpop.f32.mrf.mxu0
  %701 = vmatprep.mubr.bf16.mxu0 0
  %702 = vmatmul.mubr.bf16.gmra.mxu0 %v659
  %v703 = vpop.f32.mrf.mxu0
  %v704 = vadd.f32 0.0, %v703
  %v705 = vpop.f32.mrf.mxu0
  %v706 = vpop.f32.mrf.mxu0
  %v707 = vadd.f32 0.0, %v706
  %v708 = vpop.f32.mrf.mxu0
  %709 = vdwg.mxu0
  %v710 = vpack.c.bf16 %v699, %v696
  %v711 = vpack.c.bf16 %v707, %v704
  %v714 = vunpack.c.l.b16 %v347
  %v715 = vunpack.c.l.b16 %v348
  %v716 = vpack.c.b16 %v715, %v714
  %v719 = vsel %vm355, %v710, 0
  %v722 = vsel %vm355, %v711, 0
  %724 = vmatprep.subr.bf16.mxu0 0
  %725 = vmatpush1.bf16.msra.mxu0 0
  %726 = vmatprep.subr.bf16.mxu0 0
  %727 = vmatpush1.bf16.msra.mxu0 0
  %728 = vmatprep.subr.bf16.mxu0 0
  %729 = vmatpush1.bf16.msra.mxu0 0
  %730 = vmatprep.subr.bf16.mxu0 0
  %731 = vmatpush1.bf16.msra.mxu0 0
  %732 = vmatprep.subr.bf16.mxu0 0
  %733 = vmatpush1.bf16.msra.mxu0 0
  %734 = vmatprep.subr.bf16.mxu0 0
  %735 = vmatpush1.bf16.msra.mxu0 0
  %736 = vmatprep.subr.bf16.mxu0 0
  %737 = vmatpush1.bf16.msra.mxu0 0
  %738 = vmatprep.subr.bf16.mxu0 0
  %739 = vmatpush1.bf16.msra.mxu0 %v716
  %740 = vmatprep.subr.bf16.mxu0 0
  %741 = vmatpush2.bf16.msra.mxu0 0
  %742 = vmatprep.subr.bf16.mxu0 0
  %743 = vmatpush2.bf16.msra.mxu0 0
  %744 = vmatprep.subr.bf16.mxu0 0
  %745 = vmatpush2.bf16.msra.mxu0 0
  %746 = vmatprep.subr.bf16.mxu0 0
  %747 = vmatpush2.bf16.msra.mxu0 0
  %748 = vmatprep.subr.bf16.mxu0 0
  %749 = vmatpush2.bf16.msra.mxu0 0
  %750 = vmatprep.subr.bf16.mxu0 0
  %751 = vmatpush2.bf16.msra.mxu0 0
  %752 = vmatprep.subr.bf16.mxu0 0
  %753 = vmatpush2.bf16.msra.mxu0 0
  %754 = vmatprep.subr.bf16.mxu0 0
  %755 = vmatpush2.bf16.msra.mxu0 0
  %756 = vmatprep.mubr.bf16.mxu0 0
  %757 = vmatmul.mubr.bf16.gmra.mxu0 %v719
  %v758 = vpop.f32.mrf.mxu0
  %v759 = vadd.f32 0.0, %v758
  %v760 = vpop.f32.mrf.mxu0
  %v761 = vpop.f32.mrf.mxu0
  %v762 = vadd.f32 0.0, %v761
  %v763 = vpop.f32.mrf.mxu0
  %764 = vmatprep.mubr.bf16.mxu0 0
  %765 = vmatmul.mubr.bf16.gmra.mxu0 %v722
  %v766 = vpop.f32.mrf.mxu0
  %v767 = vadd.f32 0.0, %v766
  %v768 = vpop.f32.mrf.mxu0
  %v769 = vpop.f32.mrf.mxu0
  %v770 = vadd.f32 0.0, %v769
  %v771 = vpop.f32.mrf.mxu0
  %772 = vdwg.mxu0
  %v775 = vunpack.c.l.b16 %v345
  %v776 = vunpack.c.l.b16 %v346
  %v777 = vpack.c.b16 %v776, %v775
  %v780 = vsel %vm355, %v528, 0
  %v783 = vsel %vm355, %v529, 0
  %785 = vmatprep.subr.bf16.mxu0 0
  %786 = vmatpush1.bf16.msra.mxu0 0
  %787 = vmatprep.subr.bf16.mxu0 0
  %788 = vmatpush1.bf16.msra.mxu0 0
  %789 = vmatprep.subr.bf16.mxu0 0
  %790 = vmatpush1.bf16.msra.mxu0 0
  %791 = vmatprep.subr.bf16.mxu0 0
  %792 = vmatpush1.bf16.msra.mxu0 0
  %793 = vmatprep.subr.bf16.mxu0 0
  %794 = vmatpush1.bf16.msra.mxu0 0
  %795 = vmatprep.subr.bf16.mxu0 0
  %796 = vmatpush1.bf16.msra.mxu0 0
  %797 = vmatprep.subr.bf16.mxu0 0
  %798 = vmatpush1.bf16.msra.mxu0 0
  %799 = vmatprep.subr.bf16.mxu0 0
  %800 = vmatpush1.bf16.msra.mxu0 %v777
  %801 = vmatprep.subr.bf16.mxu0 0
  %802 = vmatpush2.bf16.msra.mxu0 0
  %803 = vmatprep.subr.bf16.mxu0 0
  %804 = vmatpush2.bf16.msra.mxu0 0
  %805 = vmatprep.subr.bf16.mxu0 0
  %806 = vmatpush2.bf16.msra.mxu0 0
  %807 = vmatprep.subr.bf16.mxu0 0
  %808 = vmatpush2.bf16.msra.mxu0 0
  %809 = vmatprep.subr.bf16.mxu0 0
  %810 = vmatpush2.bf16.msra.mxu0 0
  %811 = vmatprep.subr.bf16.mxu0 0
  %812 = vmatpush2.bf16.msra.mxu0 0
  %813 = vmatprep.subr.bf16.mxu0 0
  %814 = vmatpush2.bf16.msra.mxu0 0
  %815 = vmatprep.subr.bf16.mxu0 0
  %816 = vmatpush2.bf16.msra.mxu0 0
  %817 = vmatprep.mubr.bf16.mxu0 0
  %818 = vmatmul.mubr.bf16.gmra.mxu0 %v780
  %v819 = vpop.f32.mrf.mxu0
  %v820 = vadd.f32 %v759, %v819
  %v821 = vpop.f32.mrf.mxu0
  %v822 = vpop.f32.mrf.mxu0
  %v823 = vadd.f32 %v762, %v822
  %v824 = vpop.f32.mrf.mxu0
  %825 = vmatprep.mubr.bf16.mxu0 0
  %826 = vmatmul.mubr.bf16.gmra.mxu0 %v783
  %v827 = vpop.f32.mrf.mxu0
  %v828 = vadd.f32 %v767, %v827
  %v829 = vpop.f32.mrf.mxu0
  %v830 = vpop.f32.mrf.mxu0
  %v831 = vadd.f32 %v770, %v830
  %v832 = vpop.f32.mrf.mxu0
  %833 = vdwg.mxu0
  %836 = vrot.lane.b32.xlu0 %v343, 96
  %v837 = vpop.permute.xlu0 %836
  %838 = vrot.lane.b32.xlu0 %v344, 96
  %v839 = vpop.permute.xlu0 %838
  %v841 = vsel %vm355, %v343, 0
  %v844 = vsel %vm355, %v344, 0
  %v847 = vsel %vm355, %v837, 0
  %v850 = vsel %vm355, %v839, 0
  %852 = vmatprep.subr.bf16.mxu0 0
  %853 = vmatpush1.bf16.xpose.msra.mxu0 0
  %854 = vmatprep.subr.bf16.mxu0 0
  %855 = vmatpush1.bf16.xpose.msra.mxu0 0
  %856 = vmatprep.subr.bf16.mxu0 0
  %857 = vmatpush1.bf16.xpose.msra.mxu0 0
  %858 = vmatprep.subr.bf16.mxu0 0
  %859 = vmatpush1.bf16.xpose.msra.mxu0 0
  %860 = vmatprep.subr.bf16.mxu0 0
  %861 = vmatpush1.bf16.xpose.msra.mxu0 0
  %862 = vmatprep.subr.bf16.mxu0 0
  %863 = vmatpush1.bf16.xpose.msra.mxu0 0
  %864 = vmatprep.subr.bf16.mxu0 0
  %865 = vmatpush1.bf16.xpose.msra.mxu0 %v850
  %866 = vmatprep.subr.bf16.mxu0 0
  %867 = vmatpush1.bf16.xpose.msra.mxu0 %v847
  %868 = vmatprep.subr.bf16.mxu0 0
  %869 = vmatpush2.bf16.xpose.msra.mxu0 0
  %870 = vmatprep.subr.bf16.mxu0 0
  %871 = vmatpush2.bf16.xpose.msra.mxu0 0
  %872 = vmatprep.subr.bf16.mxu0 0
  %873 = vmatpush2.bf16.xpose.msra.mxu0 0
  %874 = vmatprep.subr.bf16.mxu0 0
  %875 = vmatpush2.bf16.xpose.msra.mxu0 0
  %876 = vmatprep.subr.bf16.mxu0 0
  %877 = vmatpush2.bf16.xpose.msra.mxu0 0
  %878 = vmatprep.subr.bf16.mxu0 0
  %879 = vmatpush2.bf16.xpose.msra.mxu0 0
  %880 = vmatprep.subr.bf16.mxu0 0
  %881 = vmatpush2.bf16.xpose.msra.mxu0 0
  %882 = vmatprep.subr.bf16.mxu0 0
  %883 = vmatpush2.bf16.xpose.msra.mxu0 0
  %884 = vmatprep.mubr.bf16.mxu0 0
  %885 = vmatmul.mubr.bf16.gmra.mxu0 %v841
  %v886 = vpop.f32.mrf.mxu0
  %v887 = vadd.f32 0.0, %v886
  %v888 = vpop.f32.mrf.mxu0
  %v889 = vpop.f32.mrf.mxu0
  %v890 = vadd.f32 0.0, %v889
  %v891 = vpop.f32.mrf.mxu0
  %892 = vmatprep.mubr.bf16.mxu0 0
  %893 = vmatmul.mubr.bf16.gmra.mxu0 %v844
  %v894 = vpop.f32.mrf.mxu0
  %v895 = vadd.f32 0.0, %v894
  %v896 = vpop.f32.mrf.mxu0
  %v897 = vpop.f32.mrf.mxu0
  %v898 = vadd.f32 0.0, %v897
  %v899 = vpop.f32.mrf.mxu0
  %900 = vdwg.mxu0
  %v901 = vmul.f32 %v887, 0.25
  %v902 = vmul.f32 %v890, 0.25
  %v903 = vmul.f32 %v895, 0.25
  %v904 = vmul.f32 %v898, 0.25
  %v905 = vsel %vm263, %v901, -inf
  %906 = vmax.xlane.f32.xlu0 %v905
  %v907 = vpop.xlane.xlu0 %906
  %v908 = vsel %vm263, %v902, -inf
  %909 = vmax.xlane.f32.xlu0 %v908
  %v910 = vpop.xlane.xlu0 %909
  %v911 = vsel %vm263, %v903, -inf
  %912 = vmax.xlane.f32.xlu0 %v911
  %v913 = vpop.xlane.xlu0 %912
  %v914 = vsel %vm263, %v904, -inf
  %915 = vmax.xlane.f32.xlu0 %v914
  %v916 = vpop.xlane.xlu0 %915
  %v917 = vsub.f32 %v901, %v907
  %v918 = vsub.f32 %v902, %v910
  %v919 = vsub.f32 %v903, %v913
  %v920 = vsub.f32 %v904, %v916
  %v921 = vmul.f32 %v917, 1.442695
  %v922 = vpow.pop %v921
  %v923 = vmul.f32 %v918, 1.442695
  %v924 = vpow.pop %v923
  %v925 = vmul.f32 %v919, 1.442695
  %v926 = vpow.pop %v925
  %v927 = vmul.f32 %v920, 1.442695
  %v928 = vpow.pop %v927
  %v929 = vsel %vm263, %v922, 0.0
  %930 = vadd.xlane.f32.xlu0 %v929
  %v931 = vpop.xlane.xlu0 %930
  %v932 = vsel %vm263, %v924, 0.0
  %933 = vadd.xlane.f32.xlu0 %v932
  %v934 = vpop.xlane.xlu0 %933
  %v935 = vsel %vm263, %v926, 0.0
  %936 = vadd.xlane.f32.xlu0 %v935
  %v937 = vpop.xlane.xlu0 %936
  %v938 = vsel %vm263, %v928, 0.0
  %939 = vadd.xlane.f32.xlu0 %v938
  %v940 = vpop.xlane.xlu0 %939
  %v941 = vrcp.pop %v931
  %v942 = vrcp.pop %v934
  %v943 = vrcp.pop %v937
  %v944 = vrcp.pop %v940
  %v945 = vmul.f32 %v922, %v941
  %v946 = vmul.f32 %v924, %v942
  %v947 = vmul.f32 %v926, %v943
  %v948 = vmul.f32 %v928, %v944
  %v949 = vpack.c.bf16 %v946, %v945
  %v950 = vpack.c.bf16 %v948, %v947
  %951 = vrot.lane.b32.xlu0 %v343, 64
  %v952 = vpop.permute.xlu0 %951
  %953 = vrot.lane.b32.xlu0 %v344, 64
  %v954 = vpop.permute.xlu0 %953
  %v958 = vsel %vm263, %v949, 0
  %v961 = vsel %vm263, %v950, 0
  %963 = vmatprep.subr.bf16.mxu0 0
  %964 = vmatpush1.bf16.msra.mxu0 0
  %965 = vmatprep.subr.bf16.mxu0 0
  %966 = vmatpush1.bf16.msra.mxu0 0
  %967 = vmatprep.subr.bf16.mxu0 0
  %968 = vmatpush1.bf16.msra.mxu0 0
  %969 = vmatprep.subr.bf16.mxu0 0
  %970 = vmatpush1.bf16.msra.mxu0 0
  %971 = vmatprep.subr.bf16.mxu0 0
  %972 = vmatpush1.bf16.msra.mxu0 0
  %973 = vmatprep.subr.bf16.mxu0 0
  %974 = vmatpush1.bf16.msra.mxu0 0
  %975 = vmatprep.subr.bf16.mxu0 0
  %976 = vmatpush1.bf16.msra.mxu0 %v954
  %977 = vmatprep.subr.bf16.mxu0 0
  %978 = vmatpush1.bf16.msra.mxu0 %v952
  %979 = vmatprep.subr.bf16.mxu0 0
  %980 = vmatpush2.bf16.msra.mxu0 0
  %981 = vmatprep.subr.bf16.mxu0 0
  %982 = vmatpush2.bf16.msra.mxu0 0
  %983 = vmatprep.subr.bf16.mxu0 0
  %984 = vmatpush2.bf16.msra.mxu0 0
  %985 = vmatprep.subr.bf16.mxu0 0
  %986 = vmatpush2.bf16.msra.mxu0 0
  %987 = vmatprep.subr.bf16.mxu0 0
  %988 = vmatpush2.bf16.msra.mxu0 0
  %989 = vmatprep.subr.bf16.mxu0 0
  %990 = vmatpush2.bf16.msra.mxu0 0
  %991 = vmatprep.subr.bf16.mxu0 0
  %992 = vmatpush2.bf16.msra.mxu0 0
  %993 = vmatprep.subr.bf16.mxu0 0
  %994 = vmatpush2.bf16.msra.mxu0 0
  %995 = vmatprep.mubr.bf16.mxu0 0
  %996 = vmatmul.mubr.bf16.gmra.mxu0 %v958
  %v997 = vpop.f32.mrf.mxu0
  %v998 = vadd.f32 0.0, %v997
  %v999 = vpop.f32.mrf.mxu0
  %v1000 = vpop.f32.mrf.mxu0
  %v1001 = vadd.f32 0.0, %v1000
  %v1002 = vpop.f32.mrf.mxu0
  %1003 = vmatprep.mubr.bf16.mxu0 0
  %1004 = vmatmul.mubr.bf16.gmra.mxu0 %v961
  %v1005 = vpop.f32.mrf.mxu0
  %v1006 = vadd.f32 0.0, %v1005
  %v1007 = vpop.f32.mrf.mxu0
  %v1008 = vpop.f32.mrf.mxu0
  %v1009 = vadd.f32 0.0, %v1008
  %v1010 = vpop.f32.mrf.mxu0
  %1011 = vdwg.mxu0
  %v1012 = vpack.c.bf16 %v1001, %v998
  %v1013 = vpack.c.bf16 %v1009, %v1006
  %1014 = vrot.lane.b32.xlu0 %v343, 112
  %v1015 = vpop.permute.xlu0 %1014
  %1016 = vrot.lane.b32.xlu0 %v344, 112
  %v1017 = vpop.permute.xlu0 %1016
  %1018 = vrot.lane.b32.xlu0 %v343, 80
  %v1019 = vpop.permute.xlu0 %1018
  %1020 = vrot.lane.b32.xlu0 %v344, 80
  %v1021 = vpop.permute.xlu0 %1020
  %v1023 = vsel %vm355, %v1015, 0
  %v1026 = vsel %vm355, %v1017, 0
  %v1029 = vsel %vm355, %v1019, 0
  %v1032 = vsel %vm355, %v1021, 0
  %1034 = vmatprep.subr.bf16.mxu0 0
  %1035 = vmatpush1.bf16.xpose.msra.mxu0 0
  %1036 = vmatprep.subr.bf16.mxu0 0
  %1037 = vmatpush1.bf16.xpose.msra.mxu0 0
  %1038 = vmatprep.subr.bf16.mxu0 0
  %1039 = vmatpush1.bf16.xpose.msra.mxu0 0
  %1040 = vmatprep.subr.bf16.mxu0 0
  %1041 = vmatpush1.bf16.xpose.msra.mxu0 0
  %1042 = vmatprep.subr.bf16.mxu0 0
  %1043 = vmatpush1.bf16.xpose.msra.mxu0 0
  %1044 = vmatprep.subr.bf16.mxu0 0
  %1045 = vmatpush1.bf16.xpose.msra.mxu0 0
  %1046 = vmatprep.subr.bf16.mxu0 0
  %1047 = vmatpush1.bf16.xpose.msra.mxu0 %v1032
  %1048 = vmatprep.subr.bf16.mxu0 0
  %1049 = vmatpush1.bf16.xpose.msra.mxu0 %v1029
  %1050 = vmatprep.subr.bf16.mxu0 0
  %1051 = vmatpush2.bf16.xpose.msra.mxu0 0
  %1052 = vmatprep.subr.bf16.mxu0 0
  %1053 = vmatpush2.bf16.xpose.msra.mxu0 0
  %1054 = vmatprep.subr.bf16.mxu0 0
  %1055 = vmatpush2.bf16.xpose.msra.mxu0 0
  %1056 = vmatprep.subr.bf16.mxu0 0
  %1057 = vmatpush2.bf16.xpose.msra.mxu0 0
  %1058 = vmatprep.subr.bf16.mxu0 0
  %1059 = vmatpush2.bf16.xpose.msra.mxu0 0
  %1060 = vmatprep.subr.bf16.mxu0 0
  %1061 = vmatpush2.bf16.xpose.msra.mxu0 0
  %1062 = vmatprep.subr.bf16.mxu0 0
  %1063 = vmatpush2.bf16.xpose.msra.mxu0 0
  %1064 = vmatprep.subr.bf16.mxu0 0
  %1065 = vmatpush2.bf16.xpose.msra.mxu0 0
  %1066 = vmatprep.mubr.bf16.mxu0 0
  %1067 = vmatmul.mubr.bf16.gmra.mxu0 %v1023
  %v1068 = vpop.f32.mrf.mxu0
  %v1069 = vadd.f32 0.0, %v1068
  %v1070 = vpop.f32.mrf.mxu0
  %v1071 = vpop.f32.mrf.mxu0
  %v1072 = vadd.f32 0.0, %v1071
  %v1073 = vpop.f32.mrf.mxu0
  %1074 = vmatprep.mubr.bf16.mxu0 0
  %1075 = vmatmul.mubr.bf16.gmra.mxu0 %v1026
  %v1076 = vpop.f32.mrf.mxu0
  %v1077 = vadd.f32 0.0, %v1076
  %v1078 = vpop.f32.mrf.mxu0
  %v1079 = vpop.f32.mrf.mxu0
  %v1080 = vadd.f32 0.0, %v1079
  %v1081 = vpop.f32.mrf.mxu0
  %1082 = vdwg.mxu0
  %v1083 = vmul.f32 %v1069, 0.25
  %v1084 = vmul.f32 %v1072, 0.25
  %v1085 = vmul.f32 %v1077, 0.25
  %v1086 = vmul.f32 %v1080, 0.25
  %v1087 = vsel %vm263, %v1083, -inf
  %1088 = vmax.xlane.f32.xlu0 %v1087
  %v1089 = vpop.xlane.xlu0 %1088
  %v1090 = vsel %vm263, %v1084, -inf
  %1091 = vmax.xlane.f32.xlu0 %v1090
  %v1092 = vpop.xlane.xlu0 %1091
  %v1093 = vsel %vm263, %v1085, -inf
  %1094 = vmax.xlane.f32.xlu0 %v1093
  %v1095 = vpop.xlane.xlu0 %1094
  %v1096 = vsel %vm263, %v1086, -inf
  %1097 = vmax.xlane.f32.xlu0 %v1096
  %v1098 = vpop.xlane.xlu0 %1097
  %v1099 = vsub.f32 %v1083, %v1089
  %v1100 = vsub.f32 %v1084, %v1092
  %v1101 = vsub.f32 %v1085, %v1095
  %v1102 = vsub.f32 %v1086, %v1098
  %v1103 = vmul.f32 %v1099, 1.442695
  %v1104 = vpow.pop %v1103
  %v1105 = vmul.f32 %v1100, 1.442695
  %v1106 = vpow.pop %v1105
  %v1107 = vmul.f32 %v1101, 1.442695
  %v1108 = vpow.pop %v1107
  %v1109 = vmul.f32 %v1102, 1.442695
  %v1110 = vpow.pop %v1109
  %v1111 = vsel %vm263, %v1104, 0.0
  %1112 = vadd.xlane.f32.xlu0 %v1111
  %v1113 = vpop.xlane.xlu0 %1112
  %v1114 = vsel %vm263, %v1106, 0.0
  %1115 = vadd.xlane.f32.xlu0 %v1114
  %v1116 = vpop.xlane.xlu0 %1115
  %v1117 = vsel %vm263, %v1108, 0.0
  %1118 = vadd.xlane.f32.xlu0 %v1117
  %v1119 = vpop.xlane.xlu0 %1118
  %v1120 = vsel %vm263, %v1110, 0.0
  %1121 = vadd.xlane.f32.xlu0 %v1120
  %v1122 = vpop.xlane.xlu0 %1121
  %v1123 = vrcp.pop %v1113
  %v1124 = vrcp.pop %v1116
  %v1125 = vrcp.pop %v1119
  %v1126 = vrcp.pop %v1122
  %v1127 = vmul.f32 %v1104, %v1123
  %v1128 = vmul.f32 %v1106, %v1124
  %v1129 = vmul.f32 %v1108, %v1125
  %v1130 = vmul.f32 %v1110, %v1126
  %v1131 = vpack.c.bf16 %v1128, %v1127
  %v1132 = vpack.c.bf16 %v1130, %v1129
  %1133 = vrot.lane.b32.xlu0 %v343, 48
  %v1134 = vpop.permute.xlu0 %1133
  %1135 = vrot.lane.b32.xlu0 %v344, 48
  %v1136 = vpop.permute.xlu0 %1135
  %v1140 = vsel %vm263, %v1131, 0
  %v1143 = vsel %vm263, %v1132, 0
  %1145 = vmatprep.subr.bf16.mxu0 0
  %1146 = vmatpush1.bf16.msra.mxu0 0
  %1147 = vmatprep.subr.bf16.mxu0 0
  %1148 = vmatpush1.bf16.msra.mxu0 0
  %1149 = vmatprep.subr.bf16.mxu0 0
  %1150 = vmatpush1.bf16.msra.mxu0 0
  %1151 = vmatprep.subr.bf16.mxu0 0
  %1152 = vmatpush1.bf16.msra.mxu0 0
  %1153 = vmatprep.subr.bf16.mxu0 0
  %1154 = vmatpush1.bf16.msra.mxu0 0
  %1155 = vmatprep.subr.bf16.mxu0 0
  %1156 = vmatpush1.bf16.msra.mxu0 0
  %1157 = vmatprep.subr.bf16.mxu0 0
  %1158 = vmatpush1.bf16.msra.mxu0 %v1136
  %1159 = vmatprep.subr.bf16.mxu0 0
  %1160 = vmatpush1.bf16.msra.mxu0 %v1134
  %1161 = vmatprep.subr.bf16.mxu0 0
  %1162 = vmatpush2.bf16.msra.mxu0 0
  %1163 = vmatprep.subr.bf16.mxu0 0
  %1164 = vmatpush2.bf16.msra.mxu0 0
  %1165 = vmatprep.subr.bf16.mxu0 0
  %1166 = vmatpush2.bf16.msra.mxu0 0
  %1167 = vmatprep.subr.bf16.mxu0 0
  %1168 = vmatpush2.bf16.msra.mxu0 0
  %1169 = vmatprep.subr.bf16.mxu0 0
  %1170 = vmatpush2.bf16.msra.mxu0 0
  %1171 = vmatprep.subr.bf16.mxu0 0
  %1172 = vmatpush2.bf16.msra.mxu0 0
  %1173 = vmatprep.subr.bf16.mxu0 0
  %1174 = vmatpush2.bf16.msra.mxu0 0
  %1175 = vmatprep.subr.bf16.mxu0 0
  %1176 = vmatpush2.bf16.msra.mxu0 0
  %1177 = vmatprep.mubr.bf16.mxu0 0
  %1178 = vmatmul.mubr.bf16.gmra.mxu0 %v1140
  %v1179 = vpop.f32.mrf.mxu0
  %v1180 = vadd.f32 0.0, %v1179
  %v1181 = vpop.f32.mrf.mxu0
  %v1182 = vpop.f32.mrf.mxu0
  %v1183 = vadd.f32 0.0, %v1182
  %v1184 = vpop.f32.mrf.mxu0
  %1185 = vmatprep.mubr.bf16.mxu0 0
  %1186 = vmatmul.mubr.bf16.gmra.mxu0 %v1143
  %v1187 = vpop.f32.mrf.mxu0
  %v1188 = vadd.f32 0.0, %v1187
  %v1189 = vpop.f32.mrf.mxu0
  %v1190 = vpop.f32.mrf.mxu0
  %v1191 = vadd.f32 0.0, %v1190
  %v1192 = vpop.f32.mrf.mxu0
  %1193 = vdwg.mxu0
  %v1194 = vpack.c.bf16 %v1183, %v1180
  %v1195 = vpack.c.bf16 %v1191, %v1188
  %v1197 = vsel %vm355, %v1194, 0
  %v1200 = vsel %vm355, %v1195, 0
  %1202 = vmatprep.subr.bf16.mxu0 0
  %1203 = vmatpush1.bf16.msra.mxu0 0
  %1204 = vmatprep.subr.bf16.mxu0 0
  %1205 = vmatpush1.bf16.msra.mxu0 0
  %1206 = vmatprep.subr.bf16.mxu0 0
  %1207 = vmatpush1.bf16.msra.mxu0 0
  %1208 = vmatprep.subr.bf16.mxu0 0
  %1209 = vmatpush1.bf16.msra.mxu0 0
  %1210 = vmatprep.subr.bf16.mxu0 0
  %1211 = vmatpush1.bf16.msra.mxu0 0
  %1212 = vmatprep.subr.bf16.mxu0 0
  %1213 = vmatpush1.bf16.msra.mxu0 0
  %1214 = vmatprep.subr.bf16.mxu0 0
  %1215 = vmatpush1.bf16.msra.mxu0 0
  %1216 = vmatprep.subr.bf16.mxu0 0
  %1217 = vmatpush1.bf16.msra.mxu0 %v716
  %1218 = vmatprep.subr.bf16.mxu0 0
  %1219 = vmatpush2.bf16.msra.mxu0 0
  %1220 = vmatprep.subr.bf16.mxu0 0
  %1221 = vmatpush2.bf16.msra.mxu0 0
  %1222 = vmatprep.subr.bf16.mxu0 0
  %1223 = vmatpush2.bf16.msra.mxu0 0
  %1224 = vmatprep.subr.bf16.mxu0 0
  %1225 = vmatpush2.bf16.msra.mxu0 0
  %1226 = vmatprep.subr.bf16.mxu0 0
  %1227 = vmatpush2.bf16.msra.mxu0 0
  %1228 = vmatprep.subr.bf16.mxu0 0
  %1229 = vmatpush2.bf16.msra.mxu0 0
  %1230 = vmatprep.subr.bf16.mxu0 0
  %1231 = vmatpush2.bf16.msra.mxu0 0
  %1232 = vmatprep.subr.bf16.mxu0 0
  %1233 = vmatpush2.bf16.msra.mxu0 0
  %1234 = vmatprep.mubr.bf16.mxu0 0
  %1235 = vmatmul.mubr.bf16.gmra.mxu0 %v1197
  %v1236 = vpop.f32.mrf.mxu0
  %v1237 = vadd.f32 0.0, %v1236
  %v1238 = vpop.f32.mrf.mxu0
  %v1239 = vpop.f32.mrf.mxu0
  %v1240 = vadd.f32 0.0, %v1239
  %v1241 = vpop.f32.mrf.mxu0
  %1242 = vmatprep.mubr.bf16.mxu0 0
  %1243 = vmatmul.mubr.bf16.gmra.mxu0 %v1200
  %v1244 = vpop.f32.mrf.mxu0
  %v1245 = vadd.f32 0.0, %v1244
  %v1246 = vpop.f32.mrf.mxu0
  %v1247 = vpop.f32.mrf.mxu0
  %v1248 = vadd.f32 0.0, %v1247
  %v1249 = vpop.f32.mrf.mxu0
  %1250 = vdwg.mxu0
  %v1252 = vsel %vm355, %v1012, 0
  %v1255 = vsel %vm355, %v1013, 0
  %1257 = vmatprep.subr.bf16.mxu0 0
  %1258 = vmatpush1.bf16.msra.mxu0 0
  %1259 = vmatprep.subr.bf16.mxu0 0
  %1260 = vmatpush1.bf16.msra.mxu0 0
  %1261 = vmatprep.subr.bf16.mxu0 0
  %1262 = vmatpush1.bf16.msra.mxu0 0
  %1263 = vmatprep.subr.bf16.mxu0 0
  %1264 = vmatpush1.bf16.msra.mxu0 0
  %1265 = vmatprep.subr.bf16.mxu0 0
  %1266 = vmatpush1.bf16.msra.mxu0 0
  %1267 = vmatprep.subr.bf16.mxu0 0
  %1268 = vmatpush1.bf16.msra.mxu0 0
  %1269 = vmatprep.subr.bf16.mxu0 0
  %1270 = vmatpush1.bf16.msra.mxu0 0
  %1271 = vmatprep.subr.bf16.mxu0 0
  %1272 = vmatpush1.bf16.msra.mxu0 %v777
  %1273 = vmatprep.subr.bf16.mxu0 0
  %1274 = vmatpush2.bf16.msra.mxu0 0
  %1275 = vmatprep.subr.bf16.mxu0 0
  %1276 = vmatpush2.bf16.msra.mxu0 0
  %1277 = vmatprep.subr.bf16.mxu0 0
  %1278 = vmatpush2.bf16.msra.mxu0 0
  %1279 = vmatprep.subr.bf16.mxu0 0
  %1280 = vmatpush2.bf16.msra.mxu0 0
  %1281 = vmatprep.subr.bf16.mxu0 0
  %1282 = vmatpush2.bf16.msra.mxu0 0
  %1283 = vmatprep.subr.bf16.mxu0 0
  %1284 = vmatpush2.bf16.msra.mxu0 0
  %1285 = vmatprep.subr.bf16.mxu0 0
  %1286 = vmatpush2.bf16.msra.mxu0 0
  %1287 = vmatprep.subr.bf16.mxu0 0
  %1288 = vmatpush2.bf16.msra.mxu0 0
  %1289 = vmatprep.mubr.bf16.mxu0 0
  %1290 = vmatmul.mubr.bf16.gmra.mxu0 %v1252
  %v1291 = vpop.f32.mrf.mxu0
  %v1292 = vadd.f32 %v1237, %v1291
  %v1293 = vpop.f32.mrf.mxu0
  %v1294 = vpop.f32.mrf.mxu0
  %v1295 = vadd.f32 %v1240, %v1294
  %v1296 = vpop.f32.mrf.mxu0
  %1297 = vmatprep.mubr.bf16.mxu0 0
  %1298 = vmatmul.mubr.bf16.gmra.mxu0 %v1255
  %v1299 = vpop.f32.mrf.mxu0
  %v1300 = vadd.f32 %v1245, %v1299
  %v1301 = vpop.f32.mrf.mxu0
  %v1302 = vpop.f32.mrf.mxu0
  %v1303 = vadd.f32 %v1248, %v1302
  %v1304 = vpop.f32.mrf.mxu0
  %1305 = vdwg.mxu0
  %v1306 = vld [vmem:[%s7] sm:$0x1]
  %v1308 = vlaneseq
  %v1309 = vshrl.u32 %v1308, 7
  %v1310 = vsub.s32 0, %v1309
  %v1311 = vrot.slane %v1306, %v1310
  %v1313 = vadd.f32 %v820, %v1311
  %v1314 = vadd.f32 %v823, %v1311
  %v1315 = vadd.f32 %v828, %v1311
  %v1316 = vadd.f32 %v831, %v1311
  %v1317 = vadd.f32 %v1292, %v1311
  %v1318 = vadd.f32 %v1295, %v1311
  %v1319 = vadd.f32 %v1300, %v1311
  %v1320 = vadd.f32 %v1303, %v1311
  %v1321 = vadd.f32 %v228, %v1313
  %v1322 = vadd.f32 %v229, %v1314
  %v1323 = vadd.f32 %v230, %v1315
  %v1324 = vadd.f32 %v231, %v1316
  %v1325 = vadd.f32 %v232, %v1317
  %v1326 = vadd.f32 %v233, %v1318
  %v1327 = vadd.f32 %v234, %v1319
  %v1328 = vadd.f32 %v235, %v1320
  %v1329 = vld [vmem:[%s8] sm:$0x1]
  %v1330 = vld [vmem:[%s9] sm:$0x1]
  %v1331 = vsel %vm263, %v1321, 0.0
  %1332 = vadd.xlane.f32.xlu0 %v1331
  %v1333 = vpop.xlane.xlu0 %1332
  %v1334 = vsel %vm263, %v1322, 0.0
  %1335 = vadd.xlane.f32.xlu0 %v1334
  %v1336 = vpop.xlane.xlu0 %1335
  %v1337 = vsel %vm263, %v1323, 0.0
  %1338 = vadd.xlane.f32.xlu0 %v1337
  %v1339 = vpop.xlane.xlu0 %1338
  %v1340 = vsel %vm263, %v1324, 0.0
  %1341 = vadd.xlane.f32.xlu0 %v1340
  %v1342 = vpop.xlane.xlu0 %1341
  %v1343 = vsel %vm263, %v1325, 0.0
  %1344 = vadd.xlane.f32.xlu0 %v1343
  %v1345 = vpop.xlane.xlu0 %1344
  %v1346 = vsel %vm263, %v1326, 0.0
  %1347 = vadd.xlane.f32.xlu0 %v1346
  %v1348 = vpop.xlane.xlu0 %1347
  %v1349 = vsel %vm263, %v1327, 0.0
  %1350 = vadd.xlane.f32.xlu0 %v1349
  %v1351 = vpop.xlane.xlu0 %1350
  %v1352 = vsel %vm263, %v1328, 0.0
  %1353 = vadd.xlane.f32.xlu0 %v1352
  %v1354 = vpop.xlane.xlu0 %1353
  %v1355 = vrcp.pop 32.0
  %v1356 = vmul.f32 %v1333, %v1355
  %v1357 = vmul.f32 %v1336, %v1355
  %v1358 = vmul.f32 %v1339, %v1355
  %v1359 = vmul.f32 %v1342, %v1355
  %v1360 = vmul.f32 %v1345, %v1355
  %v1361 = vmul.f32 %v1348, %v1355
  %v1362 = vmul.f32 %v1351, %v1355
  %v1363 = vmul.f32 %v1354, %v1355
  %v1364 = vsub.f32 %v1321, %v1356
  %v1365 = vsub.f32 %v1322, %v1357
  %v1366 = vsub.f32 %v1323, %v1358
  %v1367 = vsub.f32 %v1324, %v1359
  %v1368 = vsub.f32 %v1325, %v1360
  %v1369 = vsub.f32 %v1326, %v1361
  %v1370 = vsub.f32 %v1327, %v1362
  %v1371 = vsub.f32 %v1328, %v1363
  %v1372 = vmul.f32 %v1364, %v1364
  %v1373 = vmul.f32 %v1365, %v1365
  %v1374 = vmul.f32 %v1366, %v1366
  %v1375 = vmul.f32 %v1367, %v1367
  %v1376 = vmul.f32 %v1368, %v1368
  %v1377 = vmul.f32 %v1369, %v1369
  %v1378 = vmul.f32 %v1370, %v1370
  %v1379 = vmul.f32 %v1371, %v1371
  %v1380 = vsel %vm263, %v1372, 0.0
  %1381 = vadd.xlane.f32.xlu0 %v1380
  %v1382 = vpop.xlane.xlu0 %1381
  %v1383 = vsel %vm263, %v1373, 0.0
  %1384 = vadd.xlane.f32.xlu0 %v1383
  %v1385 = vpop.xlane.xlu0 %1384
  %v1386 = vsel %vm263, %v1374, 0.0
  %1387 = vadd.xlane.f32.xlu0 %v1386
  %v1388 = vpop.xlane.xlu0 %1387
  %v1389 = vsel %vm263, %v1375, 0.0
  %1390 = vadd.xlane.f32.xlu0 %v1389
  %v1391 = vpop.xlane.xlu0 %1390
  %v1392 = vsel %vm263, %v1376, 0.0
  %1393 = vadd.xlane.f32.xlu0 %v1392
  %v1394 = vpop.xlane.xlu0 %1393
  %v1395 = vsel %vm263, %v1377, 0.0
  %1396 = vadd.xlane.f32.xlu0 %v1395
  %v1397 = vpop.xlane.xlu0 %1396
  %v1398 = vsel %vm263, %v1378, 0.0
  %1399 = vadd.xlane.f32.xlu0 %v1398
  %v1400 = vpop.xlane.xlu0 %1399
  %v1401 = vsel %vm263, %v1379, 0.0
  %1402 = vadd.xlane.f32.xlu0 %v1401
  %v1403 = vpop.xlane.xlu0 %1402
  %v1404 = vmul.f32 %v1382, %v1355
  %v1405 = vmul.f32 %v1385, %v1355
  %v1406 = vmul.f32 %v1388, %v1355
  %v1407 = vmul.f32 %v1391, %v1355
  %v1408 = vmul.f32 %v1394, %v1355
  %v1409 = vmul.f32 %v1397, %v1355
  %v1410 = vmul.f32 %v1400, %v1355
  %v1411 = vmul.f32 %v1403, %v1355
  %v1412 = vadd.f32 %v1404, 1e-05
  %v1413 = vadd.f32 %v1405, 1e-05
  %v1414 = vadd.f32 %v1406, 1e-05
  %v1415 = vadd.f32 %v1407, 1e-05
  %v1416 = vadd.f32 %v1408, 1e-05
  %v1417 = vadd.f32 %v1409, 1e-05
  %v1418 = vadd.f32 %v1410, 1e-05
  %v1419 = vadd.f32 %v1411, 1e-05
  %v1420 = vrsqrt.pop %v1412
  %v1421 = vrsqrt.pop %v1413
  %v1422 = vrsqrt.pop %v1414
  %v1423 = vrsqrt.pop %v1415
  %v1424 = vrsqrt.pop %v1416
  %v1425 = vrsqrt.pop %v1417
  %v1426 = vrsqrt.pop %v1418
  %v1427 = vrsqrt.pop %v1419
  %v1428 = vmul.f32 %v1364, %v1420
  %v1429 = vmul.f32 %v1365, %v1421
  %v1430 = vmul.f32 %v1366, %v1422
  %v1431 = vmul.f32 %v1367, %v1423
  %v1432 = vmul.f32 %v1368, %v1424
  %v1433 = vmul.f32 %v1369, %v1425
  %v1434 = vmul.f32 %v1370, %v1426
  %v1435 = vmul.f32 %v1371, %v1427
  %v1437 = vlaneseq
  %v1438 = vshrl.u32 %v1437, 7
  %v1439 = vsub.s32 0, %v1438
  %v1440 = vrot.slane %v1329, %v1439
  %v1442 = vmul.f32 %v1428, %v1440
  %v1443 = vmul.f32 %v1429, %v1440
  %v1444 = vmul.f32 %v1430, %v1440
  %v1445 = vmul.f32 %v1431, %v1440
  %v1446 = vmul.f32 %v1432, %v1440
  %v1447 = vmul.f32 %v1433, %v1440
  %v1448 = vmul.f32 %v1434, %v1440
  %v1449 = vmul.f32 %v1435, %v1440
  %v1451 = vlaneseq
  %v1452 = vshrl.u32 %v1451, 7
  %v1453 = vsub.s32 0, %v1452
  %v1454 = vrot.slane %v1330, %v1453
  %v1456 = vadd.f32 %v1442, %v1454
  %v1457 = vadd.f32 %v1443, %v1454
  %v1458 = vadd.f32 %v1444, %v1454
  %v1459 = vadd.f32 %v1445, %v1454
  %v1460 = vadd.f32 %v1446, %v1454
  %v1461 = vadd.f32 %v1447, %v1454
  %v1462 = vadd.f32 %v1448, %v1454
  %v1463 = vadd.f32 %v1449, %v1454
  %v1464 = vpack.c.bf16 %v1457, %v1456
  %v1465 = vpack.c.bf16 %v1459, %v1458
  %v1466 = vpack.c.bf16 %v1461, %v1460
  %v1467 = vpack.c.bf16 %v1463, %v1462
  %v1468 = vld [vmem:[%s10] sm:$0xf]
  %v1469 = vld [vmem:[%s10 + $0x4] sm:$0xf]
  %v1470 = vld [vmem:[%s10 + $0x8] sm:$0xf]
  %v1471 = vld [vmem:[%s10 + $0xc] sm:$0xf]
  %v1472 = vld [vmem:[%s11] sm:$0x1]
  %v1474 = vlaneseq
  %v1475 = vshrl.u32 %v1474, 7
  %v1476 = vsub.s32 0, %v1475
  %v1477 = vrot.slane %v1472, %v1476
  %v1483 = vunpack.c.l.b16 %v1468
  %v1484 = vunpack.c.l.b16 %v1469
  %v1485 = vunpack.c.l.b16 %v1470
  %v1486 = vunpack.c.l.b16 %v1471
  %v1487 = vpack.c.b16 %v1484, %v1483
  %v1488 = vpack.c.b16 %v1486, %v1485
  %v1492 = vsel %vm263, %v1464, 0
  %v1495 = vsel %vm263, %v1465, 0
  %v1498 = vsel %vm263, %v1466, 0
  %v1501 = vsel %vm263, %v1467, 0
  %1503 = vmatprep.subr.bf16.mxu0 0
  %1504 = vmatpush1.bf16.msra.mxu0 0
  %1505 = vmatprep.subr.bf16.mxu0 0
  %1506 = vmatpush1.bf16.msra.mxu0 0
  %1507 = vmatprep.subr.bf16.mxu0 0
  %1508 = vmatpush1.bf16.msra.mxu0 0
  %1509 = vmatprep.subr.bf16.mxu0 0
  %1510 = vmatpush1.bf16.msra.mxu0 0
  %1511 = vmatprep.subr.bf16.mxu0 0
  %1512 = vmatpush1.bf16.msra.mxu0 0
  %1513 = vmatprep.subr.bf16.mxu0 0
  %1514 = vmatpush1.bf16.msra.mxu0 0
  %1515 = vmatprep.subr.bf16.mxu0 0
  %1516 = vmatpush1.bf16.msra.mxu0 %v1488
  %1517 = vmatprep.subr.bf16.mxu0 0
  %1518 = vmatpush1.bf16.msra.mxu0 %v1487
  %1519 = vmatprep.subr.bf16.mxu0 0
  %1520 = vmatpush2.bf16.msra.mxu0 0
  %1521 = vmatprep.subr.bf16.mxu0 0
  %1522 = vmatpush2.bf16.msra.mxu0 0
  %1523 = vmatprep.subr.bf16.mxu0 0
  %1524 = vmatpush2.bf16.msra.mxu0 0
  %1525 = vmatprep.subr.bf16.mxu0 0
  %1526 = vmatpush2.bf16.msra.mxu0 0
  %1527 = vmatprep.subr.bf16.mxu0 0
  %1528 = vmatpush2.bf16.msra.mxu0 0
  %1529 = vmatprep.subr.bf16.mxu0 0
  %1530 = vmatpush2.bf16.msra.mxu0 0
  %1531 = vmatprep.subr.bf16.mxu0 0
  %1532 = vmatpush2.bf16.msra.mxu0 0
  %1533 = vmatprep.subr.bf16.mxu0 0
  %1534 = vmatpush2.bf16.msra.mxu0 0
  %1535 = vmatprep.mubr.bf16.mxu0 0
  %1536 = vmatmul.mubr.bf16.gmra.mxu0 %v1492
  %v1537 = vpop.f32.mrf.mxu0
  %v1538 = vadd.f32 %v1477, %v1537
  %v1539 = vpop.f32.mrf.mxu0
  %v1540 = vpop.f32.mrf.mxu0
  %v1541 = vadd.f32 %v1477, %v1540
  %v1542 = vpop.f32.mrf.mxu0
  %1543 = vmatprep.mubr.bf16.mxu0 0
  %1544 = vmatmul.mubr.bf16.gmra.mxu0 %v1495
  %v1545 = vpop.f32.mrf.mxu0
  %v1546 = vadd.f32 %v1477, %v1545
  %v1547 = vpop.f32.mrf.mxu0
  %v1548 = vpop.f32.mrf.mxu0
  %v1549 = vadd.f32 %v1477, %v1548
  %v1550 = vpop.f32.mrf.mxu0
  %1551 = vmatprep.mubr.bf16.mxu0 0
  %1552 = vmatmul.mubr.bf16.gmra.mxu0 %v1498
  %v1553 = vpop.f32.mrf.mxu0
  %v1554 = vadd.f32 %v1477, %v1553
  %v1555 = vpop.f32.mrf.mxu0
  %v1556 = vpop.f32.mrf.mxu0
  %v1557 = vadd.f32 %v1477, %v1556
  %v1558 = vpop.f32.mrf.mxu0
  %1559 = vmatprep.mubr.bf16.mxu0 0
  %1560 = vmatmul.mubr.bf16.gmra.mxu0 %v1501
  %v1561 = vpop.f32.mrf.mxu0
  %v1562 = vadd.f32 %v1477, %v1561
  %v1563 = vpop.f32.mrf.mxu0
  %v1564 = vpop.f32.mrf.mxu0
  %v1565 = vadd.f32 %v1477, %v1564
  %v1566 = vpop.f32.mrf.mxu0
  %1567 = vdwg.mxu0
  %v1568 = vmax.f32 %v1538, 0.0
  %v1569 = vmax.f32 %v1541, 0.0
  %v1570 = vmax.f32 %v1546, 0.0
  %v1571 = vmax.f32 %v1549, 0.0
  %v1572 = vmax.f32 %v1554, 0.0
  %v1573 = vmax.f32 %v1557, 0.0
  %v1574 = vmax.f32 %v1562, 0.0
  %v1575 = vmax.f32 %v1565, 0.0
  %v1576 = vpack.c.bf16 %v1569, %v1568
  %v1577 = vpack.c.bf16 %v1571, %v1570
  %v1578 = vpack.c.bf16 %v1573, %v1572
  %v1579 = vpack.c.bf16 %v1575, %v1574
  %v1580 = vld [vmem:[%s12] sm:$0xf]
  %v1581 = vld [vmem:[%s12 + $0x4] sm:$0xf]
  %v1582 = vld [vmem:[%s12 + $0x8] sm:$0xf]
  %v1583 = vld [vmem:[%s12 + $0xc] sm:$0xf]
  %v1584 = vld [vmem:[%s12 + $0x10] sm:$0xf]
  %v1585 = vld [vmem:[%s12 + $0x14] sm:$0xf]
  %v1586 = vld [vmem:[%s12 + $0x18] sm:$0xf]
  %v1587 = vld [vmem:[%s12 + $0x1c] sm:$0xf]
  %v1588 = vld [vmem:[%s12 + $0x20] sm:$0xf]
  %v1589 = vld [vmem:[%s12 + $0x24] sm:$0xf]
  %v1590 = vld [vmem:[%s12 + $0x28] sm:$0xf]
  %v1591 = vld [vmem:[%s12 + $0x2c] sm:$0xf]
  %v1592 = vld [vmem:[%s12 + $0x30] sm:$0xf]
  %v1593 = vld [vmem:[%s12 + $0x34] sm:$0xf]
  %v1594 = vld [vmem:[%s12 + $0x38] sm:$0xf]
  %v1595 = vld [vmem:[%s12 + $0x3c] sm:$0xf]
  %v1596 = vld [vmem:[%s13] sm:$0x1]
  %v1598 = vlaneseq
  %v1599 = vshrl.u32 %v1598, 7
  %v1600 = vsub.s32 0, %v1599
  %v1601 = vrot.slane %v1596, %v1600
  %v1619 = vunpack.c.l.b16 %v1580
  %v1620 = vunpack.c.l.b16 %v1581
  %v1621 = vunpack.c.l.b16 %v1582
  %v1622 = vunpack.c.l.b16 %v1583
  %v1623 = vunpack.c.l.b16 %v1584
  %v1624 = vunpack.c.l.b16 %v1585
  %v1625 = vunpack.c.l.b16 %v1586
  %v1626 = vunpack.c.l.b16 %v1587
  %v1627 = vunpack.c.l.b16 %v1588
  %v1628 = vunpack.c.l.b16 %v1589
  %v1629 = vunpack.c.l.b16 %v1590
  %v1630 = vunpack.c.l.b16 %v1591
  %v1631 = vunpack.c.l.b16 %v1592
  %v1632 = vunpack.c.l.b16 %v1593
  %v1633 = vunpack.c.l.b16 %v1594
  %v1634 = vunpack.c.l.b16 %v1595
  %v1635 = vpack.c.b16 %v1620, %v1619
  %v1636 = vpack.c.b16 %v1622, %v1621
  %v1637 = vpack.c.b16 %v1624, %v1623
  %v1638 = vpack.c.b16 %v1626, %v1625
  %v1639 = vpack.c.b16 %v1628, %v1627
  %v1640 = vpack.c.b16 %v1630, %v1629
  %v1641 = vpack.c.b16 %v1632, %v1631
  %v1642 = vpack.c.b16 %v1634, %v1633
  %1651 = vmatprep.subr.bf16.mxu0 0
  %1652 = vmatpush1.bf16.msra.mxu0 %v1642
  %1653 = vmatprep.subr.bf16.mxu0 0
  %1654 = vmatpush1.bf16.msra.mxu0 %v1641
  %1655 = vmatprep.subr.bf16.mxu0 0
  %1656 = vmatpush1.bf16.msra.mxu0 %v1640
  %1657 = vmatprep.subr.bf16.mxu0 0
  %1658 = vmatpush1.bf16.msra.mxu0 %v1639
  %1659 = vmatprep.subr.bf16.mxu0 0
  %1660 = vmatpush1.bf16.msra.mxu0 %v1638
  %1661 = vmatprep.subr.bf16.mxu0 0
  %1662 = vmatpush1.bf16.msra.mxu0 %v1637
  %1663 = vmatprep.subr.bf16.mxu0 0
  %1664 = vmatpush1.bf16.msra.mxu0 %v1636
  %1665 = vmatprep.subr.bf16.mxu0 0
  %1666 = vmatpush1.bf16.msra.mxu0 %v1635
  %1667 = vmatprep.subr.bf16.mxu0 0
  %1668 = vmatpush2.bf16.msra.mxu0 0
  %1669 = vmatprep.subr.bf16.mxu0 0
  %1670 = vmatpush2.bf16.msra.mxu0 0
  %1671 = vmatprep.subr.bf16.mxu0 0
  %1672 = vmatpush2.bf16.msra.mxu0 0
  %1673 = vmatprep.subr.bf16.mxu0 0
  %1674 = vmatpush2.bf16.msra.mxu0 0
  %1675 = vmatprep.subr.bf16.mxu0 0
  %1676 = vmatpush2.bf16.msra.mxu0 0
  %1677 = vmatprep.subr.bf16.mxu0 0
  %1678 = vmatpush2.bf16.msra.mxu0 0
  %1679 = vmatprep.subr.bf16.mxu0 0
  %1680 = vmatpush2.bf16.msra.mxu0 0
  %1681 = vmatprep.subr.bf16.mxu0 0
  %1682 = vmatpush2.bf16.msra.mxu0 0
  %1683 = vmatprep.mubr.bf16.mxu0 0
  %1684 = vmatmul.mubr.bf16.gmra.mxu0 %v1576
  %v1685 = vpop.f32.mrf.mxu0
  %v1686 = vadd.f32 %v1601, %v1685
  %v1687 = vpop.f32.mrf.mxu0
  %v1688 = vpop.f32.mrf.mxu0
  %v1689 = vadd.f32 %v1601, %v1688
  %v1690 = vpop.f32.mrf.mxu0
  %1691 = vmatprep.mubr.bf16.mxu0 0
  %1692 = vmatmul.mubr.bf16.gmra.mxu0 %v1577
  %v1693 = vpop.f32.mrf.mxu0
  %v1694 = vadd.f32 %v1601, %v1693
  %v1695 = vpop.f32.mrf.mxu0
  %v1696 = vpop.f32.mrf.mxu0
  %v1697 = vadd.f32 %v1601, %v1696
  %v1698 = vpop.f32.mrf.mxu0
  %1699 = vmatprep.mubr.bf16.mxu0 0
  %1700 = vmatmul.mubr.bf16.gmra.mxu0 %v1578
  %v1701 = vpop.f32.mrf.mxu0
  %v1702 = vadd.f32 %v1601, %v1701
  %v1703 = vpop.f32.mrf.mxu0
  %v1704 = vpop.f32.mrf.mxu0
  %v1705 = vadd.f32 %v1601, %v1704
  %v1706 = vpop.f32.mrf.mxu0
  %1707 = vmatprep.mubr.bf16.mxu0 0
  %1708 = vmatmul.mubr.bf16.gmra.mxu0 %v1579
  %v1709 = vpop.f32.mrf.mxu0
  %v1710 = vadd.f32 %v1601, %v1709
  %v1711 = vpop.f32.mrf.mxu0
  %v1712 = vpop.f32.mrf.mxu0
  %v1713 = vadd.f32 %v1601, %v1712
  %v1714 = vpop.f32.mrf.mxu0
  %1715 = vdwg.mxu0
  %v1716 = vadd.f32 %v1456, %v1686
  %v1717 = vadd.f32 %v1457, %v1689
  %v1718 = vadd.f32 %v1458, %v1694
  %v1719 = vadd.f32 %v1459, %v1697
  %v1720 = vadd.f32 %v1460, %v1702
  %v1721 = vadd.f32 %v1461, %v1705
  %v1722 = vadd.f32 %v1462, %v1710
  %v1723 = vadd.f32 %v1463, %v1713
  %v1724 = vld [vmem:[%s14] sm:$0x1]
  %v1725 = vld [vmem:[%s15] sm:$0x1]
  %v1726 = vsel %vm263, %v1716, 0.0
  %1727 = vadd.xlane.f32.xlu0 %v1726
  %v1728 = vpop.xlane.xlu0 %1727
  %v1729 = vsel %vm263, %v1717, 0.0
  %1730 = vadd.xlane.f32.xlu0 %v1729
  %v1731 = vpop.xlane.xlu0 %1730
  %v1732 = vsel %vm263, %v1718, 0.0
  %1733 = vadd.xlane.f32.xlu0 %v1732
  %v1734 = vpop.xlane.xlu0 %1733
  %v1735 = vsel %vm263, %v1719, 0.0
  %1736 = vadd.xlane.f32.xlu0 %v1735
  %v1737 = vpop.xlane.xlu0 %1736
  %v1738 = vsel %vm263, %v1720, 0.0
  %1739 = vadd.xlane.f32.xlu0 %v1738
  %v1740 = vpop.xlane.xlu0 %1739
  %v1741 = vsel %vm263, %v1721, 0.0
  %1742 = vadd.xlane.f32.xlu0 %v1741
  %v1743 = vpop.xlane.xlu0 %1742
  %v1744 = vsel %vm263, %v1722, 0.0
  %1745 = vadd.xlane.f32.xlu0 %v1744
  %v1746 = vpop.xlane.xlu0 %1745
  %v1747 = vsel %vm263, %v1723, 0.0
  %1748 = vadd.xlane.f32.xlu0 %v1747
  %v1749 = vpop.xlane.xlu0 %1748
  %v1750 = vmul.f32 %v1728, %v1355
  %v1751 = vmul.f32 %v1731, %v1355
  %v1752 = vmul.f32 %v1734, %v1355
  %v1753 = vmul.f32 %v1737, %v1355
  %v1754 = vmul.f32 %v1740, %v1355
  %v1755 = vmul.f32 %v1743, %v1355
  %v1756 = vmul.f32 %v1746, %v1355
  %v1757 = vmul.f32 %v1749, %v1355
  %v1758 = vsub.f32 %v1716, %v1750
  %v1759 = vsub.f32 %v1717, %v1751
  %v1760 = vsub.f32 %v1718, %v1752
  %v1761 = vsub.f32 %v1719, %v1753
  %v1762 = vsub.f32 %v1720, %v1754
  %v1763 = vsub.f32 %v1721, %v1755
  %v1764 = vsub.f32 %v1722, %v1756
  %v1765 = vsub.f32 %v1723, %v1757
  %v1766 = vmul.f32 %v1758, %v1758
  %v1767 = vmul.f32 %v1759, %v1759
  %v1768 = vmul.f32 %v1760, %v1760
  %v1769 = vmul.f32 %v1761, %v1761
  %v1770 = vmul.f32 %v1762, %v1762
  %v1771 = vmul.f32 %v1763, %v1763
  %v1772 = vmul.f32 %v1764, %v1764
  %v1773 = vmul.f32 %v1765, %v1765
  %v1774 = vsel %vm263, %v1766, 0.0
  %1775 = vadd.xlane.f32.xlu0 %v1774
  %v1776 = vpop.xlane.xlu0 %1775
  %v1777 = vsel %vm263, %v1767, 0.0
  %1778 = vadd.xlane.f32.xlu0 %v1777
  %v1779 = vpop.xlane.xlu0 %1778
  %v1780 = vsel %vm263, %v1768, 0.0
  %1781 = vadd.xlane.f32.xlu0 %v1780
  %v1782 = vpop.xlane.xlu0 %1781
  %v1783 = vsel %vm263, %v1769, 0.0
  %1784 = vadd.xlane.f32.xlu0 %v1783
  %v1785 = vpop.xlane.xlu0 %1784
  %v1786 = vsel %vm263, %v1770, 0.0
  %1787 = vadd.xlane.f32.xlu0 %v1786
  %v1788 = vpop.xlane.xlu0 %1787
  %v1789 = vsel %vm263, %v1771, 0.0
  %1790 = vadd.xlane.f32.xlu0 %v1789
  %v1791 = vpop.xlane.xlu0 %1790
  %v1792 = vsel %vm263, %v1772, 0.0
  %1793 = vadd.xlane.f32.xlu0 %v1792
  %v1794 = vpop.xlane.xlu0 %1793
  %v1795 = vsel %vm263, %v1773, 0.0
  %1796 = vadd.xlane.f32.xlu0 %v1795
  %v1797 = vpop.xlane.xlu0 %1796
  %v1798 = vmul.f32 %v1776, %v1355
  %v1799 = vmul.f32 %v1779, %v1355
  %v1800 = vmul.f32 %v1782, %v1355
  %v1801 = vmul.f32 %v1785, %v1355
  %v1802 = vmul.f32 %v1788, %v1355
  %v1803 = vmul.f32 %v1791, %v1355
  %v1804 = vmul.f32 %v1794, %v1355
  %v1805 = vmul.f32 %v1797, %v1355
  %v1806 = vadd.f32 %v1798, 1e-05
  %v1807 = vadd.f32 %v1799, 1e-05
  %v1808 = vadd.f32 %v1800, 1e-05
  %v1809 = vadd.f32 %v1801, 1e-05
  %v1810 = vadd.f32 %v1802, 1e-05
  %v1811 = vadd.f32 %v1803, 1e-05
  %v1812 = vadd.f32 %v1804, 1e-05
  %v1813 = vadd.f32 %v1805, 1e-05
  %v1814 = vrsqrt.pop %v1806
  %v1815 = vrsqrt.pop %v1807
  %v1816 = vrsqrt.pop %v1808
  %v1817 = vrsqrt.pop %v1809
  %v1818 = vrsqrt.pop %v1810
  %v1819 = vrsqrt.pop %v1811
  %v1820 = vrsqrt.pop %v1812
  %v1821 = vrsqrt.pop %v1813
  %v1822 = vmul.f32 %v1758, %v1814
  %v1823 = vmul.f32 %v1759, %v1815
  %v1824 = vmul.f32 %v1760, %v1816
  %v1825 = vmul.f32 %v1761, %v1817
  %v1826 = vmul.f32 %v1762, %v1818
  %v1827 = vmul.f32 %v1763, %v1819
  %v1828 = vmul.f32 %v1764, %v1820
  %v1829 = vmul.f32 %v1765, %v1821
  %v1831 = vlaneseq
  %v1832 = vshrl.u32 %v1831, 7
  %v1833 = vsub.s32 0, %v1832
  %v1834 = vrot.slane %v1724, %v1833
  %v1836 = vmul.f32 %v1822, %v1834
  %v1837 = vmul.f32 %v1823, %v1834
  %v1838 = vmul.f32 %v1824, %v1834
  %v1839 = vmul.f32 %v1825, %v1834
  %v1840 = vmul.f32 %v1826, %v1834
  %v1841 = vmul.f32 %v1827, %v1834
  %v1842 = vmul.f32 %v1828, %v1834
  %v1843 = vmul.f32 %v1829, %v1834
  %v1845 = vlaneseq
  %v1846 = vshrl.u32 %v1845, 7
  %v1847 = vsub.s32 0, %v1846
  %v1848 = vrot.slane %v1725, %v1847
  %v1850 = vadd.f32 %v1836, %v1848
  %v1851 = vadd.f32 %v1837, %v1848
  %v1852 = vadd.f32 %v1838, %v1848
  %v1853 = vadd.f32 %v1839, %v1848
  %v1854 = vadd.f32 %v1840, %v1848
  %v1855 = vadd.f32 %v1841, %v1848
  %v1856 = vadd.f32 %v1842, %v1848
  %v1857 = vadd.f32 %v1843, %v1848
  %v1858 = vld [vmem:[%s16] sm:$0xf]
  %v1859 = vld [vmem:[%s16 + $0x4] sm:$0xf]
  %v1860 = vld [vmem:[%s16 + $0x8] sm:$0xf]
  %v1861 = vld [vmem:[%s16 + $0xc] sm:$0xf]
  %v1862 = vld [vmem:[%s17] sm:$0xf]
  %v1863 = vld [vmem:[%s17 + $0x4] sm:$0xf]
  %v1864 = vld [vmem:[%s17 + $0x8] sm:$0xf]
  %v1865 = vld [vmem:[%s17 + $0xc] sm:$0xf]
  %v1866 = vld [vmem:[%s18] sm:$0xf]
  %v1867 = vld [vmem:[%s18 + $0x4] sm:$0xf]
  %v1868 = vld [vmem:[%s18 + $0x8] sm:$0xf]
  %v1869 = vld [vmem:[%s18 + $0xc] sm:$0xf]
  %v1870 = vld [vmem:[%s19] sm:$0x1]
  %v1872 = vlaneseq
  %v1873 = vshrl.u32 %v1872, 7
  %v1874 = vsub.s32 0, %v1873
  %v1875 = vrot.slane %v1870, %v1874
  %v1877 = vld [vmem:[%s20] sm:$0xf]
  %v1878 = vld [vmem:[%s20 + $0x4] sm:$0xf]
  %v1879 = vld [vmem:[%s20 + $0x8] sm:$0xf]
  %v1880 = vld [vmem:[%s20 + $0xc] sm:$0xf]
  %v1881 = vld [vmem:[%s22] sm:$0xf]
  %v1882 = vld [vmem:[%s22 + $0x4] sm:$0xf]
  %v1883 = vld [vmem:[%s22 + $0x8] sm:$0xf]
  %v1884 = vld [vmem:[%s22 + $0xc] sm:$0xf]
  %v1885 = vld [vmem:[%s21] sm:$0x1]
  %v1887 = vlaneseq
  %v1888 = vshrl.u32 %v1887, 7
  %v1889 = vsub.s32 0, %v1888
  %v1890 = vrot.slane %v1885, %v1889
  %v1892 = vld [vmem:[%s23] sm:$0x1]
  %v1894 = vlaneseq
  %v1895 = vshrl.u32 %v1894, 7
  %v1896 = vsub.s32 0, %v1895
  %v1897 = vrot.slane %v1892, %v1896
  %v1899 = vld [vmem:[%s1] sm:$0xff]
  %v1900 = vld [vmem:[%s1 + $0x8] sm:$0xff]
  %v1901 = vld [vmem:[%s1 + $0x10] sm:$0xff]
  %v1902 = vld [vmem:[%s1 + $0x18] sm:$0xff]
  %v1903 = vld [vmem:[%s1 + $0x20] sm:$0xff]
  %vm1904 = vcmask 523264
  %v1906 = vsel %vm1904, %v1899, 0
  %v1909 = vsel %vm1904, %v1900, 0
  %v1912 = vsel %vm1904, %v1901, 0
  %v1915 = vsel %vm1904, %v1902, 0
  %v1918 = vsel %vm1904, %v1903, 0
  %1920 = vmatprep.subr.mxu0 0.0
  %1921 = vmatpush1.msra.mxu0 0.0
  %1922 = vmatprep.subr.mxu0 0.0
  %1923 = vmatpush1.msra.mxu0 0.0
  %1924 = vmatprep.subr.mxu0 0.0
  %1925 = vmatpush1.msra.mxu0 0.0
  %1926 = vmatprep.subr.mxu0 0.0
  %1927 = vmatpush1.msra.mxu0 0.0
  %1928 = vmatprep.subr.mxu0 0.0
  %1929 = vmatpush1.msra.mxu0 0.0
  %1930 = vmatprep.subr.mxu0 0.0
  %1931 = vmatpush1.msra.mxu0 0.0
  %1932 = vmatprep.subr.mxu0 0.0
  %1933 = vmatpush1.msra.mxu0 0.0
  %1934 = vmatprep.subr.mxu0 0.0
  %1935 = vmatpush1.msra.mxu0 0.0
  %1936 = vmatprep.subr.mxu0 0.0
  %1937 = vmatpush1.msra.mxu0 %v1857
  %1938 = vmatprep.subr.mxu0 0.0
  %1939 = vmatpush1.msra.mxu0 %v1856
  %1940 = vmatprep.subr.mxu0 0.0
  %1941 = vmatpush1.msra.mxu0 %v1855
  %1942 = vmatprep.subr.mxu0 0.0
  %1943 = vmatpush1.msra.mxu0 %v1854
  %1944 = vmatprep.subr.mxu0 0.0
  %1945 = vmatpush1.msra.mxu0 %v1853
  %1946 = vmatprep.subr.mxu0 0.0
  %1947 = vmatpush1.msra.mxu0 %v1852
  %1948 = vmatprep.subr.mxu0 0.0
  %1949 = vmatpush1.msra.mxu0 %v1851
  %1950 = vmatprep.subr.mxu0 0.0
  %1951 = vmatpush1.msra.mxu0 %v1850
  %1952 = vmatprep.subr.mxu0 0.0
  %1953 = vmatpush2.msra.mxu0 0.0
  %1954 = vmatprep.subr.mxu0 0.0
  %1955 = vmatpush2.msra.mxu0 0.0
  %1956 = vmatprep.subr.mxu0 0.0
  %1957 = vmatpush2.msra.mxu0 0.0
  %1958 = vmatprep.subr.mxu0 0.0
  %1959 = vmatpush2.msra.mxu0 0.0
  %1960 = vmatprep.subr.mxu0 0.0
  %1961 = vmatpush2.msra.mxu0 0.0
  %1962 = vmatprep.subr.mxu0 0.0
  %1963 = vmatpush2.msra.mxu0 0.0
  %1964 = vmatprep.subr.mxu0 0.0
  %1965 = vmatpush2.msra.mxu0 0.0
  %1966 = vmatprep.subr.mxu0 0.0
  %1967 = vmatpush2.msra.mxu0 0.0
  %1968 = vmatprep.subr.mxu0 0.0
  %1969 = vmatpush2.msra.mxu0 0.0
  %1970 = vmatprep.subr.mxu0 0.0
  %1971 = vmatpush2.msra.mxu0 0.0
  %1972 = vmatprep.subr.mxu0 0.0
  %1973 = vmatpush2.msra.mxu0 0.0
  %1974 = vmatprep.subr.mxu0 0.0
  %1975 = vmatpush2.msra.mxu0 0.0
  %1976 = vmatprep.subr.mxu0 0.0
  %1977 = vmatpush2.msra.mxu0 0.0
  %1978 = vmatprep.subr.mxu0 0.0
  %1979 = vmatpush2.msra.mxu0 0.0
  %1980 = vmatprep.subr.mxu0 0.0
  %1981 = vmatpush2.msra.mxu0 0.0
  %1982 = vmatprep.subr.mxu0 0.0
  %1983 = vmatpush2.msra.mxu0 0.0
  %1984 = vmatprep.mubr.f32.mxu0 0.0
  %1985 = vmatmul.mubr.f32.gmra.mxu0 %v1906
  %v1986 = vpop.f32.mrf.mxu0
  %v1987 = vadd.f32 0.0, %v1986
  %v1988 = vpop.f32.mrf.mxu0
  %1989 = vmatprep.mubr.f32.mxu0 0.0
  %1990 = vmatmul.mubr.f32.gmra.mxu0 %v1909
  %v1991 = vpop.f32.mrf.mxu0
  %v1992 = vadd.f32 0.0, %v1991
  %v1993 = vpop.f32.mrf.mxu0
  %1994 = vmatprep.mubr.f32.mxu0 0.0
  %1995 = vmatmul.mubr.f32.gmra.mxu0 %v1912
  %v1996 = vpop.f32.mrf.mxu0
  %v1997 = vadd.f32 0.0, %v1996
  %v1998 = vpop.f32.mrf.mxu0
  %1999 = vmatprep.mubr.f32.mxu0 0.0
  %2000 = vmatmul.mubr.f32.gmra.mxu0 %v1915
  %v2001 = vpop.f32.mrf.mxu0
  %v2002 = vadd.f32 0.0, %v2001
  %v2003 = vpop.f32.mrf.mxu0
  %2004 = vmatprep.mubr.f32.mxu0 0.0
  %2005 = vmatmul.mubr.f32.gmra.mxu0 %v1918
  %v2006 = vpop.f32.mrf.mxu0
  %v2007 = vadd.f32 0.0, %v2006
  %v2008 = vpop.f32.mrf.mxu0
  %2009 = vdwg.mxu0
  %v2010 = vmax.f32 %v1987, 0.0
  %v2011 = vmax.f32 %v1992, 0.0
  %v2012 = vmax.f32 %v1997, 0.0
  %v2013 = vmax.f32 %v2002, 0.0
  %v2014 = vmax.f32 %v2007, 0.0
  %v2015 = vpack.c.bf16 %v2011, %v2010
  %v2016 = vpack.c.bf16 %v2013, %v2012
  %v2017 = vpack.c.bf16 %v2014, %v2014
  %v2022 = vunpack.c.l.b16 %v1858
  %v2023 = vunpack.c.l.b16 %v1859
  %v2024 = vunpack.c.l.b16 %v1860
  %v2025 = vunpack.c.l.b16 %v1861
  %v2026 = vpack.c.b16 %v2023, %v2022
  %v2027 = vpack.c.b16 %v2025, %v2024
  %v2031 = vsel %vm263, %v2015, 0
  %v2034 = vsel %vm263, %v2016, 0
  %v2037 = vsel %vm263, %v2017, 0
  %2039 = vmatprep.subr.bf16.mxu0 0
  %2040 = vmatpush1.bf16.msra.mxu0 0
  %2041 = vmatprep.subr.bf16.mxu0 0
  %2042 = vmatpush1.bf16.msra.mxu0 0
  %2043 = vmatprep.subr.bf16.mxu0 0
  %2044 = vmatpush1.bf16.msra.mxu0 0
  %2045 = vmatprep.subr.bf16.mxu0 0
  %2046 = vmatpush1.bf16.msra.mxu0 0
  %2047 = vmatprep.subr.bf16.mxu0 0
  %2048 = vmatpush1.bf16.msra.mxu0 0
  %2049 = vmatprep.subr.bf16.mxu0 0
  %2050 = vmatpush1.bf16.msra.mxu0 0
  %2051 = vmatprep.subr.bf16.mxu0 0
  %2052 = vmatpush1.bf16.msra.mxu0 %v2027
  %2053 = vmatprep.subr.bf16.mxu0 0
  %2054 = vmatpush1.bf16.msra.mxu0 %v2026
  %2055 = vmatprep.subr.bf16.mxu0 0
  %2056 = vmatpush2.bf16.msra.mxu0 0
  %2057 = vmatprep.subr.bf16.mxu0 0
  %2058 = vmatpush2.bf16.msra.mxu0 0
  %2059 = vmatprep.subr.bf16.mxu0 0
  %2060 = vmatpush2.bf16.msra.mxu0 0
  %2061 = vmatprep.subr.bf16.mxu0 0
  %2062 = vmatpush2.bf16.msra.mxu0 0
  %2063 = vmatprep.subr.bf16.mxu0 0
  %2064 = vmatpush2.bf16.msra.mxu0 0
  %2065 = vmatprep.subr.bf16.mxu0 0
  %2066 = vmatpush2.bf16.msra.mxu0 0
  %2067 = vmatprep.subr.bf16.mxu0 0
  %2068 = vmatpush2.bf16.msra.mxu0 0
  %2069 = vmatprep.subr.bf16.mxu0 0
  %2070 = vmatpush2.bf16.msra.mxu0 0
  %2071 = vmatprep.mubr.bf16.mxu0 0
  %2072 = vmatmul.mubr.bf16.gmra.mxu0 %v2031
  %v2073 = vpop.f32.mrf.mxu0
  %v2074 = vadd.f32 0.0, %v2073
  %v2075 = vpop.f32.mrf.mxu0
  %v2076 = vpop.f32.mrf.mxu0
  %v2077 = vadd.f32 0.0, %v2076
  %v2078 = vpop.f32.mrf.mxu0
  %2079 = vmatprep.mubr.bf16.mxu0 0
  %2080 = vmatmul.mubr.bf16.gmra.mxu0 %v2034
  %v2081 = vpop.f32.mrf.mxu0
  %v2082 = vadd.f32 0.0, %v2081
  %v2083 = vpop.f32.mrf.mxu0
  %v2084 = vpop.f32.mrf.mxu0
  %v2085 = vadd.f32 0.0, %v2084
  %v2086 = vpop.f32.mrf.mxu0
  %2087 = vmatprep.mubr.bf16.mxu0 0
  %2088 = vmatmul.mubr.bf16.gmra.mxu0 %v2037
  %v2089 = vpop.f32.mrf.mxu0
  %v2090 = vadd.f32 0.0, %v2089
  %v2091 = vpop.f32.mrf.mxu0
  %v2092 = vpop.f32.mrf.mxu0
  %v2093 = vpop.f32.mrf.mxu0
  %2094 = vdwg.mxu0
  %v2099 = vunpack.c.l.b16 %v1862
  %v2100 = vunpack.c.l.b16 %v1863
  %v2101 = vunpack.c.l.b16 %v1864
  %v2102 = vunpack.c.l.b16 %v1865
  %v2103 = vpack.c.b16 %v2100, %v2099
  %v2104 = vpack.c.b16 %v2102, %v2101
  %v2108 = vsel %vm263, 0, 0
  %2110 = vmatprep.subr.bf16.mxu0 0
  %2111 = vmatpush1.bf16.msra.mxu0 0
  %2112 = vmatprep.subr.bf16.mxu0 0
  %2113 = vmatpush1.bf16.msra.mxu0 0
  %2114 = vmatprep.subr.bf16.mxu0 0
  %2115 = vmatpush1.bf16.msra.mxu0 0
  %2116 = vmatprep.subr.bf16.mxu0 0
  %2117 = vmatpush1.bf16.msra.mxu0 0
  %2118 = vmatprep.subr.bf16.mxu0 0
  %2119 = vmatpush1.bf16.msra.mxu0 0
  %2120 = vmatprep.subr.bf16.mxu0 0
  %2121 = vmatpush1.bf16.msra.mxu0 0
  %2122 = vmatprep.subr.bf16.mxu0 0
  %2123 = vmatpush1.bf16.msra.mxu0 %v2104
  %2124 = vmatprep.subr.bf16.mxu0 0
  %2125 = vmatpush1.bf16.msra.mxu0 %v2103
  %2126 = vmatprep.subr.bf16.mxu0 0
  %2127 = vmatpush2.bf16.msra.mxu0 0
  %2128 = vmatprep.subr.bf16.mxu0 0
  %2129 = vmatpush2.bf16.msra.mxu0 0
  %2130 = vmatprep.subr.bf16.mxu0 0
  %2131 = vmatpush2.bf16.msra.mxu0 0
  %2132 = vmatprep.subr.bf16.mxu0 0
  %2133 = vmatpush2.bf16.msra.mxu0 0
  %2134 = vmatprep.subr.bf16.mxu0 0
  %2135 = vmatpush2.bf16.msra.mxu0 0
  %2136 = vmatprep.subr.bf16.mxu0 0
  %2137 = vmatpush2.bf16.msra.mxu0 0
  %2138 = vmatprep.subr.bf16.mxu0 0
  %2139 = vmatpush2.bf16.msra.mxu0 0
  %2140 = vmatprep.subr.bf16.mxu0 0
  %2141 = vmatpush2.bf16.msra.mxu0 0
  %2142 = vmatprep.mubr.bf16.mxu0 0
  %2143 = vmatmul.mubr.bf16.gmra.mxu0 %v2108
  %v2144 = vpop.f32.mrf.mxu0
  %v2145 = vadd.f32 0.0, %v2144
  %v2146 = vpop.f32.mrf.mxu0
  %v2147 = vpop.f32.mrf.mxu0
  %v2148 = vpop.f32.mrf.mxu0
  %2149 = vdwg.mxu0
  %v2150 = vadd.f32 %v2074, %v2145
  %v2151 = vadd.f32 %v2150, %v1875
  %v2152 = vxor.u32 %v2151, 2147483648
  %v2153 = vmul.f32 %v2152, 1.442695
  %v2154 = vpow.pop %v2153
  %v2155 = vadd.f32 %v2154, 1.0
  %v2156 = vrcp.pop %v2155
  %v2157 = vmul.f32 1.0, %v2156
  %v2158 = vmul.f32 %v2157, 0.0
  %v2159 = vpack.c.bf16 %v2158, %v2158
  %v2164 = vunpack.c.l.b16 %v1866
  %v2165 = vunpack.c.l.b16 %v1867
  %v2166 = vunpack.c.l.b16 %v1868
  %v2167 = vunpack.c.l.b16 %v1869
  %v2168 = vpack.c.b16 %v2165, %v2164
  %v2169 = vpack.c.b16 %v2167, %v2166
  %v2173 = vsel %vm263, %v2159, 0
  %2175 = vmatprep.subr.bf16.mxu0 0
  %2176 = vmatpush1.bf16.msra.mxu0 0
  %2177 = vmatprep.subr.bf16.mxu0 0
  %2178 = vmatpush1.bf16.msra.mxu0 0
  %2179 = vmatprep.subr.bf16.mxu0 0
  %2180 = vmatpush1.bf16.msra.mxu0 0
  %2181 = vmatprep.subr.bf16.mxu0 0
  %2182 = vmatpush1.bf16.msra.mxu0 0
  %2183 = vmatprep.subr.bf16.mxu0 0
  %2184 = vmatpush1.bf16.msra.mxu0 0
  %2185 = vmatprep.subr.bf16.mxu0 0
  %2186 = vmatpush1.bf16.msra.mxu0 0
  %2187 = vmatprep.subr.bf16.mxu0 0
  %2188 = vmatpush1.bf16.msra.mxu0 %v2169
  %2189 = vmatprep.subr.bf16.mxu0 0
  %2190 = vmatpush1.bf16.msra.mxu0 %v2168
  %2191 = vmatprep.subr.bf16.mxu0 0
  %2192 = vmatpush2.bf16.msra.mxu0 0
  %2193 = vmatprep.subr.bf16.mxu0 0
  %2194 = vmatpush2.bf16.msra.mxu0 0
  %2195 = vmatprep.subr.bf16.mxu0 0
  %2196 = vmatpush2.bf16.msra.mxu0 0
  %2197 = vmatprep.subr.bf16.mxu0 0
  %2198 = vmatpush2.bf16.msra.mxu0 0
  %2199 = vmatprep.subr.bf16.mxu0 0
  %2200 = vmatpush2.bf16.msra.mxu0 0
  %2201 = vmatprep.subr.bf16.mxu0 0
  %2202 = vmatpush2.bf16.msra.mxu0 0
  %2203 = vmatprep.subr.bf16.mxu0 0
  %2204 = vmatpush2.bf16.msra.mxu0 0
  %2205 = vmatprep.subr.bf16.mxu0 0
  %2206 = vmatpush2.bf16.msra.mxu0 0
  %2207 = vmatprep.mubr.bf16.mxu0 0
  %2208 = vmatmul.mubr.bf16.gmra.mxu0 %v2173
  %v2209 = vpop.f32.mrf.mxu0
  %v2210 = vadd.f32 0.0, %v2209
  %v2211 = vpop.f32.mrf.mxu0
  %v2212 = vpop.f32.mrf.mxu0
  %v2213 = vpop.f32.mrf.mxu0
  %2214 = vdwg.mxu0
  %2216 = vrot.lane.b32.xlu0 %v2210, 64
  %v2217 = vpop.permute.xlu0 %2216
  %v2219 = vadd.f32 %v2074, %v2217
  %v2220 = vadd.f32 %v2219, %v1875
  %v2221 = vtanh.pop %v2220
  %v2222 = vsub.f32 1.0, %v2157
  %v2223 = vmul.f32 %v2222, 0.0
  %2225 = vrot.lane.b32.xlu0 %v2157, 32
  %v2226 = vpop.permute.xlu0 %2225
  %v2228 = vmul.f32 %v2221, %v2226
  %2230 = vrot.lane.b32.xlu0 %v2228, 96
  %v2231 = vpop.permute.xlu0 %2230
  %v2233 = vadd.f32 %v2223, %v2231
  %v2234 = vpack.c.bf16 %v2233, %v2233
  %2236 = vrot.lane.b32.xlu0 %v2234, 96
  %v2237 = vpop.permute.xlu0 %2236
  %v2239 = vsel %vm263, %v2237, 0
  %2241 = vmatprep.subr.bf16.mxu0 0
  %2242 = vmatpush1.bf16.msra.mxu0 0
  %2243 = vmatprep.subr.bf16.mxu0 0
  %2244 = vmatpush1.bf16.msra.mxu0 0
  %2245 = vmatprep.subr.bf16.mxu0 0
  %2246 = vmatpush1.bf16.msra.mxu0 0
  %2247 = vmatprep.subr.bf16.mxu0 0
  %2248 = vmatpush1.bf16.msra.mxu0 0
  %2249 = vmatprep.subr.bf16.mxu0 0
  %2250 = vmatpush1.bf16.msra.mxu0 0
  %2251 = vmatprep.subr.bf16.mxu0 0
  %2252 = vmatpush1.bf16.msra.mxu0 0
  %2253 = vmatprep.subr.bf16.mxu0 0
  %2254 = vmatpush1.bf16.msra.mxu0 %v2104
  %2255 = vmatprep.subr.bf16.mxu0 0
  %2256 = vmatpush1.bf16.msra.mxu0 %v2103
  %2257 = vmatprep.subr.bf16.mxu0 0
  %2258 = vmatpush2.bf16.msra.mxu0 0
  %2259 = vmatprep.subr.bf16.mxu0 0
  %2260 = vmatpush2.bf16.msra.mxu0 0
  %2261 = vmatprep.subr.bf16.mxu0 0
  %2262 = vmatpush2.bf16.msra.mxu0 0
  %2263 = vmatprep.subr.bf16.mxu0 0
  %2264 = vmatpush2.bf16.msra.mxu0 0
  %2265 = vmatprep.subr.bf16.mxu0 0
  %2266 = vmatpush2.bf16.msra.mxu0 0
  %2267 = vmatprep.subr.bf16.mxu0 0
  %2268 = vmatpush2.bf16.msra.mxu0 0
  %2269 = vmatprep.subr.bf16.mxu0 0
  %2270 = vmatpush2.bf16.msra.mxu0 0
  %2271 = vmatprep.subr.bf16.mxu0 0
  %2272 = vmatpush2.bf16.msra.mxu0 0
  %2273 = vmatprep.mubr.bf16.mxu0 0
  %2274 = vmatmul.mubr.bf16.gmra.mxu0 %v2239
  %v2275 = vpop.f32.mrf.mxu0
  %v2276 = vadd.f32 0.0, %v2275
  %v2277 = vpop.f32.mrf.mxu0
  %v2278 = vpop.f32.mrf.mxu0
  %v2279 = vpop.f32.mrf.mxu0
  %2280 = vdwg.mxu0
  %v2281 = vadd.f32 %v2077, %v2276
  %v2282 = vadd.f32 %v2281, %v1875
  %v2283 = vxor.u32 %v2282, 2147483648
  %v2284 = vmul.f32 %v2283, 1.442695
  %v2285 = vpow.pop %v2284
  %v2286 = vadd.f32 %v2285, 1.0
  %v2287 = vrcp.pop %v2286
  %v2288 = vmul.f32 1.0, %v2287
  %2290 = vrot.lane.b32.xlu0 %v2288, 32
  %v2291 = vpop.permute.xlu0 %2290
  %v2293 = vmul.f32 %v2233, %v2291
  %v2294 = vpack.c.bf16 %v2293, %v2293
  %2296 = vrot.lane.b32.xlu0 %v2294, 96
  %v2297 = vpop.permute.xlu0 %2296
  %v2299 = vsel %vm263, %v2297, 0
  %2301 = vmatprep.subr.bf16.mxu0 0
  %2302 = vmatpush1.bf16.msra.mxu0 0
  %2303 = vmatprep.subr.bf16.mxu0 0
  %2304 = vmatpush1.bf16.msra.mxu0 0
  %2305 = vmatprep.subr.bf16.mxu0 0
  %2306 = vmatpush1.bf16.msra.mxu0 0
  %2307 = vmatprep.subr.bf16.mxu0 0
  %2308 = vmatpush1.bf16.msra.mxu0 0
  %2309 = vmatprep.subr.bf16.mxu0 0
  %2310 = vmatpush1.bf16.msra.mxu0 0
  %2311 = vmatprep.subr.bf16.mxu0 0
  %2312 = vmatpush1.bf16.msra.mxu0 0
  %2313 = vmatprep.subr.bf16.mxu0 0
  %2314 = vmatpush1.bf16.msra.mxu0 %v2169
  %2315 = vmatprep.subr.bf16.mxu0 0
  %2316 = vmatpush1.bf16.msra.mxu0 %v2168
  %2317 = vmatprep.subr.bf16.mxu0 0
  %2318 = vmatpush2.bf16.msra.mxu0 0
  %2319 = vmatprep.subr.bf16.mxu0 0
  %2320 = vmatpush2.bf16.msra.mxu0 0
  %2321 = vmatprep.subr.bf16.mxu0 0
  %2322 = vmatpush2.bf16.msra.mxu0 0
  %2323 = vmatprep.subr.bf16.mxu0 0
  %2324 = vmatpush2.bf16.msra.mxu0 0
  %2325 = vmatprep.subr.bf16.mxu0 0
  %2326 = vmatpush2.bf16.msra.mxu0 0
  %2327 = vmatprep.subr.bf16.mxu0 0
  %2328 = vmatpush2.bf16.msra.mxu0 0
  %2329 = vmatprep.subr.bf16.mxu0 0
  %2330 = vmatpush2.bf16.msra.mxu0 0
  %2331 = vmatprep.subr.bf16.mxu0 0
  %2332 = vmatpush2.bf16.msra.mxu0 0
  %2333 = vmatprep.mubr.bf16.mxu0 0
  %2334 = vmatmul.mubr.bf16.gmra.mxu0 %v2299
  %v2335 = vpop.f32.mrf.mxu0
  %v2336 = vadd.f32 0.0, %v2335
  %v2337 = vpop.f32.mrf.mxu0
  %v2338 = vpop.f32.mrf.mxu0
  %v2339 = vpop.f32.mrf.mxu0
  %2340 = vdwg.mxu0
  %2342 = vrot.lane.b32.xlu0 %v2336, 64
  %v2343 = vpop.permute.xlu0 %2342
  %v2345 = vadd.f32 %v2077, %v2343
  %v2346 = vadd.f32 %v2345, %v1875
  %v2347 = vtanh.pop %v2346
  %v2348 = vsub.f32 1.0, %v2288
  %v2349 = vmul.f32 %v2233, %v2348
  %v2350 = vmul.f32 %v2347, %v2291
  %2352 = vrot.lane.b32.xlu0 %v2350, 96
  %v2353 = vpop.permute.xlu0 %2352
  %v2355 = vadd.f32 %v2349, %v2353
  %v2356 = vpack.c.bf16 %v2355, %v2355
  %2358 = vrot.lane.b32.xlu0 %v2356, 96
  %v2359 = vpop.permute.xlu0 %2358
  %v2361 = vsel %vm263, %v2359, 0
  %2363 = vmatprep.subr.bf16.mxu0 0
  %2364 = vmatpush1.bf16.msra.mxu0 0
  %2365 = vmatprep.subr.bf16.mxu0 0
  %2366 = vmatpush1.bf16.msra.mxu0 0
  %2367 = vmatprep.subr.bf16.mxu0 0
  %2368 = vmatpush1.bf16.msra.mxu0 0
  %2369 = vmatprep.subr.bf16.mxu0 0
  %2370 = vmatpush1.bf16.msra.mxu0 0
  %2371 = vmatprep.subr.bf16.mxu0 0
  %2372 = vmatpush1.bf16.msra.mxu0 0
  %2373 = vmatprep.subr.bf16.mxu0 0
  %2374 = vmatpush1.bf16.msra.mxu0 0
  %2375 = vmatprep.subr.bf16.mxu0 0
  %2376 = vmatpush1.bf16.msra.mxu0 %v2104
  %2377 = vmatprep.subr.bf16.mxu0 0
  %2378 = vmatpush1.bf16.msra.mxu0 %v2103
  %2379 = vmatprep.subr.bf16.mxu0 0
  %2380 = vmatpush2.bf16.msra.mxu0 0
  %2381 = vmatprep.subr.bf16.mxu0 0
  %2382 = vmatpush2.bf16.msra.mxu0 0
  %2383 = vmatprep.subr.bf16.mxu0 0
  %2384 = vmatpush2.bf16.msra.mxu0 0
  %2385 = vmatprep.subr.bf16.mxu0 0
  %2386 = vmatpush2.bf16.msra.mxu0 0
  %2387 = vmatprep.subr.bf16.mxu0 0
  %2388 = vmatpush2.bf16.msra.mxu0 0
  %2389 = vmatprep.subr.bf16.mxu0 0
  %2390 = vmatpush2.bf16.msra.mxu0 0
  %2391 = vmatprep.subr.bf16.mxu0 0
  %2392 = vmatpush2.bf16.msra.mxu0 0
  %2393 = vmatprep.subr.bf16.mxu0 0
  %2394 = vmatpush2.bf16.msra.mxu0 0
  %2395 = vmatprep.mubr.bf16.mxu0 0
  %2396 = vmatmul.mubr.bf16.gmra.mxu0 %v2361
  %v2397 = vpop.f32.mrf.mxu0
  %v2398 = vadd.f32 0.0, %v2397
  %v2399 = vpop.f32.mrf.mxu0
  %v2400 = vpop.f32.mrf.mxu0
  %v2401 = vpop.f32.mrf.mxu0
  %2402 = vdwg.mxu0
  %v2403 = vadd.f32 %v2082, %v2398
  %v2404 = vadd.f32 %v2403, %v1875
  %v2405 = vxor.u32 %v2404, 2147483648
  %v2406 = vmul.f32 %v2405, 1.442695
  %v2407 = vpow.pop %v2406
  %v2408 = vadd.f32 %v2407, 1.0
  %v2409 = vrcp.pop %v2408
  %v2410 = vmul.f32 1.0, %v2409
  %2412 = vrot.lane.b32.xlu0 %v2410, 32
  %v2413 = vpop.permute.xlu0 %2412
  %v2415 = vmul.f32 %v2355, %v2413
  %v2416 = vpack.c.bf16 %v2415, %v2415
  %2418 = vrot.lane.b32.xlu0 %v2416, 96
  %v2419 = vpop.permute.xlu0 %2418
  %v2421 = vsel %vm263, %v2419, 0
  %2423 = vmatprep.subr.bf16.mxu0 0
  %2424 = vmatpush1.bf16.msra.mxu0 0
  %2425 = vmatprep.subr.bf16.mxu0 0
  %2426 = vmatpush1.bf16.msra.mxu0 0
  %2427 = vmatprep.subr.bf16.mxu0 0
  %2428 = vmatpush1.bf16.msra.mxu0 0
  %2429 = vmatprep.subr.bf16.mxu0 0
  %2430 = vmatpush1.bf16.msra.mxu0 0
  %2431 = vmatprep.subr.bf16.mxu0 0
  %2432 = vmatpush1.bf16.msra.mxu0 0
  %2433 = vmatprep.subr.bf16.mxu0 0
  %2434 = vmatpush1.bf16.msra.mxu0 0
  %2435 = vmatprep.subr.bf16.mxu0 0
  %2436 = vmatpush1.bf16.msra.mxu0 %v2169
  %2437 = vmatprep.subr.bf16.mxu0 0
  %2438 = vmatpush1.bf16.msra.mxu0 %v2168
  %2439 = vmatprep.subr.bf16.mxu0 0
  %2440 = vmatpush2.bf16.msra.mxu0 0
  %2441 = vmatprep.subr.bf16.mxu0 0
  %2442 = vmatpush2.bf16.msra.mxu0 0
  %2443 = vmatprep.subr.bf16.mxu0 0
  %2444 = vmatpush2.bf16.msra.mxu0 0
  %2445 = vmatprep.subr.bf16.mxu0 0
  %2446 = vmatpush2.bf16.msra.mxu0 0
  %2447 = vmatprep.subr.bf16.mxu0 0
  %2448 = vmatpush2.bf16.msra.mxu0 0
  %2449 = vmatprep.subr.bf16.mxu0 0
  %2450 = vmatpush2.bf16.msra.mxu0 0
  %2451 = vmatprep.subr.bf16.mxu0 0
  %2452 = vmatpush2.bf16.msra.mxu0 0
  %2453 = vmatprep.subr.bf16.mxu0 0
  %2454 = vmatpush2.bf16.msra.mxu0 0
  %2455 = vmatprep.mubr.bf16.mxu0 0
  %2456 = vmatmul.mubr.bf16.gmra.mxu0 %v2421
  %v2457 = vpop.f32.mrf.mxu0
  %v2458 = vadd.f32 0.0, %v2457
  %v2459 = vpop.f32.mrf.mxu0
  %v2460 = vpop.f32.mrf.mxu0
  %v2461 = vpop.f32.mrf.mxu0
  %2462 = vdwg.mxu0
  %2464 = vrot.lane.b32.xlu0 %v2458, 64
  %v2465 = vpop.permute.xlu0 %2464
  %v2467 = vadd.f32 %v2082, %v2465
  %v2468 = vadd.f32 %v2467, %v1875
  %v2469 = vtanh.pop %v2468
  %v2470 = vsub.f32 1.0, %v2410
  %v2471 = vmul.f32 %v2355, %v2470
  %v2472 = vmul.f32 %v2469, %v2413
  %2474 = vrot.lane.b32.xlu0 %v2472, 96
  %v2475 = vpop.permute.xlu0 %2474
  %v2477 = vadd.f32 %v2471, %v2475
  %v2478 = vpack.c.bf16 %v2477, %v2477
  %2480 = vrot.lane.b32.xlu0 %v2478, 96
  %v2481 = vpop.permute.xlu0 %2480
  %v2483 = vsel %vm263, %v2481, 0
  %2485 = vmatprep.subr.bf16.mxu0 0
  %2486 = vmatpush1.bf16.msra.mxu0 0
  %2487 = vmatprep.subr.bf16.mxu0 0
  %2488 = vmatpush1.bf16.msra.mxu0 0
  %2489 = vmatprep.subr.bf16.mxu0 0
  %2490 = vmatpush1.bf16.msra.mxu0 0
  %2491 = vmatprep.subr.bf16.mxu0 0
  %2492 = vmatpush1.bf16.msra.mxu0 0
  %2493 = vmatprep.subr.bf16.mxu0 0
  %2494 = vmatpush1.bf16.msra.mxu0 0
  %2495 = vmatprep.subr.bf16.mxu0 0
  %2496 = vmatpush1.bf16.msra.mxu0 0
  %2497 = vmatprep.subr.bf16.mxu0 0
  %2498 = vmatpush1.bf16.msra.mxu0 %v2104
  %2499 = vmatprep.subr.bf16.mxu0 0
  %2500 = vmatpush1.bf16.msra.mxu0 %v2103
  %2501 = vmatprep.subr.bf16.mxu0 0
  %2502 = vmatpush2.bf16.msra.mxu0 0
  %2503 = vmatprep.subr.bf16.mxu0 0
  %2504 = vmatpush2.bf16.msra.mxu0 0
  %2505 = vmatprep.subr.bf16.mxu0 0
  %2506 = vmatpush2.bf16.msra.mxu0 0
  %2507 = vmatprep.subr.bf16.mxu0 0
  %2508 = vmatpush2.bf16.msra.mxu0 0
  %2509 = vmatprep.subr.bf16.mxu0 0
  %2510 = vmatpush2.bf16.msra.mxu0 0
  %2511 = vmatprep.subr.bf16.mxu0 0
  %2512 = vmatpush2.bf16.msra.mxu0 0
  %2513 = vmatprep.subr.bf16.mxu0 0
  %2514 = vmatpush2.bf16.msra.mxu0 0
  %2515 = vmatprep.subr.bf16.mxu0 0
  %2516 = vmatpush2.bf16.msra.mxu0 0
  %2517 = vmatprep.mubr.bf16.mxu0 0
  %2518 = vmatmul.mubr.bf16.gmra.mxu0 %v2483
  %v2519 = vpop.f32.mrf.mxu0
  %v2520 = vadd.f32 0.0, %v2519
  %v2521 = vpop.f32.mrf.mxu0
  %v2522 = vpop.f32.mrf.mxu0
  %v2523 = vpop.f32.mrf.mxu0
  %2524 = vdwg.mxu0
  %v2525 = vadd.f32 %v2085, %v2520
  %v2526 = vadd.f32 %v2525, %v1875
  %v2527 = vxor.u32 %v2526, 2147483648
  %v2528 = vmul.f32 %v2527, 1.442695
  %v2529 = vpow.pop %v2528
  %v2530 = vadd.f32 %v2529, 1.0
  %v2531 = vrcp.pop %v2530
  %v2532 = vmul.f32 1.0, %v2531
  %2534 = vrot.lane.b32.xlu0 %v2532, 32
  %v2535 = vpop.permute.xlu0 %2534
  %v2537 = vmul.f32 %v2477, %v2535
  %v2538 = vpack.c.bf16 %v2537, %v2537
  %2540 = vrot.lane.b32.xlu0 %v2538, 96
  %v2541 = vpop.permute.xlu0 %2540
  %v2543 = vsel %vm263, %v2541, 0
  %2545 = vmatprep.subr.bf16.mxu0 0
  %2546 = vmatpush1.bf16.msra.mxu0 0
  %2547 = vmatprep.subr.bf16.mxu0 0
  %2548 = vmatpush1.bf16.msra.mxu0 0
  %2549 = vmatprep.subr.bf16.mxu0 0
  %2550 = vmatpush1.bf16.msra.mxu0 0
  %2551 = vmatprep.subr.bf16.mxu0 0
  %2552 = vmatpush1.bf16.msra.mxu0 0
  %2553 = vmatprep.subr.bf16.mxu0 0
  %2554 = vmatpush1.bf16.msra.mxu0 0
  %2555 = vmatprep.subr.bf16.mxu0 0
  %2556 = vmatpush1.bf16.msra.mxu0 0
  %2557 = vmatprep.subr.bf16.mxu0 0
  %2558 = vmatpush1.bf16.msra.mxu0 %v2169
  %2559 = vmatprep.subr.bf16.mxu0 0
  %2560 = vmatpush1.bf16.msra.mxu0 %v2168
  %2561 = vmatprep.subr.bf16.mxu0 0
  %2562 = vmatpush2.bf16.msra.mxu0 0
  %2563 = vmatprep.subr.bf16.mxu0 0
  %2564 = vmatpush2.bf16.msra.mxu0 0
  %2565 = vmatprep.subr.bf16.mxu0 0
  %2566 = vmatpush2.bf16.msra.mxu0 0
  %2567 = vmatprep.subr.bf16.mxu0 0
  %2568 = vmatpush2.bf16.msra.mxu0 0
  %2569 = vmatprep.subr.bf16.mxu0 0
  %2570 = vmatpush2.bf16.msra.mxu0 0
  %2571 = vmatprep.subr.bf16.mxu0 0
  %2572 = vmatpush2.bf16.msra.mxu0 0
  %2573 = vmatprep.subr.bf16.mxu0 0
  %2574 = vmatpush2.bf16.msra.mxu0 0
  %2575 = vmatprep.subr.bf16.mxu0 0
  %2576 = vmatpush2.bf16.msra.mxu0 0
  %2577 = vmatprep.mubr.bf16.mxu0 0
  %2578 = vmatmul.mubr.bf16.gmra.mxu0 %v2543
  %v2579 = vpop.f32.mrf.mxu0
  %v2580 = vadd.f32 0.0, %v2579
  %v2581 = vpop.f32.mrf.mxu0
  %v2582 = vpop.f32.mrf.mxu0
  %v2583 = vpop.f32.mrf.mxu0
  %2584 = vdwg.mxu0
  %2586 = vrot.lane.b32.xlu0 %v2580, 64
  %v2587 = vpop.permute.xlu0 %2586
  %v2589 = vadd.f32 %v2085, %v2587
  %v2590 = vadd.f32 %v2589, %v1875
  %v2591 = vtanh.pop %v2590
  %v2592 = vsub.f32 1.0, %v2532
  %v2593 = vmul.f32 %v2477, %v2592
  %v2594 = vmul.f32 %v2591, %v2535
  %2596 = vrot.lane.b32.xlu0 %v2594, 96
  %v2597 = vpop.permute.xlu0 %2596
  %v2599 = vadd.f32 %v2593, %v2597
  %v2600 = vpack.c.bf16 %v2599, %v2599
  %2602 = vrot.lane.b32.xlu0 %v2600, 96
  %v2603 = vpop.permute.xlu0 %2602
  %v2605 = vsel %vm263, %v2603, 0
  %2607 = vmatprep.subr.bf16.mxu0 0
  %2608 = vmatpush1.bf16.msra.mxu0 0
  %2609 = vmatprep.subr.bf16.mxu0 0
  %2610 = vmatpush1.bf16.msra.mxu0 0
  %2611 = vmatprep.subr.bf16.mxu0 0
  %2612 = vmatpush1.bf16.msra.mxu0 0
  %2613 = vmatprep.subr.bf16.mxu0 0
  %2614 = vmatpush1.bf16.msra.mxu0 0
  %2615 = vmatprep.subr.bf16.mxu0 0
  %2616 = vmatpush1.bf16.msra.mxu0 0
  %2617 = vmatprep.subr.bf16.mxu0 0
  %2618 = vmatpush1.bf16.msra.mxu0 0
  %2619 = vmatprep.subr.bf16.mxu0 0
  %2620 = vmatpush1.bf16.msra.mxu0 %v2104
  %2621 = vmatprep.subr.bf16.mxu0 0
  %2622 = vmatpush1.bf16.msra.mxu0 %v2103
  %2623 = vmatprep.subr.bf16.mxu0 0
  %2624 = vmatpush2.bf16.msra.mxu0 0
  %2625 = vmatprep.subr.bf16.mxu0 0
  %2626 = vmatpush2.bf16.msra.mxu0 0
  %2627 = vmatprep.subr.bf16.mxu0 0
  %2628 = vmatpush2.bf16.msra.mxu0 0
  %2629 = vmatprep.subr.bf16.mxu0 0
  %2630 = vmatpush2.bf16.msra.mxu0 0
  %2631 = vmatprep.subr.bf16.mxu0 0
  %2632 = vmatpush2.bf16.msra.mxu0 0
  %2633 = vmatprep.subr.bf16.mxu0 0
  %2634 = vmatpush2.bf16.msra.mxu0 0
  %2635 = vmatprep.subr.bf16.mxu0 0
  %2636 = vmatpush2.bf16.msra.mxu0 0
  %2637 = vmatprep.subr.bf16.mxu0 0
  %2638 = vmatpush2.bf16.msra.mxu0 0
  %2639 = vmatprep.mubr.bf16.mxu0 0
  %2640 = vmatmul.mubr.bf16.gmra.mxu0 %v2605
  %v2641 = vpop.f32.mrf.mxu0
  %v2642 = vadd.f32 0.0, %v2641
  %v2643 = vpop.f32.mrf.mxu0
  %v2644 = vpop.f32.mrf.mxu0
  %v2645 = vpop.f32.mrf.mxu0
  %2646 = vdwg.mxu0
  %v2647 = vadd.f32 %v2090, %v2642
  %v2648 = vadd.f32 %v2647, %v1875
  %v2649 = vxor.u32 %v2648, 2147483648
  %v2650 = vmul.f32 %v2649, 1.442695
  %v2651 = vpow.pop %v2650
  %v2652 = vadd.f32 %v2651, 1.0
  %v2653 = vrcp.pop %v2652
  %v2654 = vmul.f32 1.0, %v2653
  %2656 = vrot.lane.b32.xlu0 %v2654, 32
  %v2657 = vpop.permute.xlu0 %2656
  %v2659 = vmul.f32 %v2599, %v2657
  %v2660 = vpack.c.bf16 %v2659, %v2659
  %2662 = vrot.lane.b32.xlu0 %v2660, 96
  %v2663 = vpop.permute.xlu0 %2662
  %v2665 = vsel %vm263, %v2663, 0
  %2667 = vmatprep.subr.bf16.mxu0 0
  %2668 = vmatpush1.bf16.msra.mxu0 0
  %2669 = vmatprep.subr.bf16.mxu0 0
  %2670 = vmatpush1.bf16.msra.mxu0 0
  %2671 = vmatprep.subr.bf16.mxu0 0
  %2672 = vmatpush1.bf16.msra.mxu0 0
  %2673 = vmatprep.subr.bf16.mxu0 0
  %2674 = vmatpush1.bf16.msra.mxu0 0
  %2675 = vmatprep.subr.bf16.mxu0 0
  %2676 = vmatpush1.bf16.msra.mxu0 0
  %2677 = vmatprep.subr.bf16.mxu0 0
  %2678 = vmatpush1.bf16.msra.mxu0 0
  %2679 = vmatprep.subr.bf16.mxu0 0
  %2680 = vmatpush1.bf16.msra.mxu0 %v2169
  %2681 = vmatprep.subr.bf16.mxu0 0
  %2682 = vmatpush1.bf16.msra.mxu0 %v2168
  %2683 = vmatprep.subr.bf16.mxu0 0
  %2684 = vmatpush2.bf16.msra.mxu0 0
  %2685 = vmatprep.subr.bf16.mxu0 0
  %2686 = vmatpush2.bf16.msra.mxu0 0
  %2687 = vmatprep.subr.bf16.mxu0 0
  %2688 = vmatpush2.bf16.msra.mxu0 0
  %2689 = vmatprep.subr.bf16.mxu0 0
  %2690 = vmatpush2.bf16.msra.mxu0 0
  %2691 = vmatprep.subr.bf16.mxu0 0
  %2692 = vmatpush2.bf16.msra.mxu0 0
  %2693 = vmatprep.subr.bf16.mxu0 0
  %2694 = vmatpush2.bf16.msra.mxu0 0
  %2695 = vmatprep.subr.bf16.mxu0 0
  %2696 = vmatpush2.bf16.msra.mxu0 0
  %2697 = vmatprep.subr.bf16.mxu0 0
  %2698 = vmatpush2.bf16.msra.mxu0 0
  %2699 = vmatprep.mubr.bf16.mxu0 0
  %2700 = vmatmul.mubr.bf16.gmra.mxu0 %v2665
  %v2701 = vpop.f32.mrf.mxu0
  %v2702 = vadd.f32 0.0, %v2701
  %v2703 = vpop.f32.mrf.mxu0
  %v2704 = vpop.f32.mrf.mxu0
  %v2705 = vpop.f32.mrf.mxu0
  %2706 = vdwg.mxu0
  %2708 = vrot.lane.b32.xlu0 %v2702, 64
  %v2709 = vpop.permute.xlu0 %2708
  %v2711 = vadd.f32 %v2090, %v2709
  %v2712 = vadd.f32 %v2711, %v1875
  %v2713 = vtanh.pop %v2712
  %v2714 = vsub.f32 1.0, %v2654
  %v2715 = vmul.f32 %v2599, %v2714
  %v2716 = vmul.f32 %v2713, %v2657
  %2718 = vrot.lane.b32.xlu0 %v2716, 96
  %v2719 = vpop.permute.xlu0 %2718
  %v2721 = vadd.f32 %v2715, %v2719
  %v2722 = vpack.c.bf16 %v2721, %v2721
  %2724 = vrot.lane.b32.xlu0 %v2722, 96
  %v2725 = vpop.permute.xlu0 %2724
  %v2730 = vunpack.c.l.b16 %v1877
  %v2731 = vunpack.c.l.b16 %v1878
  %v2732 = vunpack.c.l.b16 %v1879
  %v2733 = vunpack.c.l.b16 %v1880
  %v2734 = vpack.c.b16 %v2731, %v2730
  %v2735 = vpack.c.b16 %v2733, %v2732
  %v2739 = vsel %vm263, %v2725, 0
  %2741 = vmatprep.subr.bf16.mxu0 0
  %2742 = vmatpush1.bf16.msra.mxu0 0
  %2743 = vmatprep.subr.bf16.mxu0 0
  %2744 = vmatpush1.bf16.msra.mxu0 0
  %2745 = vmatprep.subr.bf16.mxu0 0
  %2746 = vmatpush1.bf16.msra.mxu0 0
  %2747 = vmatprep.subr.bf16.mxu0 0
  %2748 = vmatpush1.bf16.msra.mxu0 0
  %2749 = vmatprep.subr.bf16.mxu0 0
  %2750 = vmatpush1.bf16.msra.mxu0 0
  %2751 = vmatprep.subr.bf16.mxu0 0
  %2752 = vmatpush1.bf16.msra.mxu0 0
  %2753 = vmatprep.subr.bf16.mxu0 0
  %2754 = vmatpush1.bf16.msra.mxu0 %v2735
  %2755 = vmatprep.subr.bf16.mxu0 0
  %2756 = vmatpush1.bf16.msra.mxu0 %v2734
  %2757 = vmatprep.subr.bf16.mxu0 0
  %2758 = vmatpush2.bf16.msra.mxu0 0
  %2759 = vmatprep.subr.bf16.mxu0 0
  %2760 = vmatpush2.bf16.msra.mxu0 0
  %2761 = vmatprep.subr.bf16.mxu0 0
  %2762 = vmatpush2.bf16.msra.mxu0 0
  %2763 = vmatprep.subr.bf16.mxu0 0
  %2764 = vmatpush2.bf16.msra.mxu0 0
  %2765 = vmatprep.subr.bf16.mxu0 0
  %2766 = vmatpush2.bf16.msra.mxu0 0
  %2767 = vmatprep.subr.bf16.mxu0 0
  %2768 = vmatpush2.bf16.msra.mxu0 0
  %2769 = vmatprep.subr.bf16.mxu0 0
  %2770 = vmatpush2.bf16.msra.mxu0 0
  %2771 = vmatprep.subr.bf16.mxu0 0
  %2772 = vmatpush2.bf16.msra.mxu0 0
  %2773 = vmatprep.mubr.bf16.mxu0 0
  %2774 = vmatmul.mubr.bf16.gmra.mxu0 %v2739
  %v2775 = vpop.f32.mrf.mxu0
  %v2776 = vadd.f32 %v1890, %v2775
  %v2777 = vpop.f32.mrf.mxu0
  %v2778 = vpop.f32.mrf.mxu0
  %v2779 = vpop.f32.mrf.mxu0
  %2780 = vdwg.mxu0
  %v2781 = vmax.f32 %v2776, 0.0
  %v2782 = vpack.c.bf16 %v2781, %v2781
  %v2787 = vunpack.c.l.b16 %v1881
  %v2788 = vunpack.c.l.b16 %v1882
  %v2789 = vunpack.c.l.b16 %v1883
  %v2790 = vunpack.c.l.b16 %v1884
  %v2791 = vpack.c.b16 %v2788, %v2787
  %v2792 = vpack.c.b16 %v2790, %v2789
  %v2796 = vsel %vm263, %v2782, 0
  %2798 = vmatprep.subr.bf16.mxu0 0
  %2799 = vmatpush1.bf16.msra.mxu0 0
  %2800 = vmatprep.subr.bf16.mxu0 0
  %2801 = vmatpush1.bf16.msra.mxu0 0
  %2802 = vmatprep.subr.bf16.mxu0 0
  %2803 = vmatpush1.bf16.msra.mxu0 0
  %2804 = vmatprep.subr.bf16.mxu0 0
  %2805 = vmatpush1.bf16.msra.mxu0 0
  %2806 = vmatprep.subr.bf16.mxu0 0
  %2807 = vmatpush1.bf16.msra.mxu0 0
  %2808 = vmatprep.subr.bf16.mxu0 0
  %2809 = vmatpush1.bf16.msra.mxu0 0
  %2810 = vmatprep.subr.bf16.mxu0 0
  %2811 = vmatpush1.bf16.msra.mxu0 %v2792
  %2812 = vmatprep.subr.bf16.mxu0 0
  %2813 = vmatpush1.bf16.msra.mxu0 %v2791
  %2814 = vmatprep.subr.bf16.mxu0 0
  %2815 = vmatpush2.bf16.msra.mxu0 0
  %2816 = vmatprep.subr.bf16.mxu0 0
  %2817 = vmatpush2.bf16.msra.mxu0 0
  %2818 = vmatprep.subr.bf16.mxu0 0
  %2819 = vmatpush2.bf16.msra.mxu0 0
  %2820 = vmatprep.subr.bf16.mxu0 0
  %2821 = vmatpush2.bf16.msra.mxu0 0
  %2822 = vmatprep.subr.bf16.mxu0 0
  %2823 = vmatpush2.bf16.msra.mxu0 0
  %2824 = vmatprep.subr.bf16.mxu0 0
  %2825 = vmatpush2.bf16.msra.mxu0 0
  %2826 = vmatprep.subr.bf16.mxu0 0
  %2827 = vmatpush2.bf16.msra.mxu0 0
  %2828 = vmatprep.subr.bf16.mxu0 0
  %2829 = vmatpush2.bf16.msra.mxu0 0
  %2830 = vmatprep.mubr.bf16.mxu0 0
  %2831 = vmatmul.mubr.bf16.gmra.mxu0 %v2796
  %v2832 = vpop.f32.mrf.mxu0
  %v2833 = vadd.f32 %v1897, %v2832
  %v2834 = vpop.f32.mrf.mxu0
  %v2835 = vpop.f32.mrf.mxu0
  %v2836 = vpop.f32.mrf.mxu0
  %2837 = vdwg.mxu0
  %v2838 = vmax.f32 %v2833, 0.0
  %v2839 = vpack.c.bf16 %v2838, %v2838
  %v2841 = vsel %vm263, %v2839, 0
  %2843 = vmatprep.subr.bf16.mxu0 0
  %2844 = vmatpush1.bf16.msra.mxu0 0
  %2845 = vmatprep.subr.bf16.mxu0 0
  %2846 = vmatpush1.bf16.msra.mxu0 0
  %2847 = vmatprep.subr.bf16.mxu0 0
  %2848 = vmatpush1.bf16.msra.mxu0 0
  %2849 = vmatprep.subr.bf16.mxu0 0
  %2850 = vmatpush1.bf16.msra.mxu0 0
  %2851 = vmatprep.subr.bf16.mxu0 0
  %2852 = vmatpush1.bf16.msra.mxu0 0
  %2853 = vmatprep.subr.bf16.mxu0 0
  %2854 = vmatpush1.bf16.msra.mxu0 0
  %2855 = vmatprep.subr.bf16.mxu0 0
  %2856 = vmatpush1.bf16.msra.mxu0 %v2027
  %2857 = vmatprep.subr.bf16.mxu0 0
  %2858 = vmatpush1.bf16.msra.mxu0 %v2026
  %2859 = vmatprep.subr.bf16.mxu0 0
  %2860 = vmatpush2.bf16.msra.mxu0 0
  %2861 = vmatprep.subr.bf16.mxu0 0
  %2862 = vmatpush2.bf16.msra.mxu0 0
  %2863 = vmatprep.subr.bf16.mxu0 0
  %2864 = vmatpush2.bf16.msra.mxu0 0
  %2865 = vmatprep.subr.bf16.mxu0 0
  %2866 = vmatpush2.bf16.msra.mxu0 0
  %2867 = vmatprep.subr.bf16.mxu0 0
  %2868 = vmatpush2.bf16.msra.mxu0 0
  %2869 = vmatprep.subr.bf16.mxu0 0
  %2870 = vmatpush2.bf16.msra.mxu0 0
  %2871 = vmatprep.subr.bf16.mxu0 0
  %2872 = vmatpush2.bf16.msra.mxu0 0
  %2873 = vmatprep.subr.bf16.mxu0 0
  %2874 = vmatpush2.bf16.msra.mxu0 0
  %2875 = vmatprep.mubr.bf16.mxu0 0
  %2876 = vmatmul.mubr.bf16.gmra.mxu0 %v2841
  %v2877 = vpop.f32.mrf.mxu0
  %v2878 = vadd.f32 0.0, %v2877
  %v2879 = vpop.f32.mrf.mxu0
  %v2880 = vpop.f32.mrf.mxu0
  %v2881 = vpop.f32.mrf.mxu0
  %2882 = vdwg.mxu0
  %2883 = vmatprep.subr.bf16.mxu0 0
  %2884 = vmatpush1.bf16.msra.mxu0 0
  %2885 = vmatprep.subr.bf16.mxu0 0
  %2886 = vmatpush1.bf16.msra.mxu0 0
  %2887 = vmatprep.subr.bf16.mxu0 0
  %2888 = vmatpush1.bf16.msra.mxu0 0
  %2889 = vmatprep.subr.bf16.mxu0 0
  %2890 = vmatpush1.bf16.msra.mxu0 0
  %2891 = vmatprep.subr.bf16.mxu0 0
  %2892 = vmatpush1.bf16.msra.mxu0 0
  %2893 = vmatprep.subr.bf16.mxu0 0
  %2894 = vmatpush1.bf16.msra.mxu0 0
  %2895 = vmatprep.subr.bf16.mxu0 0
  %2896 = vmatpush1.bf16.msra.mxu0 %v2104
  %2897 = vmatprep.subr.bf16.mxu0 0
  %2898 = vmatpush1.bf16.msra.mxu0 %v2103
  %2899 = vmatprep.subr.bf16.mxu0 0
  %2900 = vmatpush2.bf16.msra.mxu0 0
  %2901 = vmatprep.subr.bf16.mxu0 0
  %2902 = vmatpush2.bf16.msra.mxu0 0
  %2903 = vmatprep.subr.bf16.mxu0 0
  %2904 = vmatpush2.bf16.msra.mxu0 0
  %2905 = vmatprep.subr.bf16.mxu0 0
  %2906 = vmatpush2.bf16.msra.mxu0 0
  %2907 = vmatprep.subr.bf16.mxu0 0
  %2908 = vmatpush2.bf16.msra.mxu0 0
  %2909 = vmatprep.subr.bf16.mxu0 0
  %2910 = vmatpush2.bf16.msra.mxu0 0
  %2911 = vmatprep.subr.bf16.mxu0 0
  %2912 = vmatpush2.bf16.msra.mxu0 0
  %2913 = vmatprep.subr.bf16.mxu0 0
  %2914 = vmatpush2.bf16.msra.mxu0 0
  %2915 = vmatprep.mubr.bf16.mxu0 0
  %2916 = vmatmul.mubr.bf16.gmra.mxu0 %v2739
  %v2917 = vpop.f32.mrf.mxu0
  %v2918 = vadd.f32 0.0, %v2917
  %v2919 = vpop.f32.mrf.mxu0
  %v2920 = vpop.f32.mrf.mxu0
  %v2921 = vpop.f32.mrf.mxu0
  %2922 = vdwg.mxu0
  %v2923 = vadd.f32 %v2878, %v2918
  %v2924 = vadd.f32 %v2923, %v1875
  %v2925 = vxor.u32 %v2924, 2147483648
  %v2926 = vmul.f32 %v2925, 1.442695
  %v2927 = vpow.pop %v2926
  %v2928 = vadd.f32 %v2927, 1.0
  %v2929 = vrcp.pop %v2928
  %v2930 = vmul.f32 1.0, %v2929
  %2932 = vrot.lane.b32.xlu0 %v2930, 32
  %v2933 = vpop.permute.xlu0 %2932
  %v2935 = vmul.f32 %v2721, %v2933
  %v2936 = vpack.c.bf16 %v2935, %v2935
  %2938 = vrot.lane.b32.xlu0 %v2936, 96
  %v2939 = vpop.permute.xlu0 %2938
  %v2941 = vsel %vm263, %v2939, 0
  %2943 = vmatprep.subr.bf16.mxu0 0
  %2944 = vmatpush1.bf16.msra.mxu0 0
  %2945 = vmatprep.subr.bf16.mxu0 0
  %2946 = vmatpush1.bf16.msra.mxu0 0
  %2947 = vmatprep.subr.bf16.mxu0 0
  %2948 = vmatpush1.bf16.msra.mxu0 0
  %2949 = vmatprep.subr.bf16.mxu0 0
  %2950 = vmatpush1.bf16.msra.mxu0 0
  %2951 = vmatprep.subr.bf16.mxu0 0
  %2952 = vmatpush1.bf16.msra.mxu0 0
  %2953 = vmatprep.subr.bf16.mxu0 0
  %2954 = vmatpush1.bf16.msra.mxu0 0
  %2955 = vmatprep.subr.bf16.mxu0 0
  %2956 = vmatpush1.bf16.msra.mxu0 %v2169
  %2957 = vmatprep.subr.bf16.mxu0 0
  %2958 = vmatpush1.bf16.msra.mxu0 %v2168
  %2959 = vmatprep.subr.bf16.mxu0 0
  %2960 = vmatpush2.bf16.msra.mxu0 0
  %2961 = vmatprep.subr.bf16.mxu0 0
  %2962 = vmatpush2.bf16.msra.mxu0 0
  %2963 = vmatprep.subr.bf16.mxu0 0
  %2964 = vmatpush2.bf16.msra.mxu0 0
  %2965 = vmatprep.subr.bf16.mxu0 0
  %2966 = vmatpush2.bf16.msra.mxu0 0
  %2967 = vmatprep.subr.bf16.mxu0 0
  %2968 = vmatpush2.bf16.msra.mxu0 0
  %2969 = vmatprep.subr.bf16.mxu0 0
  %2970 = vmatpush2.bf16.msra.mxu0 0
  %2971 = vmatprep.subr.bf16.mxu0 0
  %2972 = vmatpush2.bf16.msra.mxu0 0
  %2973 = vmatprep.subr.bf16.mxu0 0
  %2974 = vmatpush2.bf16.msra.mxu0 0
  %2975 = vmatprep.mubr.bf16.mxu0 0
  %2976 = vmatmul.mubr.bf16.gmra.mxu0 %v2941
  %v2977 = vpop.f32.mrf.mxu0
  %v2978 = vadd.f32 0.0, %v2977
  %v2979 = vpop.f32.mrf.mxu0
  %v2980 = vpop.f32.mrf.mxu0
  %v2981 = vpop.f32.mrf.mxu0
  %2982 = vdwg.mxu0
  %2984 = vrot.lane.b32.xlu0 %v2978, 64
  %v2985 = vpop.permute.xlu0 %2984
  %v2987 = vadd.f32 %v2878, %v2985
  %v2988 = vadd.f32 %v2987, %v1875
  %v2989 = vtanh.pop %v2988
  %v2990 = vsub.f32 1.0, %v2930
  %v2991 = vmul.f32 %v2721, %v2990
  %v2992 = vmul.f32 %v2989, %v2933
  %2994 = vrot.lane.b32.xlu0 %v2992, 96
  %v2995 = vpop.permute.xlu0 %2994
  %v2997 = vadd.f32 %v2991, %v2995
  %v2998 = vpack.c.bf16 %v2997, %v2997
  %3000 = vrot.lane.b32.xlu0 %v2998, 96
  %v3001 = vpop.permute.xlu0 %3000
  %v3003 = vsel %vm263, %v3001, 0
  %3005 = vmatprep.subr.bf16.mxu0 0
  %3006 = vmatpush1.bf16.msra.mxu0 0
  %3007 = vmatprep.subr.bf16.mxu0 0
  %3008 = vmatpush1.bf16.msra.mxu0 0
  %3009 = vmatprep.subr.bf16.mxu0 0
  %3010 = vmatpush1.bf16.msra.mxu0 0
  %3011 = vmatprep.subr.bf16.mxu0 0
  %3012 = vmatpush1.bf16.msra.mxu0 0
  %3013 = vmatprep.subr.bf16.mxu0 0
  %3014 = vmatpush1.bf16.msra.mxu0 0
  %3015 = vmatprep.subr.bf16.mxu0 0
  %3016 = vmatpush1.bf16.msra.mxu0 0
  %3017 = vmatprep.subr.bf16.mxu0 0
  %3018 = vmatpush1.bf16.msra.mxu0 %v2735
  %3019 = vmatprep.subr.bf16.mxu0 0
  %3020 = vmatpush1.bf16.msra.mxu0 %v2734
  %3021 = vmatprep.subr.bf16.mxu0 0
  %3022 = vmatpush2.bf16.msra.mxu0 0
  %3023 = vmatprep.subr.bf16.mxu0 0
  %3024 = vmatpush2.bf16.msra.mxu0 0
  %3025 = vmatprep.subr.bf16.mxu0 0
  %3026 = vmatpush2.bf16.msra.mxu0 0
  %3027 = vmatprep.subr.bf16.mxu0 0
  %3028 = vmatpush2.bf16.msra.mxu0 0
  %3029 = vmatprep.subr.bf16.mxu0 0
  %3030 = vmatpush2.bf16.msra.mxu0 0
  %3031 = vmatprep.subr.bf16.mxu0 0
  %3032 = vmatpush2.bf16.msra.mxu0 0
  %3033 = vmatprep.subr.bf16.mxu0 0
  %3034 = vmatpush2.bf16.msra.mxu0 0
  %3035 = vmatprep.subr.bf16.mxu0 0
  %3036 = vmatpush2.bf16.msra.mxu0 0
  %3037 = vmatprep.mubr.bf16.mxu0 0
  %3038 = vmatmul.mubr.bf16.gmra.mxu0 %v3003
  %v3039 = vpop.f32.mrf.mxu0
  %v3040 = vadd.f32 %v1890, %v3039
  %v3041 = vpop.f32.mrf.mxu0
  %v3042 = vpop.f32.mrf.mxu0
  %v3043 = vpop.f32.mrf.mxu0
  %3044 = vdwg.mxu0
  %v3045 = vmax.f32 %v3040, 0.0
  %v3046 = vpack.c.bf16 %v3045, %v3045
  %v3048 = vsel %vm263, %v3046, 0
  %3050 = vmatprep.subr.bf16.mxu0 0
  %3051 = vmatpush1.bf16.msra.mxu0 0
  %3052 = vmatprep.subr.bf16.mxu0 0
  %3053 = vmatpush1.bf16.msra.mxu0 0
  %3054 = vmatprep.subr.bf16.mxu0 0
  %3055 = vmatpush1.bf16.msra.mxu0 0
  %3056 = vmatprep.subr.bf16.mxu0 0
  %3057 = vmatpush1.bf16.msra.mxu0 0
  %3058 = vmatprep.subr.bf16.mxu0 0
  %3059 = vmatpush1.bf16.msra.mxu0 0
  %3060 = vmatprep.subr.bf16.mxu0 0
  %3061 = vmatpush1.bf16.msra.mxu0 0
  %3062 = vmatprep.subr.bf16.mxu0 0
  %3063 = vmatpush1.bf16.msra.mxu0 %v2792
  %3064 = vmatprep.subr.bf16.mxu0 0
  %3065 = vmatpush1.bf16.msra.mxu0 %v2791
  %3066 = vmatprep.subr.bf16.mxu0 0
  %3067 = vmatpush2.bf16.msra.mxu0 0
  %3068 = vmatprep.subr.bf16.mxu0 0
  %3069 = vmatpush2.bf16.msra.mxu0 0
  %3070 = vmatprep.subr.bf16.mxu0 0
  %3071 = vmatpush2.bf16.msra.mxu0 0
  %3072 = vmatprep.subr.bf16.mxu0 0
  %3073 = vmatpush2.bf16.msra.mxu0 0
  %3074 = vmatprep.subr.bf16.mxu0 0
  %3075 = vmatpush2.bf16.msra.mxu0 0
  %3076 = vmatprep.subr.bf16.mxu0 0
  %3077 = vmatpush2.bf16.msra.mxu0 0
  %3078 = vmatprep.subr.bf16.mxu0 0
  %3079 = vmatpush2.bf16.msra.mxu0 0
  %3080 = vmatprep.subr.bf16.mxu0 0
  %3081 = vmatpush2.bf16.msra.mxu0 0
  %3082 = vmatprep.mubr.bf16.mxu0 0
  %3083 = vmatmul.mubr.bf16.gmra.mxu0 %v3048
  %v3084 = vpop.f32.mrf.mxu0
  %v3085 = vadd.f32 %v1897, %v3084
  %v3086 = vpop.f32.mrf.mxu0
  %v3087 = vpop.f32.mrf.mxu0
  %v3088 = vpop.f32.mrf.mxu0
  %3089 = vdwg.mxu0
  %v3090 = vmax.f32 %v3085, 0.0
  %v3091 = vpack.c.bf16 %v3090, %v3090
  %v3093 = vsel %vm263, %v3091, 0
  %3095 = vmatprep.subr.bf16.mxu0 0
  %3096 = vmatpush1.bf16.msra.mxu0 0
  %3097 = vmatprep.subr.bf16.mxu0 0
  %3098 = vmatpush1.bf16.msra.mxu0 0
  %3099 = vmatprep.subr.bf16.mxu0 0
  %3100 = vmatpush1.bf16.msra.mxu0 0
  %3101 = vmatprep.subr.bf16.mxu0 0
  %3102 = vmatpush1.bf16.msra.mxu0 0
  %3103 = vmatprep.subr.bf16.mxu0 0
  %3104 = vmatpush1.bf16.msra.mxu0 0
  %3105 = vmatprep.subr.bf16.mxu0 0
  %3106 = vmatpush1.bf16.msra.mxu0 0
  %3107 = vmatprep.subr.bf16.mxu0 0
  %3108 = vmatpush1.bf16.msra.mxu0 %v2027
  %3109 = vmatprep.subr.bf16.mxu0 0
  %3110 = vmatpush1.bf16.msra.mxu0 %v2026
  %3111 = vmatprep.subr.bf16.mxu0 0
  %3112 = vmatpush2.bf16.msra.mxu0 0
  %3113 = vmatprep.subr.bf16.mxu0 0
  %3114 = vmatpush2.bf16.msra.mxu0 0
  %3115 = vmatprep.subr.bf16.mxu0 0
  %3116 = vmatpush2.bf16.msra.mxu0 0
  %3117 = vmatprep.subr.bf16.mxu0 0
  %3118 = vmatpush2.bf16.msra.mxu0 0
  %3119 = vmatprep.subr.bf16.mxu0 0
  %3120 = vmatpush2.bf16.msra.mxu0 0
  %3121 = vmatprep.subr.bf16.mxu0 0
  %3122 = vmatpush2.bf16.msra.mxu0 0
  %3123 = vmatprep.subr.bf16.mxu0 0
  %3124 = vmatpush2.bf16.msra.mxu0 0
  %3125 = vmatprep.subr.bf16.mxu0 0
  %3126 = vmatpush2.bf16.msra.mxu0 0
  %3127 = vmatprep.mubr.bf16.mxu0 0
  %3128 = vmatmul.mubr.bf16.gmra.mxu0 %v3093
  %v3129 = vpop.f32.mrf.mxu0
  %v3130 = vadd.f32 0.0, %v3129
  %v3131 = vpop.f32.mrf.mxu0
  %v3132 = vpop.f32.mrf.mxu0
  %v3133 = vpop.f32.mrf.mxu0
  %3134 = vdwg.mxu0
  %3135 = vmatprep.subr.bf16.mxu0 0
  %3136 = vmatpush1.bf16.msra.mxu0 0
  %3137 = vmatprep.subr.bf16.mxu0 0
  %3138 = vmatpush1.bf16.msra.mxu0 0
  %3139 = vmatprep.subr.bf16.mxu0 0
  %3140 = vmatpush1.bf16.msra.mxu0 0
  %3141 = vmatprep.subr.bf16.mxu0 0
  %3142 = vmatpush1.bf16.msra.mxu0 0
  %3143 = vmatprep.subr.bf16.mxu0 0
  %3144 = vmatpush1.bf16.msra.mxu0 0
  %3145 = vmatprep.subr.bf16.mxu0 0
  %3146 = vmatpush1.bf16.msra.mxu0 0
  %3147 = vmatprep.subr.bf16.mxu0 0
  %3148 = vmatpush1.bf16.msra.mxu0 %v2104
  %3149 = vmatprep.subr.bf16.mxu0 0
  %3150 = vmatpush1.bf16.msra.mxu0 %v2103
  %3151 = vmatprep.subr.bf16.mxu0 0
  %3152 = vmatpush2.bf16.msra.mxu0 0
  %3153 = vmatprep.subr.bf16.mxu0 0
  %3154 = vmatpush2.bf16.msra.mxu0 0
  %3155 = vmatprep.subr.bf16.mxu0 0
  %3156 = vmatpush2.bf16.msra.mxu0 0
  %3157 = vmatprep.subr.bf16.mxu0 0
  %3158 = vmatpush2.bf16.msra.mxu0 0
  %3159 = vmatprep.subr.bf16.mxu0 0
  %3160 = vmatpush2.bf16.msra.mxu0 0
  %3161 = vmatprep.subr.bf16.mxu0 0
  %3162 = vmatpush2.bf16.msra.mxu0 0
  %3163 = vmatprep.subr.bf16.mxu0 0
  %3164 = vmatpush2.bf16.msra.mxu0 0
  %3165 = vmatprep.subr.bf16.mxu0 0
  %3166 = vmatpush2.bf16.msra.mxu0 0
  %3167 = vmatprep.mubr.bf16.mxu0 0
  %3168 = vmatmul.mubr.bf16.gmra.mxu0 %v3003
  %v3169 = vpop.f32.mrf.mxu0
  %v3170 = vadd.f32 0.0, %v3169
  %v3171 = vpop.f32.mrf.mxu0
  %v3172 = vpop.f32.mrf.mxu0
  %v3173 = vpop.f32.mrf.mxu0
  %3174 = vdwg.mxu0
  %v3175 = vadd.f32 %v3130, %v3170
  %v3176 = vadd.f32 %v3175, %v1875
  %v3177 = vxor.u32 %v3176, 2147483648
  %v3178 = vmul.f32 %v3177, 1.442695
  %v3179 = vpow.pop %v3178
  %v3180 = vadd.f32 %v3179, 1.0
  %v3181 = vrcp.pop %v3180
  %v3182 = vmul.f32 1.0, %v3181
  %3184 = vrot.lane.b32.xlu0 %v3182, 32
  %v3185 = vpop.permute.xlu0 %3184
  %v3187 = vmul.f32 %v2997, %v3185
  %v3188 = vpack.c.bf16 %v3187, %v3187
  %3190 = vrot.lane.b32.xlu0 %v3188, 96
  %v3191 = vpop.permute.xlu0 %3190
  %v3193 = vsel %vm263, %v3191, 0
  %3195 = vmatprep.subr.bf16.mxu0 0
  %3196 = vmatpush1.bf16.msra.mxu0 0
  %3197 = vmatprep.subr.bf16.mxu0 0
  %3198 = vmatpush1.bf16.msra.mxu0 0
  %3199 = vmatprep.subr.bf16.mxu0 0
  %3200 = vmatpush1.bf16.msra.mxu0 0
  %3201 = vmatprep.subr.bf16.mxu0 0
  %3202 = vmatpush1.bf16.msra.mxu0 0
  %3203 = vmatprep.subr.bf16.mxu0 0
  %3204 = vmatpush1.bf16.msra.mxu0 0
  %3205 = vmatprep.subr.bf16.mxu0 0
  %3206 = vmatpush1.bf16.msra.mxu0 0
  %3207 = vmatprep.subr.bf16.mxu0 0
  %3208 = vmatpush1.bf16.msra.mxu0 %v2169
  %3209 = vmatprep.subr.bf16.mxu0 0
  %3210 = vmatpush1.bf16.msra.mxu0 %v2168
  %3211 = vmatprep.subr.bf16.mxu0 0
  %3212 = vmatpush2.bf16.msra.mxu0 0
  %3213 = vmatprep.subr.bf16.mxu0 0
  %3214 = vmatpush2.bf16.msra.mxu0 0
  %3215 = vmatprep.subr.bf16.mxu0 0
  %3216 = vmatpush2.bf16.msra.mxu0 0
  %3217 = vmatprep.subr.bf16.mxu0 0
  %3218 = vmatpush2.bf16.msra.mxu0 0
  %3219 = vmatprep.subr.bf16.mxu0 0
  %3220 = vmatpush2.bf16.msra.mxu0 0
  %3221 = vmatprep.subr.bf16.mxu0 0
  %3222 = vmatpush2.bf16.msra.mxu0 0
  %3223 = vmatprep.subr.bf16.mxu0 0
  %3224 = vmatpush2.bf16.msra.mxu0 0
  %3225 = vmatprep.subr.bf16.mxu0 0
  %3226 = vmatpush2.bf16.msra.mxu0 0
  %3227 = vmatprep.mubr.bf16.mxu0 0
  %3228 = vmatmul.mubr.bf16.gmra.mxu0 %v3193
  %v3229 = vpop.f32.mrf.mxu0
  %v3230 = vadd.f32 0.0, %v3229
  %v3231 = vpop.f32.mrf.mxu0
  %v3232 = vpop.f32.mrf.mxu0
  %v3233 = vpop.f32.mrf.mxu0
  %3234 = vdwg.mxu0
  %3236 = vrot.lane.b32.xlu0 %v3230, 64
  %v3237 = vpop.permute.xlu0 %3236
  %v3239 = vadd.f32 %v3130, %v3237
  %v3240 = vadd.f32 %v3239, %v1875
  %v3241 = vtanh.pop %v3240
  %v3242 = vsub.f32 1.0, %v3182
  %v3243 = vmul.f32 %v2997, %v3242
  %v3244 = vmul.f32 %v3241, %v3185
  %3246 = vrot.lane.b32.xlu0 %v3244, 96
  %v3247 = vpop.permute.xlu0 %3246
  %v3249 = vadd.f32 %v3243, %v3247
  %v3250 = vpack.c.bf16 %v3249, %v3249
  %3252 = vrot.lane.b32.xlu0 %v3250, 96
  %v3253 = vpop.permute.xlu0 %3252
  %v3255 = vsel %vm263, %v3253, 0
  %3257 = vmatprep.subr.bf16.mxu0 0
  %3258 = vmatpush1.bf16.msra.mxu0 0
  %3259 = vmatprep.subr.bf16.mxu0 0
  %3260 = vmatpush1.bf16.msra.mxu0 0
  %3261 = vmatprep.subr.bf16.mxu0 0
  %3262 = vmatpush1.bf16.msra.mxu0 0
  %3263 = vmatprep.subr.bf16.mxu0 0
  %3264 = vmatpush1.bf16.msra.mxu0 0
  %3265 = vmatprep.subr.bf16.mxu0 0
  %3266 = vmatpush1.bf16.msra.mxu0 0
  %3267 = vmatprep.subr.bf16.mxu0 0
  %3268 = vmatpush1.bf16.msra.mxu0 0
  %3269 = vmatprep.subr.bf16.mxu0 0
  %3270 = vmatpush1.bf16.msra.mxu0 %v2735
  %3271 = vmatprep.subr.bf16.mxu0 0
  %3272 = vmatpush1.bf16.msra.mxu0 %v2734
  %3273 = vmatprep.subr.bf16.mxu0 0
  %3274 = vmatpush2.bf16.msra.mxu0 0
  %3275 = vmatprep.subr.bf16.mxu0 0
  %3276 = vmatpush2.bf16.msra.mxu0 0
  %3277 = vmatprep.subr.bf16.mxu0 0
  %3278 = vmatpush2.bf16.msra.mxu0 0
  %3279 = vmatprep.subr.bf16.mxu0 0
  %3280 = vmatpush2.bf16.msra.mxu0 0
  %3281 = vmatprep.subr.bf16.mxu0 0
  %3282 = vmatpush2.bf16.msra.mxu0 0
  %3283 = vmatprep.subr.bf16.mxu0 0
  %3284 = vmatpush2.bf16.msra.mxu0 0
  %3285 = vmatprep.subr.bf16.mxu0 0
  %3286 = vmatpush2.bf16.msra.mxu0 0
  %3287 = vmatprep.subr.bf16.mxu0 0
  %3288 = vmatpush2.bf16.msra.mxu0 0
  %3289 = vmatprep.mubr.bf16.mxu0 0
  %3290 = vmatmul.mubr.bf16.gmra.mxu0 %v3255
  %v3291 = vpop.f32.mrf.mxu0
  %v3292 = vadd.f32 %v1890, %v3291
  %v3293 = vpop.f32.mrf.mxu0
  %v3294 = vpop.f32.mrf.mxu0
  %v3295 = vpop.f32.mrf.mxu0
  %3296 = vdwg.mxu0
  %v3297 = vmax.f32 %v3292, 0.0
  %v3298 = vpack.c.bf16 %v3297, %v3297
  %v3300 = vsel %vm263, %v3298, 0
  %3302 = vmatprep.subr.bf16.mxu0 0
  %3303 = vmatpush1.bf16.msra.mxu0 0
  %3304 = vmatprep.subr.bf16.mxu0 0
  %3305 = vmatpush1.bf16.msra.mxu0 0
  %3306 = vmatprep.subr.bf16.mxu0 0
  %3307 = vmatpush1.bf16.msra.mxu0 0
  %3308 = vmatprep.subr.bf16.mxu0 0
  %3309 = vmatpush1.bf16.msra.mxu0 0
  %3310 = vmatprep.subr.bf16.mxu0 0
  %3311 = vmatpush1.bf16.msra.mxu0 0
  %3312 = vmatprep.subr.bf16.mxu0 0
  %3313 = vmatpush1.bf16.msra.mxu0 0
  %3314 = vmatprep.subr.bf16.mxu0 0
  %3315 = vmatpush1.bf16.msra.mxu0 %v2792
  %3316 = vmatprep.subr.bf16.mxu0 0
  %3317 = vmatpush1.bf16.msra.mxu0 %v2791
  %3318 = vmatprep.subr.bf16.mxu0 0
  %3319 = vmatpush2.bf16.msra.mxu0 0
  %3320 = vmatprep.subr.bf16.mxu0 0
  %3321 = vmatpush2.bf16.msra.mxu0 0
  %3322 = vmatprep.subr.bf16.mxu0 0
  %3323 = vmatpush2.bf16.msra.mxu0 0
  %3324 = vmatprep.subr.bf16.mxu0 0
  %3325 = vmatpush2.bf16.msra.mxu0 0
  %3326 = vmatprep.subr.bf16.mxu0 0
  %3327 = vmatpush2.bf16.msra.mxu0 0
  %3328 = vmatprep.subr.bf16.mxu0 0
  %3329 = vmatpush2.bf16.msra.mxu0 0
  %3330 = vmatprep.subr.bf16.mxu0 0
  %3331 = vmatpush2.bf16.msra.mxu0 0
  %3332 = vmatprep.subr.bf16.mxu0 0
  %3333 = vmatpush2.bf16.msra.mxu0 0
  %3334 = vmatprep.mubr.bf16.mxu0 0
  %3335 = vmatmul.mubr.bf16.gmra.mxu0 %v3300
  %v3336 = vpop.f32.mrf.mxu0
  %v3337 = vadd.f32 %v1897, %v3336
  %v3338 = vpop.f32.mrf.mxu0
  %v3339 = vpop.f32.mrf.mxu0
  %v3340 = vpop.f32.mrf.mxu0
  %3341 = vdwg.mxu0
  %v3343 = vsel %vm263, %v2833, 0
  %v3346 = vsel %vm263, %v3085, 0
  %v3349 = vsel %vm263, %v3337, 0
  %v3352 = vsel %vm263, %v1850, 0
  %v3355 = vsel %vm263, %v1851, 0
  %v3358 = vsel %vm263, %v1852, 0
  %v3361 = vsel %vm263, %v1853, 0
  %v3364 = vsel %vm263, %v1854, 0
  %v3367 = vsel %vm263, %v1855, 0
  %v3370 = vsel %vm263, %v1856, 0
  %v3373 = vsel %vm263, %v1857, 0
  %v3376 = vsel %vm263, 0.0, 0
  %3378 = vmatprep.subr.mxu0 0.0
  %3379 = vmatpush1.xpose.msra.mxu0 %v3376
  %3380 = vmatprep.subr.mxu0 0.0
  %3381 = vmatpush1.xpose.msra.mxu0 %v3376
  %3382 = vmatprep.subr.mxu0 0.0
  %3383 = vmatpush1.xpose.msra.mxu0 %v3376
  %3384 = vmatprep.subr.mxu0 0.0
  %3385 = vmatpush1.xpose.msra.mxu0 %v3376
  %3386 = vmatprep.subr.mxu0 0.0
  %3387 = vmatpush1.xpose.msra.mxu0 %v3376
  %3388 = vmatprep.subr.mxu0 0.0
  %3389 = vmatpush1.xpose.msra.mxu0 %v3376
  %3390 = vmatprep.subr.mxu0 0.0
  %3391 = vmatpush1.xpose.msra.mxu0 %v3376
  %3392 = vmatprep.subr.mxu0 0.0
  %3393 = vmatpush1.xpose.msra.mxu0 %v3376
  %3394 = vmatprep.subr.mxu0 0.0
  %3395 = vmatpush1.xpose.msra.mxu0 %v3373
  %3396 = vmatprep.subr.mxu0 0.0
  %3397 = vmatpush1.xpose.msra.mxu0 %v3370
  %3398 = vmatprep.subr.mxu0 0.0
  %3399 = vmatpush1.xpose.msra.mxu0 %v3367
  %3400 = vmatprep.subr.mxu0 0.0
  %3401 = vmatpush1.xpose.msra.mxu0 %v3364
  %3402 = vmatprep.subr.mxu0 0.0
  %3403 = vmatpush1.xpose.msra.mxu0 %v3361
  %3404 = vmatprep.subr.mxu0 0.0
  %3405 = vmatpush1.xpose.msra.mxu0 %v3358
  %3406 = vmatprep.subr.mxu0 0.0
  %3407 = vmatpush1.xpose.msra.mxu0 %v3355
  %3408 = vmatprep.subr.mxu0 0.0
  %3409 = vmatpush1.xpose.msra.mxu0 %v3352
  %3410 = vmatprep.subr.mxu0 0.0
  %3411 = vmatpush2.xpose.msra.mxu0 0.0
  %3412 = vmatprep.subr.mxu0 0.0
  %3413 = vmatpush2.xpose.msra.mxu0 0.0
  %3414 = vmatprep.subr.mxu0 0.0
  %3415 = vmatpush2.xpose.msra.mxu0 0.0
  %3416 = vmatprep.subr.mxu0 0.0
  %3417 = vmatpush2.xpose.msra.mxu0 0.0
  %3418 = vmatprep.subr.mxu0 0.0
  %3419 = vmatpush2.xpose.msra.mxu0 0.0
  %3420 = vmatprep.subr.mxu0 0.0
  %3421 = vmatpush2.xpose.msra.mxu0 0.0
  %3422 = vmatprep.subr.mxu0 0.0
  %3423 = vmatpush2.xpose.msra.mxu0 0.0
  %3424 = vmatprep.subr.mxu0 0.0
  %3425 = vmatpush2.xpose.msra.mxu0 0.0
  %3426 = vmatprep.subr.mxu0 0.0
  %3427 = vmatpush2.xpose.msra.mxu0 0.0
  %3428 = vmatprep.subr.mxu0 0.0
  %3429 = vmatpush2.xpose.msra.mxu0 0.0
  %3430 = vmatprep.subr.mxu0 0.0
  %3431 = vmatpush2.xpose.msra.mxu0 0.0
  %3432 = vmatprep.subr.mxu0 0.0
  %3433 = vmatpush2.xpose.msra.mxu0 0.0
  %3434 = vmatprep.subr.mxu0 0.0
  %3435 = vmatpush2.xpose.msra.mxu0 0.0
  %3436 = vmatprep.subr.mxu0 0.0
  %3437 = vmatpush2.xpose.msra.mxu0 0.0
  %3438 = vmatprep.subr.mxu0 0.0
  %3439 = vmatpush2.xpose.msra.mxu0 0.0
  %3440 = vmatprep.subr.mxu0 0.0
  %3441 = vmatpush2.xpose.msra.mxu0 0.0
  %3442 = vmatprep.mubr.f32.mxu0 0.0
  %3443 = vmatmul.mubr.f32.gmra.mxu0 %v3343
  %v3444 = vpop.f32.mrf.mxu0
  %v3445 = vadd.f32 0.0, %v3444
  %v3446 = vpop.f32.mrf.mxu0
  %3447 = vmatprep.mubr.f32.mxu0 0.0
  %3448 = vmatmul.mubr.f32.gmra.mxu0 %v3346
  %v3449 = vpop.f32.mrf.mxu0
  %v3450 = vadd.f32 0.0, %v3449
  %v3451 = vpop.f32.mrf.mxu0
  %3452 = vmatprep.mubr.f32.mxu0 0.0
  %3453 = vmatmul.mubr.f32.gmra.mxu0 %v3349
  %v3454 = vpop.f32.mrf.mxu0
  %v3455 = vadd.f32 0.0, %v3454
  %v3456 = vpop.f32.mrf.mxu0
  %3457 = vdwg.mxu0
  %3458 = vst [vmem:[%s24] sm:$0xff] %v3445
  %3459 = vst [vmem:[%s24 + $0x8] sm:$0xff] %v3450
  %3460 = vst [vmem:[%s24 + $0x10] sm:$0xff] %v3455
  // Predicated region
  $region98: #{cpc_trans_forward.1} parent=0 // pred_check
    _
  $region99: #{cpc_trans_forward.1} parent=0 // pred_check_branch
    %3462 = sbr.rel (0) target = $region101
  $region100: #{cpc_trans_forward.1} parent=0 // pred_region
    _
  $region101: #{cpc_trans_forward.1} parent=0 // pred_fallthru
    _
  // Predicated region
  $region102: #{cpc_trans_forward.1} parent=0 // pred_check
    _
  $region103: #{cpc_trans_forward.1} parent=0 // pred_check_branch
    %3464 = sbr.rel (0) target = $region105
  $region104: #{cpc_trans_forward.1} parent=0 // pred_region
    _
  $region105: #{cpc_trans_forward.1} parent=0 // pred_fallthru
    _

</llo_original>
